<compile_context>
chip_gen: v6e
topology: v6e:2x2x1
jax: 0.10.0
libtpu: 0.0.40
codegen_flags: <defaults>
</compile_context>

<pallas_src>
import functools

import jax
import jax.numpy as jnp
from jax import lax
from jax.experimental import pallas as pl
from jax.experimental.pallas import tpu as pltpu

LANE = 128
SUBLANE = 8


def _round_up(x, m):
    return (x + m - 1) // m * m


def _gate_stride(hc):
    # Gate g occupies columns [g*S, g*S + H). Tight 128-lane packing when 4*Hc fits.
    return hc if 4 * hc <= LANE else _round_up(hc, LANE)


# ----------------------------- fused Pallas kernel -----------------------------


def fused_lm_kernel(ids_ref, emb_ref, w_ih_ref, w_hh_ref, b_ref, w_proj_ref,
                    out_ref, act_ref, xp_ref, *,
                    seq_len, batch_pad, hidden, gate_stride, vocab_in_pad):
    """Embedding gather + n_layer LSTM + grid-tiled output projection.

    Grid: one axis over output-vocab tiles ("arbitrary").  The LSTM runs only at
    grid step 0 and leaves ht in the persistent `act_ref` scratch; while it runs,
    the Pallas pipeline prefetches the next w_proj tile from HBM (free overlap,
    the recurrence is latency-bound with the MXU mostly idle).

    ids_ref    : (T*Bp,)        int32  SMEM   time-major flattened token ids
    emb_ref    : (Vin_p, A)     f32    VMEM   zero-padded embedding table
    w_ih_ref   : (L, A, G)      f32    VMEM   input->gates, gate g at cols [g*S, g*S+Hc)
    w_hh_ref   : (L, Hc, G)     f32    VMEM   hidden->gates, same packed layout
    b_ref      : (L, 1, G)      f32    VMEM   b_ih + b_hh, same packed layout
    w_proj_ref : (A, TILE_V)    f32    VMEM   current [Ws_share.T | Ws_i.T] tile (from HBM)
    out_ref    : (T*Bp, TILE_V) f32           current score tile (lane-dense store)
    act_ref    : (T*Bp, A)      f32    scratch, persistent: activations / ht
    xp_ref     : (T*Bp, G)      f32    scratch: hoisted input projection
    """
    T, Bp, Hc, S = seq_len, batch_pad, hidden, gate_stride
    n_layer = w_ih_ref.shape[0]
    n_rows = T * Bp

    @pl.when(pl.program_id(0) == 0)
    def _run_lstm():
        # ---- embedding: scalar-indexed row gather (ids in SMEM, table in VMEM) ----
        if n_rows <= 512:
            for i in range(n_rows):                              # static store offsets
                tok = jnp.clip(ids_ref[i], 0, vocab_in_pad - 1)  # guard OOB ids
                act_ref[pl.ds(i, 1), :] = emb_ref[pl.ds(tok, 1), :]
        else:
            def gather_row(i, carry):
                tok = jnp.clip(ids_ref[i], 0, vocab_in_pad - 1)
                act_ref[pl.ds(i, 1), :] = emb_ref[pl.ds(tok, 1), :]
                return carry
            lax.fori_loop(0, n_rows, gather_row, 0)

        for layer in range(n_layer):
            # Hoisted input projection: one batched matmul off the serial path.
            # TODO(synk): chunk xp over time blocks at realistic T*B to cap VMEM (v7x).
            xp_ref[...] = jnp.dot(act_ref[...], w_ih_ref[layer],
                                  preferred_element_type=jnp.float32) + b_ref[layer]

            # Loop-invariant recurrent weights: only (Hc, G) = a few vregs thanks to
            # the packed-gate layout, so binding once per layer is spill-free.
            w_hh = w_hh_ref[layer]
            # TODO(synk): drive the MXU explicitly (pltpu.matmul_push_rhs once per layer
            # + matmul_acc_lhs/pop per step) so w_hh is not re-pushed every timestep.

            def step(h, c, row):
                gates = xp_ref[pl.ds(row, Bp), :] + jnp.dot(
                    h, w_hh, preferred_element_type=jnp.float32)       # (Bp, G)
                # PyTorch gate order [i, f, g, o]; packed gate stride S.
                i_g = jax.nn.sigmoid(gates[:, 0 * S:0 * S + Hc])
                f_g = jax.nn.sigmoid(gates[:, 1 * S:1 * S + Hc])
                g_g = jnp.tanh(gates[:, 2 * S:2 * S + Hc])
                o_g = jax.nn.sigmoid(gates[:, 3 * S:3 * S + Hc])
                c_n = f_g * c + i_g * g_g
                h_n = o_g * jnp.tanh(c_n)
                act_ref[pl.ds(row, Bp), 0:Hc] = h_n    # writeback is off the serial dep chain
                return h_n, c_n

            h = jnp.zeros((Bp, Hc), jnp.float32)
            c = jnp.zeros((Bp, Hc), jnp.float32)
            if T <= 16:
                # Short static T: fully unrolled, static sublane offsets.
                for t in range(T):
                    h, c = step(h, c, t * Bp)
            else:
                # Long T: bounded live ranges / compile time.
                def body(t, carry):
                    row = pl.multiple_of(t * Bp, SUBLANE)
                    return step(carry[0], carry[1], row)
                h, c = lax.fori_loop(0, T, body, (h, c), unroll=2)
            # nn.LSTM inter-layer dropout / nn.Dropout are identity (eval mode).

    # ---- output projection tile j: realizes cat([Ws_share(ht), Ws_i[lang](ht)], -1) ----
    out_ref[...] = jnp.dot(act_ref[...], w_proj_ref[...],
                           preferred_element_type=jnp.float32)


# ------------------------------- host wrapper -----------------------------------

_VMEM = pl.BlockSpec(memory_space=pltpu.MemorySpace.VMEM)
_SMEM = pl.BlockSpec(memory_space=pltpu.MemorySpace.SMEM)


@functools.partial(jax.jit, static_argnames=("vocab_out",))
def shared_language_model_forward(input_id, input_id_len, kparams, *, vocab_out):
    """input_id: (B, T) int32 token ids; input_id_len is unused (as in PyTorch forward)."""
    del input_id_len  # PyTorch forward never uses it (no pack_padded_sequence)
    B, T = input_id.shape
    Bp = _round_up(max(B, 1), SUBLANE)            # pad batch to full sublanes

    Vin_p, A = kparams["emb"].shape
    _, Hc, G = kparams["w_hh"].shape
    Vout_p = kparams["w_proj"].shape[1]
    S = _gate_stride(Hc)

    # Tile the output-vocab axis so w_proj / score stream through VMEM.
    tile_v = 512 if Vout_p % 512 == 0 else (256 if Vout_p % 256 == 0 else LANE)
    n_vtiles = Vout_p // tile_v

    ids = jnp.pad(input_id.astype(jnp.int32), ((0, Bp - B), (0, 0)))     # (Bp, T)
    ids_tm = jnp.transpose(ids, (1, 0)).reshape(T * Bp)                  # time-major flat

    # Explicit VMEM budget: resident weights + double-buffered proj/out tiles + scratch.
    def nbytes(x):
        return int(x.size) * x.dtype.itemsize
    resident = (nbytes(kparams["emb"]) + nbytes(kparams["w_ih"]) + nbytes(kparams["w_hh"])
                + nbytes(kparams["b"])
                + 2 * A * tile_v * 4 + 2 * T * Bp * tile_v * 4           # w_proj / out tiles
                + T * Bp * A * 4 + T * Bp * G * 4)                       # act + xp scratch
    vmem_limit = int(min(max(2 * resident + (4 << 20), 32 << 20), 100 << 20))

    kernel = functools.partial(fused_lm_kernel, seq_len=T, batch_pad=Bp,
                               hidden=Hc, gate_stride=S, vocab_in_pad=Vin_p)
    score_p = pl.pallas_call(
        kernel,
        out_shape=jax.ShapeDtypeStruct((T * Bp, Vout_p), jnp.float32),
        grid=(n_vtiles,),
        in_specs=[
            _SMEM,                                                # token ids (SMEM)
            _VMEM,                                                # embedding table
            _VMEM, _VMEM, _VMEM,                                  # LSTM weights / bias
            pl.BlockSpec((A, tile_v), lambda j: (0, j)),          # w_proj streamed from HBM
        ],
        out_specs=pl.BlockSpec((T * Bp, tile_v), lambda j: (0, j)),
        scratch_shapes=[
            pltpu.VMEM((T * Bp, A), jnp.float32),   # activations / ht (persists over grid)
            pltpu.VMEM((T * Bp, G), jnp.float32),   # hoisted input projection
        ],
        compiler_params=pltpu.CompilerParams(
            dimension_semantics=("arbitrary",),      # iter 0 produces ht used by all tiles
            vmem_limit_bytes=vmem_limit),
    )(ids_tm, kparams["emb"], kparams["w_ih"], kparams["w_hh"],
      kparams["b"], kparams["w_proj"])

    # TODO(synk): at realistic T/vocab, emit the score time-major to the consumer and
    # skip this host-side transpose (it re-reads/writes the largest tensor in HBM).
    score = score_p.reshape(T, Bp, Vout_p).transpose(1, 0, 2)            # (Bp, T, Vout_p)
    return score[:B, :, :vocab_out]


# ------------------------------- param building ----------------------------------


def build_params(key, *, n_layer, emb_size, h_size, vocab_in_size, vocab_out_size, pad_id):
    """Real (unpadded) parameters in PyTorch layouts."""
    keys = jax.random.split(key, 3 + 4 * n_layer)
    k_emb, k_share, k_out = keys[0], keys[1], keys[2]
    scale = 1.0 / jnp.sqrt(jnp.float32(h_size))

    emb = jax.random.normal(k_emb, (vocab_in_size, emb_size), jnp.float32) * 0.1
    emb = emb.at[pad_id].set(0.0)  # nn.Embedding padding_idx

    w_ih, w_hh, b_ih, b_hh = [], [], [], []
    for l in range(n_layer):
        in_sz = emb_size if l == 0 else h_size
        k0, k1, k2, k3 = keys[3 + 4 * l: 3 + 4 * (l + 1)]
        w_ih.append(jax.random.uniform(k0, (4 * h_size, in_sz), jnp.float32, -scale, scale))
        w_hh.append(jax.random.uniform(k1, (4 * h_size, h_size), jnp.float32, -scale, scale))
        b_ih.append(jax.random.uniform(k2, (4 * h_size,), jnp.float32, -scale, scale))
        b_hh.append(jax.random.uniform(k3, (4 * h_size,), jnp.float32, -scale, scale))

    ws_share = jax.random.uniform(k_share, (1, h_size), jnp.float32, -scale, scale)
    ws_lang = jax.random.uniform(k_out, (vocab_out_size - 1, h_size), jnp.float32, -scale, scale)

    return {"emb": emb, "w_ih": tuple(w_ih), "w_hh": tuple(w_hh),
            "b_ih": tuple(b_ih), "b_hh": tuple(b_hh),
            "ws_share": ws_share, "ws_lang": ws_lang}


def pack_params(params, *, n_layer, emb_size, h_size, vocab_in_size, vocab_out_size):
    """Zero-pad + restructure real params into the kernel's packed-gate, lane-aligned layout."""
    H, E = h_size, emb_size
    Hc = _round_up(H, SUBLANE)                 # hidden width used in-kernel
    S = _gate_stride(Hc)                       # packed gate stride
    G = _round_up(4 * S, LANE)                 # packed gate width (128 when 4*Hc <= 128)
    A = _round_up(max(E, H), LANE)             # activation / embedding lane width
    Vin_p = _round_up(vocab_in_size, SUBLANE)
    Vout_p = _round_up(vocab_out_size, LANE)

    emb_p = jnp.zeros((Vin_p, A), jnp.float32).at[:vocab_in_size, :E].set(params["emb"])

    def pack_gate_cols(w_t, rows, pad_rows):
        # w_t: (rows, 4H) gate-ordered [i,f,g,o]  ->  (pad_rows, G), gate g at [g*S, g*S+H)
        out = jnp.zeros((pad_rows, G), jnp.float32)
        for g in range(4):
            out = out.at[:rows, g * S:g * S + H].set(w_t[:, g * H:(g + 1) * H])
        return out

    w_ih_l, w_hh_l, b_l = [], [], []
    for l in range(n_layer):
        in_sz = E if l == 0 else H
        w_ih_l.append(pack_gate_cols(params["w_ih"][l].T, in_sz, A))
        w_hh_l.append(pack_gate_cols(params["w_hh"][l].T, H, Hc))
        b_real = (params["b_ih"][l] + params["b_hh"][l]).reshape(1, 4 * H)
        b_p = jnp.zeros((1, G), jnp.float32)
        for g in range(4):
            b_p = b_p.at[:, g * S:g * S + H].set(b_real[:, g * H:(g + 1) * H])
        b_l.append(b_p)

    # column 0 = eos score (Ws_share), columns 1.. = vocab scores (Ws_i[lang]) == torch.cat
    w_proj = jnp.concatenate([params["ws_share"], params["ws_lang"]], axis=0).T   # (H, Vout)
    w_proj_p = jnp.zeros((A, Vout_p), jnp.float32).at[:H, :vocab_out_size].set(w_proj)

    return {"emb": emb_p, "w_ih": jnp.stack(w_ih_l), "w_hh": jnp.stack(w_hh_l),
            "b": jnp.stack(b_l), "w_proj": w_proj_p}


# --------------------------- pure-JAX reference (check) ---------------------------


def reference_forward(input_id, params, *, h_size):
    H = h_size
    x = jnp.take(params["emb"], input_id, axis=0)            # (B, T, E)
    B = x.shape[0]
    h_seq = jnp.swapaxes(x, 0, 1)                            # (T, B, E)
    for w_ih, w_hh, b_ih, b_hh in zip(params["w_ih"], params["w_hh"],
                                      params["b_ih"], params["b_hh"]):
        def step(carry, x_t):
            h, c = carry
            gates = x_t @ w_ih.T + h @ w_hh.T + b_ih + b_hh
            i = jax.nn.sigmoid(gates[:, 0 * H:1 * H])
            f = jax.nn.sigmoid(gates[:, 1 * H:2 * H])
            g = jnp.tanh(gates[:, 2 * H:3 * H])
            o = jax.nn.sigmoid(gates[:, 3 * H:4 * H])
            c = f * c + i * g
            h = o * jnp.tanh(c)
            return (h, c), h
        init = (jnp.zeros((B, H), jnp.float32), jnp.zeros((B, H), jnp.float32))
        _, h_seq = lax.scan(step, init, h_seq)
    ht = jnp.swapaxes(h_seq, 0, 1)                           # (B, T, H)
    score_eos = ht @ params["ws_share"].T
    score_v = ht @ params["ws_lang"].T
    return jnp.concatenate([score_eos, score_v], axis=-1)


# ------------------------------------ main ----------------------------------------

if __name__ == "__main__":
    B, T = 2, 8
    n_layer, emb_size, h_size = 2, 32, 32
    vocab_in_size = 40    # Max_Word_idx
    vocab_out_size = 40   # 1 (Ws_share / eos) + (V_size[lang] - 1)
    pad_id = 0

    key = jax.random.PRNGKey(0)
    k_params, k_ids = jax.random.split(key, 2)

    params = build_params(k_params, n_layer=n_layer, emb_size=emb_size, h_size=h_size,
                          vocab_in_size=vocab_in_size, vocab_out_size=vocab_out_size,
                          pad_id=pad_id)
    kparams = pack_params(params, n_layer=n_layer, emb_size=emb_size, h_size=h_size,
                          vocab_in_size=vocab_in_size, vocab_out_size=vocab_out_size)

    input_id = jax.random.randint(k_ids, (B, T), 1, vocab_in_size, dtype=jnp.int32)
    t_lengths = jnp.full((B,), T, dtype=jnp.int32)  # unused by forward, mirrors signature

    score = shared_language_model_forward(input_id, t_lengths, kparams,
                                          vocab_out=vocab_out_size)
    score = jax.block_until_ready(score)

    assert score.shape == (B, T, vocab_out_size), score.shape
    assert bool(jnp.all(jnp.isfinite(score)))

    ref = reference_forward(input_id, params, h_size=h_size)
    err = float(jnp.max(jnp.abs(score - ref)))
    assert err < 1e-4, f"mismatch vs pure-JAX reference: {err}"

    print("KERNEL_OK")
</pallas_src>

<mosaic_0001>
module attributes {stable_mosaic.version = 11 : i64} {
  func.func @fused_lm_kernel(%arg0: i32, %arg1: memref<64xi32, #tpu.memory_space<smem>>, %arg2: memref<40x128xf32, #tpu.memory_space<vmem>>, %arg3: memref<2x128x128xf32, #tpu.memory_space<vmem>>, %arg4: memref<2x32x128xf32, #tpu.memory_space<vmem>>, %arg5: memref<2x1x128xf32, #tpu.memory_space<vmem>>, %arg6: memref<128x128xf32, #tpu.memory_space<vmem>>, %arg7: memref<64x128xf32, #tpu.memory_space<vmem>>, %arg8: memref<64x128xf32, #tpu.memory_space<vmem>>, %arg9: memref<64x128xf32, #tpu.memory_space<vmem>>) attributes {dimension_semantics = [#tpu.dimension_semantics<arbitrary>], iteration_bounds = array<i64: 1>, scalar_prefetch = 0 : i64, scratch_operands = 2 : i64, tpu.core_type = #tpu.core_type<tc>, window_params = [{transform_indices = @transform_0, window_bounds = array<i64: 64>}, {pipeline_mode = #tpu.pipeline_mode<synchronous>, transform_indices = @transform_1, window_bounds = array<i64: 40, 128>}, {pipeline_mode = #tpu.pipeline_mode<synchronous>, transform_indices = @transform_2, window_bounds = array<i64: 2, 128, 128>}, {pipeline_mode = #tpu.pipeline_mode<synchronous>, transform_indices = @transform_3, window_bounds = array<i64: 2, 32, 128>}, {pipeline_mode = #tpu.pipeline_mode<synchronous>, transform_indices = @transform_4, window_bounds = array<i64: 2, 1, 128>}, {transform_indices = @transform_5, window_bounds = array<i64: 128, 128>}, {transform_indices = @transform_6, window_bounds = array<i64: 64, 128>}]} {
    %c0_i32 = arith.constant 0 : i32
    %0 = arith.cmpi eq, %arg0, %c0_i32 : i32
    %1 = arith.extui %0 : i1 to i32
    %c0_i32_0 = arith.constant 0 : i32
    %2 = arith.cmpi ne, %1, %c0_i32_0 : i32
    scf.if %2 {
      %c0_6 = arith.constant 0 : index
      %7 = memref.load %arg1[%c0_6] : memref<64xi32, #tpu.memory_space<smem>>
      %c0_i32_7 = arith.constant 0 : i32
      %c39_i32 = arith.constant 39 : i32
      %8 = arith.maxsi %c0_i32_7, %7 : i32
      %9 = arith.minsi %c39_i32, %8 : i32
      %10 = arith.index_cast %9 : i32 to index
      %c0_8 = arith.constant 0 : index
      %11 = vector.load %arg2[%10, %c0_8] : memref<40x128xf32, #tpu.memory_space<vmem>>, vector<1x128xf32>
      %c0_9 = arith.constant 0 : index
      %c0_10 = arith.constant 0 : index
      %12 = vector.load %arg8[%c0_9, %c0_10] : memref<64x128xf32, #tpu.memory_space<vmem>>, vector<1x128xf32>
      tpu.vector_store %arg8[%c0_9, %c0_10], %11 {strides = array<i32>} : memref<64x128xf32, #tpu.memory_space<vmem>>, vector<1x128xf32>,
      %c1 = arith.constant 1 : index
      %13 = memref.load %arg1[%c1] : memref<64xi32, #tpu.memory_space<smem>>
      %c0_i32_11 = arith.constant 0 : i32
      %c39_i32_12 = arith.constant 39 : i32
      %14 = arith.maxsi %c0_i32_11, %13 : i32
      %15 = arith.minsi %c39_i32_12, %14 : i32
      %16 = arith.index_cast %15 : i32 to index
      %c0_13 = arith.constant 0 : index
      %17 = vector.load %arg2[%16, %c0_13] : memref<40x128xf32, #tpu.memory_space<vmem>>, vector<1x128xf32>
      %c1_14 = arith.constant 1 : index
      %c0_15 = arith.constant 0 : index
      %18 = vector.load %arg8[%c1_14, %c0_15] : memref<64x128xf32, #tpu.memory_space<vmem>>, vector<1x128xf32>
      tpu.vector_store %arg8[%c1_14, %c0_15], %17 {strides = array<i32>} : memref<64x128xf32, #tpu.memory_space<vmem>>, vector<1x128xf32>,
      %c2 = arith.constant 2 : index
      %19 = memref.load %arg1[%c2] : memref<64xi32, #tpu.memory_space<smem>>
      %c0_i32_16 = arith.constant 0 : i32
      %c39_i32_17 = arith.constant 39 : i32
      %20 = arith.maxsi %c0_i32_16, %19 : i32
      %21 = arith.minsi %c39_i32_17, %20 : i32
      %22 = arith.index_cast %21 : i32 to index
      %c0_18 = arith.constant 0 : index
      %23 = vector.load %arg2[%22, %c0_18] : memref<40x128xf32, #tpu.memory_space<vmem>>, vector<1x128xf32>
      %c2_19 = arith.constant 2 : index
      %c0_20 = arith.constant 0 : index
      %24 = vector.load %arg8[%c2_19, %c0_20] : memref<64x128xf32, #tpu.memory_space<vmem>>, vector<1x128xf32>
      tpu.vector_store %arg8[%c2_19, %c0_20], %23 {strides = array<i32>} : memref<64x128xf32, #tpu.memory_space<vmem>>, vector<1x128xf32>,
      %c3 = arith.constant 3 : index
      %25 = memref.load %arg1[%c3] : memref<64xi32, #tpu.memory_space<smem>>
      %c0_i32_21 = arith.constant 0 : i32
      %c39_i32_22 = arith.constant 39 : i32
      %26 = arith.maxsi %c0_i32_21, %25 : i32
      %27 = arith.minsi %c39_i32_22, %26 : i32
      %28 = arith.index_cast %27 : i32 to index
      %c0_23 = arith.constant 0 : index
      %29 = vector.load %arg2[%28, %c0_23] : memref<40x128xf32, #tpu.memory_space<vmem>>, vector<1x128xf32>
      %c3_24 = arith.constant 3 : index
      %c0_25 = arith.constant 0 : index
      %30 = vector.load %arg8[%c3_24, %c0_25] : memref<64x128xf32, #tpu.memory_space<vmem>>, vector<1x128xf32>
      tpu.vector_store %arg8[%c3_24, %c0_25], %29 {strides = array<i32>} : memref<64x128xf32, #tpu.memory_space<vmem>>, vector<1x128xf32>,
      %c4 = arith.constant 4 : index
      %31 = memref.load %arg1[%c4] : memref<64xi32, #tpu.memory_space<smem>>
      %c0_i32_26 = arith.constant 0 : i32
      %c39_i32_27 = arith.constant 39 : i32
      %32 = arith.maxsi %c0_i32_26, %31 : i32
      %33 = arith.minsi %c39_i32_27, %32 : i32
      %34 = arith.index_cast %33 : i32 to index
      %c0_28 = arith.constant 0 : index
      %35 = vector.load %arg2[%34, %c0_28] : memref<40x128xf32, #tpu.memory_space<vmem>>, vector<1x128xf32>
      %c4_29 = arith.constant 4 : index
      %c0_30 = arith.constant 0 : index
      %36 = vector.load %arg8[%c4_29, %c0_30] : memref<64x128xf32, #tpu.memory_space<vmem>>, vector<1x128xf32>
      tpu.vector_store %arg8[%c4_29, %c0_30], %35 {strides = array<i32>} : memref<64x128xf32, #tpu.memory_space<vmem>>, vector<1x128xf32>,
      %c5 = arith.constant 5 : index
      %37 = memref.load %arg1[%c5] : memref<64xi32, #tpu.memory_space<smem>>
      %c0_i32_31 = arith.constant 0 : i32
      %c39_i32_32 = arith.constant 39 : i32
      %38 = arith.maxsi %c0_i32_31, %37 : i32
      %39 = arith.minsi %c39_i32_32, %38 : i32
      %40 = arith.index_cast %39 : i32 to index
      %c0_33 = arith.constant 0 : index
      %41 = vector.load %arg2[%40, %c0_33] : memref<40x128xf32, #tpu.memory_space<vmem>>, vector<1x128xf32>
      %c5_34 = arith.constant 5 : index
      %c0_35 = arith.constant 0 : index
      %42 = vector.load %arg8[%c5_34, %c0_35] : memref<64x128xf32, #tpu.memory_space<vmem>>, vector<1x128xf32>
      tpu.vector_store %arg8[%c5_34, %c0_35], %41 {strides = array<i32>} : memref<64x128xf32, #tpu.memory_space<vmem>>, vector<1x128xf32>,
      %c6 = arith.constant 6 : index
      %43 = memref.load %arg1[%c6] : memref<64xi32, #tpu.memory_space<smem>>
      %c0_i32_36 = arith.constant 0 : i32
      %c39_i32_37 = arith.constant 39 : i32
      %44 = arith.maxsi %c0_i32_36, %43 : i32
      %45 = arith.minsi %c39_i32_37, %44 : i32
      %46 = arith.index_cast %45 : i32 to index
      %c0_38 = arith.constant 0 : index
      %47 = vector.load %arg2[%46, %c0_38] : memref<40x128xf32, #tpu.memory_space<vmem>>, vector<1x128xf32>
      %c6_39 = arith.constant 6 : index
      %c0_40 = arith.constant 0 : index
      %48 = vector.load %arg8[%c6_39, %c0_40] : memref<64x128xf32, #tpu.memory_space<vmem>>, vector<1x128xf32>
      tpu.vector_store %arg8[%c6_39, %c0_40], %47 {strides = array<i32>} : memref<64x128xf32, #tpu.memory_space<vmem>>, vector<1x128xf32>,
      %c7 = arith.constant 7 : index
      %49 = memref.load %arg1[%c7] : memref<64xi32, #tpu.memory_space<smem>>
      %c0_i32_41 = arith.constant 0 : i32
      %c39_i32_42 = arith.constant 39 : i32
      %50 = arith.maxsi %c0_i32_41, %49 : i32
      %51 = arith.minsi %c39_i32_42, %50 : i32
      %52 = arith.index_cast %51 : i32 to index
      %c0_43 = arith.constant 0 : index
      %53 = vector.load %arg2[%52, %c0_43] : memref<40x128xf32, #tpu.memory_space<vmem>>, vector<1x128xf32>
      %c7_44 = arith.constant 7 : index
      %c0_45 = arith.constant 0 : index
      %54 = vector.load %arg8[%c7_44, %c0_45] : memref<64x128xf32, #tpu.memory_space<vmem>>, vector<1x128xf32>
      tpu.vector_store %arg8[%c7_44, %c0_45], %53 {strides = array<i32>} : memref<64x128xf32, #tpu.memory_space<vmem>>, vector<1x128xf32>,
      %c8 = arith.constant 8 : index
      %55 = memref.load %arg1[%c8] : memref<64xi32, #tpu.memory_space<smem>>
      %c0_i32_46 = arith.constant 0 : i32
      %c39_i32_47 = arith.constant 39 : i32
      %56 = arith.maxsi %c0_i32_46, %55 : i32
      %57 = arith.minsi %c39_i32_47, %56 : i32
      %58 = arith.index_cast %57 : i32 to index
      %c0_48 = arith.constant 0 : index
      %59 = vector.load %arg2[%58, %c0_48] : memref<40x128xf32, #tpu.memory_space<vmem>>, vector<1x128xf32>
      %c8_49 = arith.constant 8 : index
      %c0_50 = arith.constant 0 : index
      %60 = vector.load %arg8[%c8_49, %c0_50] : memref<64x128xf32, #tpu.memory_space<vmem>>, vector<1x128xf32>
      tpu.vector_store %arg8[%c8_49, %c0_50], %59 {strides = array<i32>} : memref<64x128xf32, #tpu.memory_space<vmem>>, vector<1x128xf32>,
      %c9 = arith.constant 9 : index
      %61 = memref.load %arg1[%c9] : memref<64xi32, #tpu.memory_space<smem>>
      %c0_i32_51 = arith.constant 0 : i32
      %c39_i32_52 = arith.constant 39 : i32
      %62 = arith.maxsi %c0_i32_51, %61 : i32
      %63 = arith.minsi %c39_i32_52, %62 : i32
      %64 = arith.index_cast %63 : i32 to index
      %c0_53 = arith.constant 0 : index
      %65 = vector.load %arg2[%64, %c0_53] : memref<40x128xf32, #tpu.memory_space<vmem>>, vector<1x128xf32>
      %c9_54 = arith.constant 9 : index
      %c0_55 = arith.constant 0 : index
      %66 = vector.load %arg8[%c9_54, %c0_55] : memref<64x128xf32, #tpu.memory_space<vmem>>, vector<1x128xf32>
      tpu.vector_store %arg8[%c9_54, %c0_55], %65 {strides = array<i32>} : memref<64x128xf32, #tpu.memory_space<vmem>>, vector<1x128xf32>,
      %c10 = arith.constant 10 : index
      %67 = memref.load %arg1[%c10] : memref<64xi32, #tpu.memory_space<smem>>
      %c0_i32_56 = arith.constant 0 : i32
      %c39_i32_57 = arith.constant 39 : i32
      %68 = arith.maxsi %c0_i32_56, %67 : i32
      %69 = arith.minsi %c39_i32_57, %68 : i32
      %70 = arith.index_cast %69 : i32 to index
      %c0_58 = arith.constant 0 : index
      %71 = vector.load %arg2[%70, %c0_58] : memref<40x128xf32, #tpu.memory_space<vmem>>, vector<1x128xf32>
      %c10_59 = arith.constant 10 : index
      %c0_60 = arith.constant 0 : index
      %72 = vector.load %arg8[%c10_59, %c0_60] : memref<64x128xf32, #tpu.memory_space<vmem>>, vector<1x128xf32>
      tpu.vector_store %arg8[%c10_59, %c0_60], %71 {strides = array<i32>} : memref<64x128xf32, #tpu.memory_space<vmem>>, vector<1x128xf32>,
      %c11 = arith.constant 11 : index
      %73 = memref.load %arg1[%c11] : memref<64xi32, #tpu.memory_space<smem>>
      %c0_i32_61 = arith.constant 0 : i32
      %c39_i32_62 = arith.constant 39 : i32
      %74 = arith.maxsi %c0_i32_61, %73 : i32
      %75 = arith.minsi %c39_i32_62, %74 : i32
      %76 = arith.index_cast %75 : i32 to index
      %c0_63 = arith.constant 0 : index
      %77 = vector.load %arg2[%76, %c0_63] : memref<40x128xf32, #tpu.memory_space<vmem>>, vector<1x128xf32>
      %c11_64 = arith.constant 11 : index
      %c0_65 = arith.constant 0 : index
      %78 = vector.load %arg8[%c11_64, %c0_65] : memref<64x128xf32, #tpu.memory_space<vmem>>, vector<1x128xf32>
      tpu.vector_store %arg8[%c11_64, %c0_65], %77 {strides = array<i32>} : memref<64x128xf32, #tpu.memory_space<vmem>>, vector<1x128xf32>,
      %c12 = arith.constant 12 : index
      %79 = memref.load %arg1[%c12] : memref<64xi32, #tpu.memory_space<smem>>
      %c0_i32_66 = arith.constant 0 : i32
      %c39_i32_67 = arith.constant 39 : i32
      %80 = arith.maxsi %c0_i32_66, %79 : i32
      %81 = arith.minsi %c39_i32_67, %80 : i32
      %82 = arith.index_cast %81 : i32 to index
      %c0_68 = arith.constant 0 : index
      %83 = vector.load %arg2[%82, %c0_68] : memref<40x128xf32, #tpu.memory_space<vmem>>, vector<1x128xf32>
      %c12_69 = arith.constant 12 : index
      %c0_70 = arith.constant 0 : index
      %84 = vector.load %arg8[%c12_69, %c0_70] : memref<64x128xf32, #tpu.memory_space<vmem>>, vector<1x128xf32>
      tpu.vector_store %arg8[%c12_69, %c0_70], %83 {strides = array<i32>} : memref<64x128xf32, #tpu.memory_space<vmem>>, vector<1x128xf32>,
      %c13 = arith.constant 13 : index
      %85 = memref.load %arg1[%c13] : memref<64xi32, #tpu.memory_space<smem>>
      %c0_i32_71 = arith.constant 0 : i32
      %c39_i32_72 = arith.constant 39 : i32
      %86 = arith.maxsi %c0_i32_71, %85 : i32
      %87 = arith.minsi %c39_i32_72, %86 : i32
      %88 = arith.index_cast %87 : i32 to index
      %c0_73 = arith.constant 0 : index
      %89 = vector.load %arg2[%88, %c0_73] : memref<40x128xf32, #tpu.memory_space<vmem>>, vector<1x128xf32>
      %c13_74 = arith.constant 13 : index
      %c0_75 = arith.constant 0 : index
      %90 = vector.load %arg8[%c13_74, %c0_75] : memref<64x128xf32, #tpu.memory_space<vmem>>, vector<1x128xf32>
      tpu.vector_store %arg8[%c13_74, %c0_75], %89 {strides = array<i32>} : memref<64x128xf32, #tpu.memory_space<vmem>>, vector<1x128xf32>,
      %c14 = arith.constant 14 : index
      %91 = memref.load %arg1[%c14] : memref<64xi32, #tpu.memory_space<smem>>
      %c0_i32_76 = arith.constant 0 : i32
      %c39_i32_77 = arith.constant 39 : i32
      %92 = arith.maxsi %c0_i32_76, %91 : i32
      %93 = arith.minsi %c39_i32_77, %92 : i32
      %94 = arith.index_cast %93 : i32 to index
      %c0_78 = arith.constant 0 : index
      %95 = vector.load %arg2[%94, %c0_78] : memref<40x128xf32, #tpu.memory_space<vmem>>, vector<1x128xf32>
      %c14_79 = arith.constant 14 : index
      %c0_80 = arith.constant 0 : index
      %96 = vector.load %arg8[%c14_79, %c0_80] : memref<64x128xf32, #tpu.memory_space<vmem>>, vector<1x128xf32>
      tpu.vector_store %arg8[%c14_79, %c0_80], %95 {strides = array<i32>} : memref<64x128xf32, #tpu.memory_space<vmem>>, vector<1x128xf32>,
      %c15 = arith.constant 15 : index
      %97 = memref.load %arg1[%c15] : memref<64xi32, #tpu.memory_space<smem>>
      %c0_i32_81 = arith.constant 0 : i32
      %c39_i32_82 = arith.constant 39 : i32
      %98 = arith.maxsi %c0_i32_81, %97 : i32
      %99 = arith.minsi %c39_i32_82, %98 : i32
      %100 = arith.index_cast %99 : i32 to index
      %c0_83 = arith.constant 0 : index
      %101 = vector.load %arg2[%100, %c0_83] : memref<40x128xf32, #tpu.memory_space<vmem>>, vector<1x128xf32>
      %c15_84 = arith.constant 15 : index
      %c0_85 = arith.constant 0 : index
      %102 = vector.load %arg8[%c15_84, %c0_85] : memref<64x128xf32, #tpu.memory_space<vmem>>, vector<1x128xf32>
      tpu.vector_store %arg8[%c15_84, %c0_85], %101 {strides = array<i32>} : memref<64x128xf32, #tpu.memory_space<vmem>>, vector<1x128xf32>,
      %c16 = arith.constant 16 : index
      %103 = memref.load %arg1[%c16] : memref<64xi32, #tpu.memory_space<smem>>
      %c0_i32_86 = arith.constant 0 : i32
      %c39_i32_87 = arith.constant 39 : i32
      %104 = arith.maxsi %c0_i32_86, %103 : i32
      %105 = arith.minsi %c39_i32_87, %104 : i32
      %106 = arith.index_cast %105 : i32 to index
      %c0_88 = arith.constant 0 : index
      %107 = vector.load %arg2[%106, %c0_88] : memref<40x128xf32, #tpu.memory_space<vmem>>, vector<1x128xf32>
      %c16_89 = arith.constant 16 : index
      %c0_90 = arith.constant 0 : index
      %108 = vector.load %arg8[%c16_89, %c0_90] : memref<64x128xf32, #tpu.memory_space<vmem>>, vector<1x128xf32>
      tpu.vector_store %arg8[%c16_89, %c0_90], %107 {strides = array<i32>} : memref<64x128xf32, #tpu.memory_space<vmem>>, vector<1x128xf32>,
      %c17 = arith.constant 17 : index
      %109 = memref.load %arg1[%c17] : memref<64xi32, #tpu.memory_space<smem>>
      %c0_i32_91 = arith.constant 0 : i32
      %c39_i32_92 = arith.constant 39 : i32
      %110 = arith.maxsi %c0_i32_91, %109 : i32
      %111 = arith.minsi %c39_i32_92, %110 : i32
      %112 = arith.index_cast %111 : i32 to index
      %c0_93 = arith.constant 0 : index
      %113 = vector.load %arg2[%112, %c0_93] : memref<40x128xf32, #tpu.memory_space<vmem>>, vector<1x128xf32>
      %c17_94 = arith.constant 17 : index
      %c0_95 = arith.constant 0 : index
      %114 = vector.load %arg8[%c17_94, %c0_95] : memref<64x128xf32, #tpu.memory_space<vmem>>, vector<1x128xf32>
      tpu.vector_store %arg8[%c17_94, %c0_95], %113 {strides = array<i32>} : memref<64x128xf32, #tpu.memory_space<vmem>>, vector<1x128xf32>,
      %c18 = arith.constant 18 : index
      %115 = memref.load %arg1[%c18] : memref<64xi32, #tpu.memory_space<smem>>
      %c0_i32_96 = arith.constant 0 : i32
      %c39_i32_97 = arith.constant 39 : i32
      %116 = arith.maxsi %c0_i32_96, %115 : i32
      %117 = arith.minsi %c39_i32_97, %116 : i32
      %118 = arith.index_cast %117 : i32 to index
      %c0_98 = arith.constant 0 : index
      %119 = vector.load %arg2[%118, %c0_98] : memref<40x128xf32, #tpu.memory_space<vmem>>, vector<1x128xf32>
      %c18_99 = arith.constant 18 : index
      %c0_100 = arith.constant 0 : index
      %120 = vector.load %arg8[%c18_99, %c0_100] : memref<64x128xf32, #tpu.memory_space<vmem>>, vector<1x128xf32>
      tpu.vector_store %arg8[%c18_99, %c0_100], %119 {strides = array<i32>} : memref<64x128xf32, #tpu.memory_space<vmem>>, vector<1x128xf32>,
      %c19 = arith.constant 19 : index
      %121 = memref.load %arg1[%c19] : memref<64xi32, #tpu.memory_space<smem>>
      %c0_i32_101 = arith.constant 0 : i32
      %c39_i32_102 = arith.constant 39 : i32
      %122 = arith.maxsi %c0_i32_101, %121 : i32
      %123 = arith.minsi %c39_i32_102, %122 : i32
      %124 = arith.index_cast %123 : i32 to index
      %c0_103 = arith.constant 0 : index
      %125 = vector.load %arg2[%124, %c0_103] : memref<40x128xf32, #tpu.memory_space<vmem>>, vector<1x128xf32>
      %c19_104 = arith.constant 19 : index
      %c0_105 = arith.constant 0 : index
      %126 = vector.load %arg8[%c19_104, %c0_105] : memref<64x128xf32, #tpu.memory_space<vmem>>, vector<1x128xf32>
      tpu.vector_store %arg8[%c19_104, %c0_105], %125 {strides = array<i32>} : memref<64x128xf32, #tpu.memory_space<vmem>>, vector<1x128xf32>,
      %c20 = arith.constant 20 : index
      %127 = memref.load %arg1[%c20] : memref<64xi32, #tpu.memory_space<smem>>
      %c0_i32_106 = arith.constant 0 : i32
      %c39_i32_107 = arith.constant 39 : i32
      %128 = arith.maxsi %c0_i32_106, %127 : i32
      %129 = arith.minsi %c39_i32_107, %128 : i32
      %130 = arith.index_cast %129 : i32 to index
      %c0_108 = arith.constant 0 : index
      %131 = vector.load %arg2[%130, %c0_108] : memref<40x128xf32, #tpu.memory_space<vmem>>, vector<1x128xf32>
      %c20_109 = arith.constant 20 : index
      %c0_110 = arith.constant 0 : index
      %132 = vector.load %arg8[%c20_109, %c0_110] : memref<64x128xf32, #tpu.memory_space<vmem>>, vector<1x128xf32>
      tpu.vector_store %arg8[%c20_109, %c0_110], %131 {strides = array<i32>} : memref<64x128xf32, #tpu.memory_space<vmem>>, vector<1x128xf32>,
      %c21 = arith.constant 21 : index
      %133 = memref.load %arg1[%c21] : memref<64xi32, #tpu.memory_space<smem>>
      %c0_i32_111 = arith.constant 0 : i32
      %c39_i32_112 = arith.constant 39 : i32
      %134 = arith.maxsi %c0_i32_111, %133 : i32
      %135 = arith.minsi %c39_i32_112, %134 : i32
      %136 = arith.index_cast %135 : i32 to index
      %c0_113 = arith.constant 0 : index
      %137 = vector.load %arg2[%136, %c0_113] : memref<40x128xf32, #tpu.memory_space<vmem>>, vector<1x128xf32>
      %c21_114 = arith.constant 21 : index
      %c0_115 = arith.constant 0 : index
      %138 = vector.load %arg8[%c21_114, %c0_115] : memref<64x128xf32, #tpu.memory_space<vmem>>, vector<1x128xf32>
      tpu.vector_store %arg8[%c21_114, %c0_115], %137 {strides = array<i32>} : memref<64x128xf32, #tpu.memory_space<vmem>>, vector<1x128xf32>,
      %c22 = arith.constant 22 : index
      %139 = memref.load %arg1[%c22] : memref<64xi32, #tpu.memory_space<smem>>
      %c0_i32_116 = arith.constant 0 : i32
      %c39_i32_117 = arith.constant 39 : i32
      %140 = arith.maxsi %c0_i32_116, %139 : i32
      %141 = arith.minsi %c39_i32_117, %140 : i32
      %142 = arith.index_cast %141 : i32 to index
      %c0_118 = arith.constant 0 : index
      %143 = vector.load %arg2[%142, %c0_118] : memref<40x128xf32, #tpu.memory_space<vmem>>, vector<1x128xf32>
      %c22_119 = arith.constant 22 : index
      %c0_120 = arith.constant 0 : index
      %144 = vector.load %arg8[%c22_119, %c0_120] : memref<64x128xf32, #tpu.memory_space<vmem>>, vector<1x128xf32>
      tpu.vector_store %arg8[%c22_119, %c0_120], %143 {strides = array<i32>} : memref<64x128xf32, #tpu.memory_space<vmem>>, vector<1x128xf32>,
      %c23 = arith.constant 23 : index
      %145 = memref.load %arg1[%c23] : memref<64xi32, #tpu.memory_space<smem>>
      %c0_i32_121 = arith.constant 0 : i32
      %c39_i32_122 = arith.constant 39 : i32
      %146 = arith.maxsi %c0_i32_121, %145 : i32
      %147 = arith.minsi %c39_i32_122, %146 : i32
      %148 = arith.index_cast %147 : i32 to index
      %c0_123 = arith.constant 0 : index
      %149 = vector.load %arg2[%148, %c0_123] : memref<40x128xf32, #tpu.memory_space<vmem>>, vector<1x128xf32>
      %c23_124 = arith.constant 23 : index
      %c0_125 = arith.constant 0 : index
      %150 = vector.load %arg8[%c23_124, %c0_125] : memref<64x128xf32, #tpu.memory_space<vmem>>, vector<1x128xf32>
      tpu.vector_store %arg8[%c23_124, %c0_125], %149 {strides = array<i32>} : memref<64x128xf32, #tpu.memory_space<vmem>>, vector<1x128xf32>,
      %c24 = arith.constant 24 : index
      %151 = memref.load %arg1[%c24] : memref<64xi32, #tpu.memory_space<smem>>
      %c0_i32_126 = arith.constant 0 : i32
      %c39_i32_127 = arith.constant 39 : i32
      %152 = arith.maxsi %c0_i32_126, %151 : i32
      %153 = arith.minsi %c39_i32_127, %152 : i32
      %154 = arith.index_cast %153 : i32 to index
      %c0_128 = arith.constant 0 : index
      %155 = vector.load %arg2[%154, %c0_128] : memref<40x128xf32, #tpu.memory_space<vmem>>, vector<1x128xf32>
      %c24_129 = arith.constant 24 : index
      %c0_130 = arith.constant 0 : index
      %156 = vector.load %arg8[%c24_129, %c0_130] : memref<64x128xf32, #tpu.memory_space<vmem>>, vector<1x128xf32>
      tpu.vector_store %arg8[%c24_129, %c0_130], %155 {strides = array<i32>} : memref<64x128xf32, #tpu.memory_space<vmem>>, vector<1x128xf32>,
      %c25 = arith.constant 25 : index
      %157 = memref.load %arg1[%c25] : memref<64xi32, #tpu.memory_space<smem>>
      %c0_i32_131 = arith.constant 0 : i32
      %c39_i32_132 = arith.constant 39 : i32
      %158 = arith.maxsi %c0_i32_131, %157 : i32
      %159 = arith.minsi %c39_i32_132, %158 : i32
      %160 = arith.index_cast %159 : i32 to index
      %c0_133 = arith.constant 0 : index
      %161 = vector.load %arg2[%160, %c0_133] : memref<40x128xf32, #tpu.memory_space<vmem>>, vector<1x128xf32>
      %c25_134 = arith.constant 25 : index
      %c0_135 = arith.constant 0 : index
      %162 = vector.load %arg8[%c25_134, %c0_135] : memref<64x128xf32, #tpu.memory_space<vmem>>, vector<1x128xf32>
      tpu.vector_store %arg8[%c25_134, %c0_135], %161 {strides = array<i32>} : memref<64x128xf32, #tpu.memory_space<vmem>>, vector<1x128xf32>,
      %c26 = arith.constant 26 : index
      %163 = memref.load %arg1[%c26] : memref<64xi32, #tpu.memory_space<smem>>
      %c0_i32_136 = arith.constant 0 : i32
      %c39_i32_137 = arith.constant 39 : i32
      %164 = arith.maxsi %c0_i32_136, %163 : i32
      %165 = arith.minsi %c39_i32_137, %164 : i32
      %166 = arith.index_cast %165 : i32 to index
      %c0_138 = arith.constant 0 : index
      %167 = vector.load %arg2[%166, %c0_138] : memref<40x128xf32, #tpu.memory_space<vmem>>, vector<1x128xf32>
      %c26_139 = arith.constant 26 : index
      %c0_140 = arith.constant 0 : index
      %168 = vector.load %arg8[%c26_139, %c0_140] : memref<64x128xf32, #tpu.memory_space<vmem>>, vector<1x128xf32>
      tpu.vector_store %arg8[%c26_139, %c0_140], %167 {strides = array<i32>} : memref<64x128xf32, #tpu.memory_space<vmem>>, vector<1x128xf32>,
      %c27 = arith.constant 27 : index
      %169 = memref.load %arg1[%c27] : memref<64xi32, #tpu.memory_space<smem>>
      %c0_i32_141 = arith.constant 0 : i32
      %c39_i32_142 = arith.constant 39 : i32
      %170 = arith.maxsi %c0_i32_141, %169 : i32
      %171 = arith.minsi %c39_i32_142, %170 : i32
      %172 = arith.index_cast %171 : i32 to index
      %c0_143 = arith.constant 0 : index
      %173 = vector.load %arg2[%172, %c0_143] : memref<40x128xf32, #tpu.memory_space<vmem>>, vector<1x128xf32>
      %c27_144 = arith.constant 27 : index
      %c0_145 = arith.constant 0 : index
      %174 = vector.load %arg8[%c27_144, %c0_145] : memref<64x128xf32, #tpu.memory_space<vmem>>, vector<1x128xf32>
      tpu.vector_store %arg8[%c27_144, %c0_145], %173 {strides = array<i32>} : memref<64x128xf32, #tpu.memory_space<vmem>>, vector<1x128xf32>,
      %c28 = arith.constant 28 : index
      %175 = memref.load %arg1[%c28] : memref<64xi32, #tpu.memory_space<smem>>
      %c0_i32_146 = arith.constant 0 : i32
      %c39_i32_147 = arith.constant 39 : i32
      %176 = arith.maxsi %c0_i32_146, %175 : i32
      %177 = arith.minsi %c39_i32_147, %176 : i32
      %178 = arith.index_cast %177 : i32 to index
      %c0_148 = arith.constant 0 : index
      %179 = vector.load %arg2[%178, %c0_148] : memref<40x128xf32, #tpu.memory_space<vmem>>, vector<1x128xf32>
      %c28_149 = arith.constant 28 : index
      %c0_150 = arith.constant 0 : index
      %180 = vector.load %arg8[%c28_149, %c0_150] : memref<64x128xf32, #tpu.memory_space<vmem>>, vector<1x128xf32>
      tpu.vector_store %arg8[%c28_149, %c0_150], %179 {strides = array<i32>} : memref<64x128xf32, #tpu.memory_space<vmem>>, vector<1x128xf32>,
      %c29 = arith.constant 29 : index
      %181 = memref.load %arg1[%c29] : memref<64xi32, #tpu.memory_space<smem>>
      %c0_i32_151 = arith.constant 0 : i32
      %c39_i32_152 = arith.constant 39 : i32
      %182 = arith.maxsi %c0_i32_151, %181 : i32
      %183 = arith.minsi %c39_i32_152, %182 : i32
      %184 = arith.index_cast %183 : i32 to index
      %c0_153 = arith.constant 0 : index
      %185 = vector.load %arg2[%184, %c0_153] : memref<40x128xf32, #tpu.memory_space<vmem>>, vector<1x128xf32>
      %c29_154 = arith.constant 29 : index
      %c0_155 = arith.constant 0 : index
      %186 = vector.load %arg8[%c29_154, %c0_155] : memref<64x128xf32, #tpu.memory_space<vmem>>, vector<1x128xf32>
      tpu.vector_store %arg8[%c29_154, %c0_155], %185 {strides = array<i32>} : memref<64x128xf32, #tpu.memory_space<vmem>>, vector<1x128xf32>,
      %c30 = arith.constant 30 : index
      %187 = memref.load %arg1[%c30] : memref<64xi32, #tpu.memory_space<smem>>
      %c0_i32_156 = arith.constant 0 : i32
      %c39_i32_157 = arith.constant 39 : i32
      %188 = arith.maxsi %c0_i32_156, %187 : i32
      %189 = arith.minsi %c39_i32_157, %188 : i32
      %190 = arith.index_cast %189 : i32 to index
      %c0_158 = arith.constant 0 : index
      %191 = vector.load %arg2[%190, %c0_158] : memref<40x128xf32, #tpu.memory_space<vmem>>, vector<1x128xf32>
      %c30_159 = arith.constant 30 : index
      %c0_160 = arith.constant 0 : index
      %192 = vector.load %arg8[%c30_159, %c0_160] : memref<64x128xf32, #tpu.memory_space<vmem>>, vector<1x128xf32>
      tpu.vector_store %arg8[%c30_159, %c0_160], %191 {strides = array<i32>} : memref<64x128xf32, #tpu.memory_space<vmem>>, vector<1x128xf32>,
      %c31 = arith.constant 31 : index
      %193 = memref.load %arg1[%c31] : memref<64xi32, #tpu.memory_space<smem>>
      %c0_i32_161 = arith.constant 0 : i32
      %c39_i32_162 = arith.constant 39 : i32
      %194 = arith.maxsi %c0_i32_161, %193 : i32
      %195 = arith.minsi %c39_i32_162, %194 : i32
      %196 = arith.index_cast %195 : i32 to index
      %c0_163 = arith.constant 0 : index
      %197 = vector.load %arg2[%196, %c0_163] : memref<40x128xf32, #tpu.memory_space<vmem>>, vector<1x128xf32>
      %c31_164 = arith.constant 31 : index
      %c0_165 = arith.constant 0 : index
      %198 = vector.load %arg8[%c31_164, %c0_165] : memref<64x128xf32, #tpu.memory_space<vmem>>, vector<1x128xf32>
      tpu.vector_store %arg8[%c31_164, %c0_165], %197 {strides = array<i32>} : memref<64x128xf32, #tpu.memory_space<vmem>>, vector<1x128xf32>,
      %c32 = arith.constant 32 : index
      %199 = memref.load %arg1[%c32] : memref<64xi32, #tpu.memory_space<smem>>
      %c0_i32_166 = arith.constant 0 : i32
      %c39_i32_167 = arith.constant 39 : i32
      %200 = arith.maxsi %c0_i32_166, %199 : i32
      %201 = arith.minsi %c39_i32_167, %200 : i32
      %202 = arith.index_cast %201 : i32 to index
      %c0_168 = arith.constant 0 : index
      %203 = vector.load %arg2[%202, %c0_168] : memref<40x128xf32, #tpu.memory_space<vmem>>, vector<1x128xf32>
      %c32_169 = arith.constant 32 : index
      %c0_170 = arith.constant 0 : index
      %204 = vector.load %arg8[%c32_169, %c0_170] : memref<64x128xf32, #tpu.memory_space<vmem>>, vector<1x128xf32>
      tpu.vector_store %arg8[%c32_169, %c0_170], %203 {strides = array<i32>} : memref<64x128xf32, #tpu.memory_space<vmem>>, vector<1x128xf32>,
      %c33 = arith.constant 33 : index
      %205 = memref.load %arg1[%c33] : memref<64xi32, #tpu.memory_space<smem>>
      %c0_i32_171 = arith.constant 0 : i32
      %c39_i32_172 = arith.constant 39 : i32
      %206 = arith.maxsi %c0_i32_171, %205 : i32
      %207 = arith.minsi %c39_i32_172, %206 : i32
      %208 = arith.index_cast %207 : i32 to index
      %c0_173 = arith.constant 0 : index
      %209 = vector.load %arg2[%208, %c0_173] : memref<40x128xf32, #tpu.memory_space<vmem>>, vector<1x128xf32>
      %c33_174 = arith.constant 33 : index
      %c0_175 = arith.constant 0 : index
      %210 = vector.load %arg8[%c33_174, %c0_175] : memref<64x128xf32, #tpu.memory_space<vmem>>, vector<1x128xf32>
      tpu.vector_store %arg8[%c33_174, %c0_175], %209 {strides = array<i32>} : memref<64x128xf32, #tpu.memory_space<vmem>>, vector<1x128xf32>,
      %c34 = arith.constant 34 : index
      %211 = memref.load %arg1[%c34] : memref<64xi32, #tpu.memory_space<smem>>
      %c0_i32_176 = arith.constant 0 : i32
      %c39_i32_177 = arith.constant 39 : i32
      %212 = arith.maxsi %c0_i32_176, %211 : i32
      %213 = arith.minsi %c39_i32_177, %212 : i32
      %214 = arith.index_cast %213 : i32 to index
      %c0_178 = arith.constant 0 : index
      %215 = vector.load %arg2[%214, %c0_178] : memref<40x128xf32, #tpu.memory_space<vmem>>, vector<1x128xf32>
      %c34_179 = arith.constant 34 : index
      %c0_180 = arith.constant 0 : index
      %216 = vector.load %arg8[%c34_179, %c0_180] : memref<64x128xf32, #tpu.memory_space<vmem>>, vector<1x128xf32>
      tpu.vector_store %arg8[%c34_179, %c0_180], %215 {strides = array<i32>} : memref<64x128xf32, #tpu.memory_space<vmem>>, vector<1x128xf32>,
      %c35 = arith.constant 35 : index
      %217 = memref.load %arg1[%c35] : memref<64xi32, #tpu.memory_space<smem>>
      %c0_i32_181 = arith.constant 0 : i32
      %c39_i32_182 = arith.constant 39 : i32
      %218 = arith.maxsi %c0_i32_181, %217 : i32
      %219 = arith.minsi %c39_i32_182, %218 : i32
      %220 = arith.index_cast %219 : i32 to index
      %c0_183 = arith.constant 0 : index
      %221 = vector.load %arg2[%220, %c0_183] : memref<40x128xf32, #tpu.memory_space<vmem>>, vector<1x128xf32>
      %c35_184 = arith.constant 35 : index
      %c0_185 = arith.constant 0 : index
      %222 = vector.load %arg8[%c35_184, %c0_185] : memref<64x128xf32, #tpu.memory_space<vmem>>, vector<1x128xf32>
      tpu.vector_store %arg8[%c35_184, %c0_185], %221 {strides = array<i32>} : memref<64x128xf32, #tpu.memory_space<vmem>>, vector<1x128xf32>,
      %c36 = arith.constant 36 : index
      %223 = memref.load %arg1[%c36] : memref<64xi32, #tpu.memory_space<smem>>
      %c0_i32_186 = arith.constant 0 : i32
      %c39_i32_187 = arith.constant 39 : i32
      %224 = arith.maxsi %c0_i32_186, %223 : i32
      %225 = arith.minsi %c39_i32_187, %224 : i32
      %226 = arith.index_cast %225 : i32 to index
      %c0_188 = arith.constant 0 : index
      %227 = vector.load %arg2[%226, %c0_188] : memref<40x128xf32, #tpu.memory_space<vmem>>, vector<1x128xf32>
      %c36_189 = arith.constant 36 : index
      %c0_190 = arith.constant 0 : index
      %228 = vector.load %arg8[%c36_189, %c0_190] : memref<64x128xf32, #tpu.memory_space<vmem>>, vector<1x128xf32>
      tpu.vector_store %arg8[%c36_189, %c0_190], %227 {strides = array<i32>} : memref<64x128xf32, #tpu.memory_space<vmem>>, vector<1x128xf32>,
      %c37 = arith.constant 37 : index
      %229 = memref.load %arg1[%c37] : memref<64xi32, #tpu.memory_space<smem>>
      %c0_i32_191 = arith.constant 0 : i32
      %c39_i32_192 = arith.constant 39 : i32
      %230 = arith.maxsi %c0_i32_191, %229 : i32
      %231 = arith.minsi %c39_i32_192, %230 : i32
      %232 = arith.index_cast %231 : i32 to index
      %c0_193 = arith.constant 0 : index
      %233 = vector.load %arg2[%232, %c0_193] : memref<40x128xf32, #tpu.memory_space<vmem>>, vector<1x128xf32>
      %c37_194 = arith.constant 37 : index
      %c0_195 = arith.constant 0 : index
      %234 = vector.load %arg8[%c37_194, %c0_195] : memref<64x128xf32, #tpu.memory_space<vmem>>, vector<1x128xf32>
      tpu.vector_store %arg8[%c37_194, %c0_195], %233 {strides = array<i32>} : memref<64x128xf32, #tpu.memory_space<vmem>>, vector<1x128xf32>,
      %c38 = arith.constant 38 : index
      %235 = memref.load %arg1[%c38] : memref<64xi32, #tpu.memory_space<smem>>
      %c0_i32_196 = arith.constant 0 : i32
      %c39_i32_197 = arith.constant 39 : i32
      %236 = arith.maxsi %c0_i32_196, %235 : i32
      %237 = arith.minsi %c39_i32_197, %236 : i32
      %238 = arith.index_cast %237 : i32 to index
      %c0_198 = arith.constant 0 : index
      %239 = vector.load %arg2[%238, %c0_198] : memref<40x128xf32, #tpu.memory_space<vmem>>, vector<1x128xf32>
      %c38_199 = arith.constant 38 : index
      %c0_200 = arith.constant 0 : index
      %240 = vector.load %arg8[%c38_199, %c0_200] : memref<64x128xf32, #tpu.memory_space<vmem>>, vector<1x128xf32>
      tpu.vector_store %arg8[%c38_199, %c0_200], %239 {strides = array<i32>} : memref<64x128xf32, #tpu.memory_space<vmem>>, vector<1x128xf32>,
      %c39 = arith.constant 39 : index
      %241 = memref.load %arg1[%c39] : memref<64xi32, #tpu.memory_space<smem>>
      %c0_i32_201 = arith.constant 0 : i32
      %c39_i32_202 = arith.constant 39 : i32
      %242 = arith.maxsi %c0_i32_201, %241 : i32
      %243 = arith.minsi %c39_i32_202, %242 : i32
      %244 = arith.index_cast %243 : i32 to index
      %c0_203 = arith.constant 0 : index
      %245 = vector.load %arg2[%244, %c0_203] : memref<40x128xf32, #tpu.memory_space<vmem>>, vector<1x128xf32>
      %c39_204 = arith.constant 39 : index
      %c0_205 = arith.constant 0 : index
      %246 = vector.load %arg8[%c39_204, %c0_205] : memref<64x128xf32, #tpu.memory_space<vmem>>, vector<1x128xf32>
      tpu.vector_store %arg8[%c39_204, %c0_205], %245 {strides = array<i32>} : memref<64x128xf32, #tpu.memory_space<vmem>>, vector<1x128xf32>,
      %c40 = arith.constant 40 : index
      %247 = memref.load %arg1[%c40] : memref<64xi32, #tpu.memory_space<smem>>
      %c0_i32_206 = arith.constant 0 : i32
      %c39_i32_207 = arith.constant 39 : i32
      %248 = arith.maxsi %c0_i32_206, %247 : i32
      %249 = arith.minsi %c39_i32_207, %248 : i32
      %250 = arith.index_cast %249 : i32 to index
      %c0_208 = arith.constant 0 : index
      %251 = vector.load %arg2[%250, %c0_208] : memref<40x128xf32, #tpu.memory_space<vmem>>, vector<1x128xf32>
      %c40_209 = arith.constant 40 : index
      %c0_210 = arith.constant 0 : index
      %252 = vector.load %arg8[%c40_209, %c0_210] : memref<64x128xf32, #tpu.memory_space<vmem>>, vector<1x128xf32>
      tpu.vector_store %arg8[%c40_209, %c0_210], %251 {strides = array<i32>} : memref<64x128xf32, #tpu.memory_space<vmem>>, vector<1x128xf32>,
      %c41 = arith.constant 41 : index
      %253 = memref.load %arg1[%c41] : memref<64xi32, #tpu.memory_space<smem>>
      %c0_i32_211 = arith.constant 0 : i32
      %c39_i32_212 = arith.constant 39 : i32
      %254 = arith.maxsi %c0_i32_211, %253 : i32
      %255 = arith.minsi %c39_i32_212, %254 : i32
      %256 = arith.index_cast %255 : i32 to index
      %c0_213 = arith.constant 0 : index
      %257 = vector.load %arg2[%256, %c0_213] : memref<40x128xf32, #tpu.memory_space<vmem>>, vector<1x128xf32>
      %c41_214 = arith.constant 41 : index
      %c0_215 = arith.constant 0 : index
      %258 = vector.load %arg8[%c41_214, %c0_215] : memref<64x128xf32, #tpu.memory_space<vmem>>, vector<1x128xf32>
      tpu.vector_store %arg8[%c41_214, %c0_215], %257 {strides = array<i32>} : memref<64x128xf32, #tpu.memory_space<vmem>>, vector<1x128xf32>,
      %c42 = arith.constant 42 : index
      %259 = memref.load %arg1[%c42] : memref<64xi32, #tpu.memory_space<smem>>
      %c0_i32_216 = arith.constant 0 : i32
      %c39_i32_217 = arith.constant 39 : i32
      %260 = arith.maxsi %c0_i32_216, %259 : i32
      %261 = arith.minsi %c39_i32_217, %260 : i32
      %262 = arith.index_cast %261 : i32 to index
      %c0_218 = arith.constant 0 : index
      %263 = vector.load %arg2[%262, %c0_218] : memref<40x128xf32, #tpu.memory_space<vmem>>, vector<1x128xf32>
      %c42_219 = arith.constant 42 : index
      %c0_220 = arith.constant 0 : index
      %264 = vector.load %arg8[%c42_219, %c0_220] : memref<64x128xf32, #tpu.memory_space<vmem>>, vector<1x128xf32>
      tpu.vector_store %arg8[%c42_219, %c0_220], %263 {strides = array<i32>} : memref<64x128xf32, #tpu.memory_space<vmem>>, vector<1x128xf32>,
      %c43 = arith.constant 43 : index
      %265 = memref.load %arg1[%c43] : memref<64xi32, #tpu.memory_space<smem>>
      %c0_i32_221 = arith.constant 0 : i32
      %c39_i32_222 = arith.constant 39 : i32
      %266 = arith.maxsi %c0_i32_221, %265 : i32
      %267 = arith.minsi %c39_i32_222, %266 : i32
      %268 = arith.index_cast %267 : i32 to index
      %c0_223 = arith.constant 0 : index
      %269 = vector.load %arg2[%268, %c0_223] : memref<40x128xf32, #tpu.memory_space<vmem>>, vector<1x128xf32>
      %c43_224 = arith.constant 43 : index
      %c0_225 = arith.constant 0 : index
      %270 = vector.load %arg8[%c43_224, %c0_225] : memref<64x128xf32, #tpu.memory_space<vmem>>, vector<1x128xf32>
      tpu.vector_store %arg8[%c43_224, %c0_225], %269 {strides = array<i32>} : memref<64x128xf32, #tpu.memory_space<vmem>>, vector<1x128xf32>,
      %c44 = arith.constant 44 : index
      %271 = memref.load %arg1[%c44] : memref<64xi32, #tpu.memory_space<smem>>
      %c0_i32_226 = arith.constant 0 : i32
      %c39_i32_227 = arith.constant 39 : i32
      %272 = arith.maxsi %c0_i32_226, %271 : i32
      %273 = arith.minsi %c39_i32_227, %272 : i32
      %274 = arith.index_cast %273 : i32 to index
      %c0_228 = arith.constant 0 : index
      %275 = vector.load %arg2[%274, %c0_228] : memref<40x128xf32, #tpu.memory_space<vmem>>, vector<1x128xf32>
      %c44_229 = arith.constant 44 : index
      %c0_230 = arith.constant 0 : index
      %276 = vector.load %arg8[%c44_229, %c0_230] : memref<64x128xf32, #tpu.memory_space<vmem>>, vector<1x128xf32>
      tpu.vector_store %arg8[%c44_229, %c0_230], %275 {strides = array<i32>} : memref<64x128xf32, #tpu.memory_space<vmem>>, vector<1x128xf32>,
      %c45 = arith.constant 45 : index
      %277 = memref.load %arg1[%c45] : memref<64xi32, #tpu.memory_space<smem>>
      %c0_i32_231 = arith.constant 0 : i32
      %c39_i32_232 = arith.constant 39 : i32
      %278 = arith.maxsi %c0_i32_231, %277 : i32
      %279 = arith.minsi %c39_i32_232, %278 : i32
      %280 = arith.index_cast %279 : i32 to index
      %c0_233 = arith.constant 0 : index
      %281 = vector.load %arg2[%280, %c0_233] : memref<40x128xf32, #tpu.memory_space<vmem>>, vector<1x128xf32>
      %c45_234 = arith.constant 45 : index
      %c0_235 = arith.constant 0 : index
      %282 = vector.load %arg8[%c45_234, %c0_235] : memref<64x128xf32, #tpu.memory_space<vmem>>, vector<1x128xf32>
      tpu.vector_store %arg8[%c45_234, %c0_235], %281 {strides = array<i32>} : memref<64x128xf32, #tpu.memory_space<vmem>>, vector<1x128xf32>,
      %c46 = arith.constant 46 : index
      %283 = memref.load %arg1[%c46] : memref<64xi32, #tpu.memory_space<smem>>
      %c0_i32_236 = arith.constant 0 : i32
      %c39_i32_237 = arith.constant 39 : i32
      %284 = arith.maxsi %c0_i32_236, %283 : i32
      %285 = arith.minsi %c39_i32_237, %284 : i32
      %286 = arith.index_cast %285 : i32 to index
      %c0_238 = arith.constant 0 : index
      %287 = vector.load %arg2[%286, %c0_238] : memref<40x128xf32, #tpu.memory_space<vmem>>, vector<1x128xf32>
      %c46_239 = arith.constant 46 : index
      %c0_240 = arith.constant 0 : index
      %288 = vector.load %arg8[%c46_239, %c0_240] : memref<64x128xf32, #tpu.memory_space<vmem>>, vector<1x128xf32>
      tpu.vector_store %arg8[%c46_239, %c0_240], %287 {strides = array<i32>} : memref<64x128xf32, #tpu.memory_space<vmem>>, vector<1x128xf32>,
      %c47 = arith.constant 47 : index
      %289 = memref.load %arg1[%c47] : memref<64xi32, #tpu.memory_space<smem>>
      %c0_i32_241 = arith.constant 0 : i32
      %c39_i32_242 = arith.constant 39 : i32
      %290 = arith.maxsi %c0_i32_241, %289 : i32
      %291 = arith.minsi %c39_i32_242, %290 : i32
      %292 = arith.index_cast %291 : i32 to index
      %c0_243 = arith.constant 0 : index
      %293 = vector.load %arg2[%292, %c0_243] : memref<40x128xf32, #tpu.memory_space<vmem>>, vector<1x128xf32>
      %c47_244 = arith.constant 47 : index
      %c0_245 = arith.constant 0 : index
      %294 = vector.load %arg8[%c47_244, %c0_245] : memref<64x128xf32, #tpu.memory_space<vmem>>, vector<1x128xf32>
      tpu.vector_store %arg8[%c47_244, %c0_245], %293 {strides = array<i32>} : memref<64x128xf32, #tpu.memory_space<vmem>>, vector<1x128xf32>,
      %c48 = arith.constant 48 : index
      %295 = memref.load %arg1[%c48] : memref<64xi32, #tpu.memory_space<smem>>
      %c0_i32_246 = arith.constant 0 : i32
      %c39_i32_247 = arith.constant 39 : i32
      %296 = arith.maxsi %c0_i32_246, %295 : i32
      %297 = arith.minsi %c39_i32_247, %296 : i32
      %298 = arith.index_cast %297 : i32 to index
      %c0_248 = arith.constant 0 : index
      %299 = vector.load %arg2[%298, %c0_248] : memref<40x128xf32, #tpu.memory_space<vmem>>, vector<1x128xf32>
      %c48_249 = arith.constant 48 : index
      %c0_250 = arith.constant 0 : index
      %300 = vector.load %arg8[%c48_249, %c0_250] : memref<64x128xf32, #tpu.memory_space<vmem>>, vector<1x128xf32>
      tpu.vector_store %arg8[%c48_249, %c0_250], %299 {strides = array<i32>} : memref<64x128xf32, #tpu.memory_space<vmem>>, vector<1x128xf32>,
      %c49 = arith.constant 49 : index
      %301 = memref.load %arg1[%c49] : memref<64xi32, #tpu.memory_space<smem>>
      %c0_i32_251 = arith.constant 0 : i32
      %c39_i32_252 = arith.constant 39 : i32
      %302 = arith.maxsi %c0_i32_251, %301 : i32
      %303 = arith.minsi %c39_i32_252, %302 : i32
      %304 = arith.index_cast %303 : i32 to index
      %c0_253 = arith.constant 0 : index
      %305 = vector.load %arg2[%304, %c0_253] : memref<40x128xf32, #tpu.memory_space<vmem>>, vector<1x128xf32>
      %c49_254 = arith.constant 49 : index
      %c0_255 = arith.constant 0 : index
      %306 = vector.load %arg8[%c49_254, %c0_255] : memref<64x128xf32, #tpu.memory_space<vmem>>, vector<1x128xf32>
      tpu.vector_store %arg8[%c49_254, %c0_255], %305 {strides = array<i32>} : memref<64x128xf32, #tpu.memory_space<vmem>>, vector<1x128xf32>,
      %c50 = arith.constant 50 : index
      %307 = memref.load %arg1[%c50] : memref<64xi32, #tpu.memory_space<smem>>
      %c0_i32_256 = arith.constant 0 : i32
      %c39_i32_257 = arith.constant 39 : i32
      %308 = arith.maxsi %c0_i32_256, %307 : i32
      %309 = arith.minsi %c39_i32_257, %308 : i32
      %310 = arith.index_cast %309 : i32 to index
      %c0_258 = arith.constant 0 : index
      %311 = vector.load %arg2[%310, %c0_258] : memref<40x128xf32, #tpu.memory_space<vmem>>, vector<1x128xf32>
      %c50_259 = arith.constant 50 : index
      %c0_260 = arith.constant 0 : index
      %312 = vector.load %arg8[%c50_259, %c0_260] : memref<64x128xf32, #tpu.memory_space<vmem>>, vector<1x128xf32>
      tpu.vector_store %arg8[%c50_259, %c0_260], %311 {strides = array<i32>} : memref<64x128xf32, #tpu.memory_space<vmem>>, vector<1x128xf32>,
      %c51 = arith.constant 51 : index
      %313 = memref.load %arg1[%c51] : memref<64xi32, #tpu.memory_space<smem>>
      %c0_i32_261 = arith.constant 0 : i32
      %c39_i32_262 = arith.constant 39 : i32
      %314 = arith.maxsi %c0_i32_261, %313 : i32
      %315 = arith.minsi %c39_i32_262, %314 : i32
      %316 = arith.index_cast %315 : i32 to index
      %c0_263 = arith.constant 0 : index
      %317 = vector.load %arg2[%316, %c0_263] : memref<40x128xf32, #tpu.memory_space<vmem>>, vector<1x128xf32>
      %c51_264 = arith.constant 51 : index
      %c0_265 = arith.constant 0 : index
      %318 = vector.load %arg8[%c51_264, %c0_265] : memref<64x128xf32, #tpu.memory_space<vmem>>, vector<1x128xf32>
      tpu.vector_store %arg8[%c51_264, %c0_265], %317 {strides = array<i32>} : memref<64x128xf32, #tpu.memory_space<vmem>>, vector<1x128xf32>,
      %c52 = arith.constant 52 : index
      %319 = memref.load %arg1[%c52] : memref<64xi32, #tpu.memory_space<smem>>
      %c0_i32_266 = arith.constant 0 : i32
      %c39_i32_267 = arith.constant 39 : i32
      %320 = arith.maxsi %c0_i32_266, %319 : i32
      %321 = arith.minsi %c39_i32_267, %320 : i32
      %322 = arith.index_cast %321 : i32 to index
      %c0_268 = arith.constant 0 : index
      %323 = vector.load %arg2[%322, %c0_268] : memref<40x128xf32, #tpu.memory_space<vmem>>, vector<1x128xf32>
      %c52_269 = arith.constant 52 : index
      %c0_270 = arith.constant 0 : index
      %324 = vector.load %arg8[%c52_269, %c0_270] : memref<64x128xf32, #tpu.memory_space<vmem>>, vector<1x128xf32>
      tpu.vector_store %arg8[%c52_269, %c0_270], %323 {strides = array<i32>} : memref<64x128xf32, #tpu.memory_space<vmem>>, vector<1x128xf32>,
      %c53 = arith.constant 53 : index
      %325 = memref.load %arg1[%c53] : memref<64xi32, #tpu.memory_space<smem>>
      %c0_i32_271 = arith.constant 0 : i32
      %c39_i32_272 = arith.constant 39 : i32
      %326 = arith.maxsi %c0_i32_271, %325 : i32
      %327 = arith.minsi %c39_i32_272, %326 : i32
      %328 = arith.index_cast %327 : i32 to index
      %c0_273 = arith.constant 0 : index
      %329 = vector.load %arg2[%328, %c0_273] : memref<40x128xf32, #tpu.memory_space<vmem>>, vector<1x128xf32>
      %c53_274 = arith.constant 53 : index
      %c0_275 = arith.constant 0 : index
      %330 = vector.load %arg8[%c53_274, %c0_275] : memref<64x128xf32, #tpu.memory_space<vmem>>, vector<1x128xf32>
      tpu.vector_store %arg8[%c53_274, %c0_275], %329 {strides = array<i32>} : memref<64x128xf32, #tpu.memory_space<vmem>>, vector<1x128xf32>,
      %c54 = arith.constant 54 : index
      %331 = memref.load %arg1[%c54] : memref<64xi32, #tpu.memory_space<smem>>
      %c0_i32_276 = arith.constant 0 : i32
      %c39_i32_277 = arith.constant 39 : i32
      %332 = arith.maxsi %c0_i32_276, %331 : i32
      %333 = arith.minsi %c39_i32_277, %332 : i32
      %334 = arith.index_cast %333 : i32 to index
      %c0_278 = arith.constant 0 : index
      %335 = vector.load %arg2[%334, %c0_278] : memref<40x128xf32, #tpu.memory_space<vmem>>, vector<1x128xf32>
      %c54_279 = arith.constant 54 : index
      %c0_280 = arith.constant 0 : index
      %336 = vector.load %arg8[%c54_279, %c0_280] : memref<64x128xf32, #tpu.memory_space<vmem>>, vector<1x128xf32>
      tpu.vector_store %arg8[%c54_279, %c0_280], %335 {strides = array<i32>} : memref<64x128xf32, #tpu.memory_space<vmem>>, vector<1x128xf32>,
      %c55 = arith.constant 55 : index
      %337 = memref.load %arg1[%c55] : memref<64xi32, #tpu.memory_space<smem>>
      %c0_i32_281 = arith.constant 0 : i32
      %c39_i32_282 = arith.constant 39 : i32
      %338 = arith.maxsi %c0_i32_281, %337 : i32
      %339 = arith.minsi %c39_i32_282, %338 : i32
      %340 = arith.index_cast %339 : i32 to index
      %c0_283 = arith.constant 0 : index
      %341 = vector.load %arg2[%340, %c0_283] : memref<40x128xf32, #tpu.memory_space<vmem>>, vector<1x128xf32>
      %c55_284 = arith.constant 55 : index
      %c0_285 = arith.constant 0 : index
      %342 = vector.load %arg8[%c55_284, %c0_285] : memref<64x128xf32, #tpu.memory_space<vmem>>, vector<1x128xf32>
      tpu.vector_store %arg8[%c55_284, %c0_285], %341 {strides = array<i32>} : memref<64x128xf32, #tpu.memory_space<vmem>>, vector<1x128xf32>,
      %c56 = arith.constant 56 : index
      %343 = memref.load %arg1[%c56] : memref<64xi32, #tpu.memory_space<smem>>
      %c0_i32_286 = arith.constant 0 : i32
      %c39_i32_287 = arith.constant 39 : i32
      %344 = arith.maxsi %c0_i32_286, %343 : i32
      %345 = arith.minsi %c39_i32_287, %344 : i32
      %346 = arith.index_cast %345 : i32 to index
      %c0_288 = arith.constant 0 : index
      %347 = vector.load %arg2[%346, %c0_288] : memref<40x128xf32, #tpu.memory_space<vmem>>, vector<1x128xf32>
      %c56_289 = arith.constant 56 : index
      %c0_290 = arith.constant 0 : index
      %348 = vector.load %arg8[%c56_289, %c0_290] : memref<64x128xf32, #tpu.memory_space<vmem>>, vector<1x128xf32>
      tpu.vector_store %arg8[%c56_289, %c0_290], %347 {strides = array<i32>} : memref<64x128xf32, #tpu.memory_space<vmem>>, vector<1x128xf32>,
      %c57 = arith.constant 57 : index
      %349 = memref.load %arg1[%c57] : memref<64xi32, #tpu.memory_space<smem>>
      %c0_i32_291 = arith.constant 0 : i32
      %c39_i32_292 = arith.constant 39 : i32
      %350 = arith.maxsi %c0_i32_291, %349 : i32
      %351 = arith.minsi %c39_i32_292, %350 : i32
      %352 = arith.index_cast %351 : i32 to index
      %c0_293 = arith.constant 0 : index
      %353 = vector.load %arg2[%352, %c0_293] : memref<40x128xf32, #tpu.memory_space<vmem>>, vector<1x128xf32>
      %c57_294 = arith.constant 57 : index
      %c0_295 = arith.constant 0 : index
      %354 = vector.load %arg8[%c57_294, %c0_295] : memref<64x128xf32, #tpu.memory_space<vmem>>, vector<1x128xf32>
      tpu.vector_store %arg8[%c57_294, %c0_295], %353 {strides = array<i32>} : memref<64x128xf32, #tpu.memory_space<vmem>>, vector<1x128xf32>,
      %c58 = arith.constant 58 : index
      %355 = memref.load %arg1[%c58] : memref<64xi32, #tpu.memory_space<smem>>
      %c0_i32_296 = arith.constant 0 : i32
      %c39_i32_297 = arith.constant 39 : i32
      %356 = arith.maxsi %c0_i32_296, %355 : i32
      %357 = arith.minsi %c39_i32_297, %356 : i32
      %358 = arith.index_cast %357 : i32 to index
      %c0_298 = arith.constant 0 : index
      %359 = vector.load %arg2[%358, %c0_298] : memref<40x128xf32, #tpu.memory_space<vmem>>, vector<1x128xf32>
      %c58_299 = arith.constant 58 : index
      %c0_300 = arith.constant 0 : index
      %360 = vector.load %arg8[%c58_299, %c0_300] : memref<64x128xf32, #tpu.memory_space<vmem>>, vector<1x128xf32>
      tpu.vector_store %arg8[%c58_299, %c0_300], %359 {strides = array<i32>} : memref<64x128xf32, #tpu.memory_space<vmem>>, vector<1x128xf32>,
      %c59 = arith.constant 59 : index
      %361 = memref.load %arg1[%c59] : memref<64xi32, #tpu.memory_space<smem>>
      %c0_i32_301 = arith.constant 0 : i32
      %c39_i32_302 = arith.constant 39 : i32
      %362 = arith.maxsi %c0_i32_301, %361 : i32
      %363 = arith.minsi %c39_i32_302, %362 : i32
      %364 = arith.index_cast %363 : i32 to index
      %c0_303 = arith.constant 0 : index
      %365 = vector.load %arg2[%364, %c0_303] : memref<40x128xf32, #tpu.memory_space<vmem>>, vector<1x128xf32>
      %c59_304 = arith.constant 59 : index
      %c0_305 = arith.constant 0 : index
      %366 = vector.load %arg8[%c59_304, %c0_305] : memref<64x128xf32, #tpu.memory_space<vmem>>, vector<1x128xf32>
      tpu.vector_store %arg8[%c59_304, %c0_305], %365 {strides = array<i32>} : memref<64x128xf32, #tpu.memory_space<vmem>>, vector<1x128xf32>,
      %c60 = arith.constant 60 : index
      %367 = memref.load %arg1[%c60] : memref<64xi32, #tpu.memory_space<smem>>
      %c0_i32_306 = arith.constant 0 : i32
      %c39_i32_307 = arith.constant 39 : i32
      %368 = arith.maxsi %c0_i32_306, %367 : i32
      %369 = arith.minsi %c39_i32_307, %368 : i32
      %370 = arith.index_cast %369 : i32 to index
      %c0_308 = arith.constant 0 : index
      %371 = vector.load %arg2[%370, %c0_308] : memref<40x128xf32, #tpu.memory_space<vmem>>, vector<1x128xf32>
      %c60_309 = arith.constant 60 : index
      %c0_310 = arith.constant 0 : index
      %372 = vector.load %arg8[%c60_309, %c0_310] : memref<64x128xf32, #tpu.memory_space<vmem>>, vector<1x128xf32>
      tpu.vector_store %arg8[%c60_309, %c0_310], %371 {strides = array<i32>} : memref<64x128xf32, #tpu.memory_space<vmem>>, vector<1x128xf32>,
      %c61 = arith.constant 61 : index
      %373 = memref.load %arg1[%c61] : memref<64xi32, #tpu.memory_space<smem>>
      %c0_i32_311 = arith.constant 0 : i32
      %c39_i32_312 = arith.constant 39 : i32
      %374 = arith.maxsi %c0_i32_311, %373 : i32
      %375 = arith.minsi %c39_i32_312, %374 : i32
      %376 = arith.index_cast %375 : i32 to index
      %c0_313 = arith.constant 0 : index
      %377 = vector.load %arg2[%376, %c0_313] : memref<40x128xf32, #tpu.memory_space<vmem>>, vector<1x128xf32>
      %c61_314 = arith.constant 61 : index
      %c0_315 = arith.constant 0 : index
      %378 = vector.load %arg8[%c61_314, %c0_315] : memref<64x128xf32, #tpu.memory_space<vmem>>, vector<1x128xf32>
      tpu.vector_store %arg8[%c61_314, %c0_315], %377 {strides = array<i32>} : memref<64x128xf32, #tpu.memory_space<vmem>>, vector<1x128xf32>,
      %c62 = arith.constant 62 : index
      %379 = memref.load %arg1[%c62] : memref<64xi32, #tpu.memory_space<smem>>
      %c0_i32_316 = arith.constant 0 : i32
      %c39_i32_317 = arith.constant 39 : i32
      %380 = arith.maxsi %c0_i32_316, %379 : i32
      %381 = arith.minsi %c39_i32_317, %380 : i32
      %382 = arith.index_cast %381 : i32 to index
      %c0_318 = arith.constant 0 : index
      %383 = vector.load %arg2[%382, %c0_318] : memref<40x128xf32, #tpu.memory_space<vmem>>, vector<1x128xf32>
      %c62_319 = arith.constant 62 : index
      %c0_320 = arith.constant 0 : index
      %384 = vector.load %arg8[%c62_319, %c0_320] : memref<64x128xf32, #tpu.memory_space<vmem>>, vector<1x128xf32>
      tpu.vector_store %arg8[%c62_319, %c0_320], %383 {strides = array<i32>} : memref<64x128xf32, #tpu.memory_space<vmem>>, vector<1x128xf32>,
      %c63 = arith.constant 63 : index
      %385 = memref.load %arg1[%c63] : memref<64xi32, #tpu.memory_space<smem>>
      %c0_i32_321 = arith.constant 0 : i32
      %c39_i32_322 = arith.constant 39 : i32
      %386 = arith.maxsi %c0_i32_321, %385 : i32
      %387 = arith.minsi %c39_i32_322, %386 : i32
      %388 = arith.index_cast %387 : i32 to index
      %c0_323 = arith.constant 0 : index
      %389 = vector.load %arg2[%388, %c0_323] : memref<40x128xf32, #tpu.memory_space<vmem>>, vector<1x128xf32>
      %c63_324 = arith.constant 63 : index
      %c0_325 = arith.constant 0 : index
      %390 = vector.load %arg8[%c63_324, %c0_325] : memref<64x128xf32, #tpu.memory_space<vmem>>, vector<1x128xf32>
      tpu.vector_store %arg8[%c63_324, %c0_325], %389 {strides = array<i32>} : memref<64x128xf32, #tpu.memory_space<vmem>>, vector<1x128xf32>,
      %c0_326 = arith.constant 0 : index
      %c0_327 = arith.constant 0 : index
      %391 = vector.load %arg8[%c0_326, %c0_327] : memref<64x128xf32, #tpu.memory_space<vmem>>, vector<64x128xf32>
      %c0_328 = arith.constant 0 : index
      %c0_329 = arith.constant 0 : index
      %c0_330 = arith.constant 0 : index
      %392 = vector.load %arg3[%c0_328, %c0_329, %c0_330] : memref<2x128x128xf32, #tpu.memory_space<vmem>>, vector<1x128x128xf32>
      %393 = vector.shape_cast %392 : vector<1x128x128xf32> to vector<128x128xf32>
      %cst_331 = arith.constant dense<0.000000e+00> : vector<64x128xf32>
      %394 = tpu.matmul %391, %393, %cst_331 {dimension_numbers = #tpu.dot_dimension_numbers<[1], [0], [0], [1], [0, 0, 1, 1], [], []>} : vector<64x128xf32>, vector<128x128xf32>, vector<64x128xf32> -> vector<64x128xf32>
      %c0_332 = arith.constant 0 : index
      %c0_333 = arith.constant 0 : index
      %c0_334 = arith.constant 0 : index
      %395 = vector.load %arg5[%c0_332, %c0_333, %c0_334] : memref<2x1x128xf32, #tpu.memory_space<vmem>>, vector<1x1x128xf32>
      %396 = vector.shape_cast %395 : vector<1x1x128xf32> to vector<1x128xf32>
      %397 = vector.broadcast %396 : vector<1x128xf32> to vector<64x128xf32>
      %398 = arith.addf %394, %397 : vector<64x128xf32>
      %c0_335 = arith.constant 0 : index
      %c0_336 = arith.constant 0 : index
      %399 = vector.load %arg9[%c0_335, %c0_336] : memref<64x128xf32, #tpu.memory_space<vmem>>, vector<64x128xf32>
      tpu.vector_store %arg9[%c0_335, %c0_336], %398 {strides = array<i32>} : memref<64x128xf32, #tpu.memory_space<vmem>>, vector<64x128xf32>,
      %c0_337 = arith.constant 0 : index
      %c0_338 = arith.constant 0 : index
      %c0_339 = arith.constant 0 : index
      %400 = vector.load %arg4[%c0_337, %c0_338, %c0_339] : memref<2x32x128xf32, #tpu.memory_space<vmem>>, vector<1x32x128xf32>
      %401 = vector.shape_cast %400 : vector<1x32x128xf32> to vector<32x128xf32>
      %cst_340 = arith.constant 0.000000e+00 : f32
      %402 = vector.broadcast %cst_340 : f32 to vector<8x32xf32>
      %cst_341 = arith.constant 0.000000e+00 : f32
      %403 = vector.broadcast %cst_341 : f32 to vector<8x32xf32>
      %c0_342 = arith.constant 0 : index
      %c0_343 = arith.constant 0 : index
      %404 = vector.load %arg9[%c0_342, %c0_343] : memref<64x128xf32, #tpu.memory_space<vmem>>, vector<8x128xf32>
      %cst_344 = arith.constant dense<0.000000e+00> : vector<8x128xf32>
      %405 = tpu.matmul %402, %401, %cst_344 {dimension_numbers = #tpu.dot_dimension_numbers<[1], [0], [0], [1], [0, 0, 1, 1], [], []>} : vector<8x32xf32>, vector<32x128xf32>, vector<8x128xf32> -> vector<8x128xf32>
      %406 = arith.addf %404, %405 : vector<8x128xf32>
      %407 = vector.extract_strided_slice %406 {offsets = [0, 0], sizes = [8, 32], strides = [1, 1]} : vector<8x128xf32> to vector<8x32xf32>
      %408 = arith.negf %407 : vector<8x32xf32>
      %409 = math.exp %408 : vector<8x32xf32>
      %cst_345 = arith.constant 1.000000e+00 : f32
      %410 = vector.broadcast %cst_345 : f32 to vector<8x32xf32>
      %411 = arith.addf %410, %409 : vector<8x32xf32>
      %412 = arith.divf %410, %411 : vector<8x32xf32>
      %413 = vector.extract_strided_slice %406 {offsets = [0, 32], sizes = [8, 32], strides = [1, 1]} : vector<8x128xf32> to vector<8x32xf32>
      %414 = arith.negf %413 : vector<8x32xf32>
      %415 = math.exp %414 : vector<8x32xf32>
      %cst_346 = arith.constant 1.000000e+00 : f32
      %416 = vector.broadcast %cst_346 : f32 to vector<8x32xf32>
      %417 = arith.addf %416, %415 : vector<8x32xf32>
      %418 = arith.divf %416, %417 : vector<8x32xf32>
      %419 = vector.extract_strided_slice %406 {offsets = [0, 64], sizes = [8, 32], strides = [1, 1]} : vector<8x128xf32> to vector<8x32xf32>
      %420 = math.tanh %419 : vector<8x32xf32>
      %421 = vector.extract_strided_slice %406 {offsets = [0, 96], sizes = [8, 32], strides = [1, 1]} : vector<8x128xf32> to vector<8x32xf32>
      %422 = arith.negf %421 : vector<8x32xf32>
      %423 = math.exp %422 : vector<8x32xf32>
      %cst_347 = arith.constant 1.000000e+00 : f32
      %424 = vector.broadcast %cst_347 : f32 to vector<8x32xf32>
      %425 = arith.addf %424, %423 : vector<8x32xf32>
      %426 = arith.divf %424, %425 : vector<8x32xf32>
      %427 = arith.mulf %418, %403 : vector<8x32xf32>
      %428 = arith.mulf %412, %420 : vector<8x32xf32>
      %429 = arith.addf %427, %428 : vector<8x32xf32>
      %430 = math.tanh %429 : vector<8x32xf32>
      %431 = arith.mulf %426, %430 : vector<8x32xf32>
      %c0_348 = arith.constant 0 : index
      %c0_349 = arith.constant 0 : index
      %432 = vector.load %arg8[%c0_348, %c0_349] : memref<64x128xf32, #tpu.memory_space<vmem>>, vector<8x32xf32>
      tpu.vector_store %arg8[%c0_348, %c0_349], %431 {strides = array<i32>} : memref<64x128xf32, #tpu.memory_space<vmem>>, vector<8x32xf32>,
      %c8_350 = arith.constant 8 : index
      %c0_351 = arith.constant 0 : index
      %433 = vector.load %arg9[%c8_350, %c0_351] : memref<64x128xf32, #tpu.memory_space<vmem>>, vector<8x128xf32>
      %cst_352 = arith.constant dense<0.000000e+00> : vector<8x128xf32>
      %434 = tpu.matmul %431, %401, %cst_352 {dimension_numbers = #tpu.dot_dimension_numbers<[1], [0], [0], [1], [0, 0, 1, 1], [], []>} : vector<8x32xf32>, vector<32x128xf32>, vector<8x128xf32> -> vector<8x128xf32>
      %435 = arith.addf %433, %434 : vector<8x128xf32>
      %436 = vector.extract_strided_slice %435 {offsets = [0, 0], sizes = [8, 32], strides = [1, 1]} : vector<8x128xf32> to vector<8x32xf32>
      %437 = arith.negf %436 : vector<8x32xf32>
      %438 = math.exp %437 : vector<8x32xf32>
      %cst_353 = arith.constant 1.000000e+00 : f32
      %439 = vector.broadcast %cst_353 : f32 to vector<8x32xf32>
      %440 = arith.addf %439, %438 : vector<8x32xf32>
      %441 = arith.divf %439, %440 : vector<8x32xf32>
      %442 = vector.extract_strided_slice %435 {offsets = [0, 32], sizes = [8, 32], strides = [1, 1]} : vector<8x128xf32> to vector<8x32xf32>
      %443 = arith.negf %442 : vector<8x32xf32>
      %444 = math.exp %443 : vector<8x32xf32>
      %cst_354 = arith.constant 1.000000e+00 : f32
      %445 = vector.broadcast %cst_354 : f32 to vector<8x32xf32>
      %446 = arith.addf %445, %444 : vector<8x32xf32>
      %447 = arith.divf %445, %446 : vector<8x32xf32>
      %448 = vector.extract_strided_slice %435 {offsets = [0, 64], sizes = [8, 32], strides = [1, 1]} : vector<8x128xf32> to vector<8x32xf32>
      %449 = math.tanh %448 : vector<8x32xf32>
      %450 = vector.extract_strided_slice %435 {offsets = [0, 96], sizes = [8, 32], strides = [1, 1]} : vector<8x128xf32> to vector<8x32xf32>
      %451 = arith.negf %450 : vector<8x32xf32>
      %452 = math.exp %451 : vector<8x32xf32>
      %cst_355 = arith.constant 1.000000e+00 : f32
      %453 = vector.broadcast %cst_355 : f32 to vector<8x32xf32>
      %454 = arith.addf %453, %452 : vector<8x32xf32>
      %455 = arith.divf %453, %454 : vector<8x32xf32>
      %456 = arith.mulf %447, %429 : vector<8x32xf32>
      %457 = arith.mulf %441, %449 : vector<8x32xf32>
      %458 = arith.addf %456, %457 : vector<8x32xf32>
      %459 = math.tanh %458 : vector<8x32xf32>
      %460 = arith.mulf %455, %459 : vector<8x32xf32>
      %c8_356 = arith.constant 8 : index
      %c0_357 = arith.constant 0 : index
      %461 = vector.load %arg8[%c8_356, %c0_357] : memref<64x128xf32, #tpu.memory_space<vmem>>, vector<8x32xf32>
      tpu.vector_store %arg8[%c8_356, %c0_357], %460 {strides = array<i32>} : memref<64x128xf32, #tpu.memory_space<vmem>>, vector<8x32xf32>,
      %c16_358 = arith.constant 16 : index
      %c0_359 = arith.constant 0 : index
      %462 = vector.load %arg9[%c16_358, %c0_359] : memref<64x128xf32, #tpu.memory_space<vmem>>, vector<8x128xf32>
      %cst_360 = arith.constant dense<0.000000e+00> : vector<8x128xf32>
      %463 = tpu.matmul %460, %401, %cst_360 {dimension_numbers = #tpu.dot_dimension_numbers<[1], [0], [0], [1], [0, 0, 1, 1], [], []>} : vector<8x32xf32>, vector<32x128xf32>, vector<8x128xf32> -> vector<8x128xf32>
      %464 = arith.addf %462, %463 : vector<8x128xf32>
      %465 = vector.extract_strided_slice %464 {offsets = [0, 0], sizes = [8, 32], strides = [1, 1]} : vector<8x128xf32> to vector<8x32xf32>
      %466 = arith.negf %465 : vector<8x32xf32>
      %467 = math.exp %466 : vector<8x32xf32>
      %cst_361 = arith.constant 1.000000e+00 : f32
      %468 = vector.broadcast %cst_361 : f32 to vector<8x32xf32>
      %469 = arith.addf %468, %467 : vector<8x32xf32>
      %470 = arith.divf %468, %469 : vector<8x32xf32>
      %471 = vector.extract_strided_slice %464 {offsets = [0, 32], sizes = [8, 32], strides = [1, 1]} : vector<8x128xf32> to vector<8x32xf32>
      %472 = arith.negf %471 : vector<8x32xf32>
      %473 = math.exp %472 : vector<8x32xf32>
      %cst_362 = arith.constant 1.000000e+00 : f32
      %474 = vector.broadcast %cst_362 : f32 to vector<8x32xf32>
      %475 = arith.addf %474, %473 : vector<8x32xf32>
      %476 = arith.divf %474, %475 : vector<8x32xf32>
      %477 = vector.extract_strided_slice %464 {offsets = [0, 64], sizes = [8, 32], strides = [1, 1]} : vector<8x128xf32> to vector<8x32xf32>
      %478 = math.tanh %477 : vector<8x32xf32>
      %479 = vector.extract_strided_slice %464 {offsets = [0, 96], sizes = [8, 32], strides = [1, 1]} : vector<8x128xf32> to vector<8x32xf32>
      %480 = arith.negf %479 : vector<8x32xf32>
      %481 = math.exp %480 : vector<8x32xf32>
      %cst_363 = arith.constant 1.000000e+00 : f32
      %482 = vector.broadcast %cst_363 : f32 to vector<8x32xf32>
      %483 = arith.addf %482, %481 : vector<8x32xf32>
      %484 = arith.divf %482, %483 : vector<8x32xf32>
      %485 = arith.mulf %476, %458 : vector<8x32xf32>
      %486 = arith.mulf %470, %478 : vector<8x32xf32>
      %487 = arith.addf %485, %486 : vector<8x32xf32>
      %488 = math.tanh %487 : vector<8x32xf32>
      %489 = arith.mulf %484, %488 : vector<8x32xf32>
      %c16_364 = arith.constant 16 : index
      %c0_365 = arith.constant 0 : index
      %490 = vector.load %arg8[%c16_364, %c0_365] : memref<64x128xf32, #tpu.memory_space<vmem>>, vector<8x32xf32>
      tpu.vector_store %arg8[%c16_364, %c0_365], %489 {strides = array<i32>} : memref<64x128xf32, #tpu.memory_space<vmem>>, vector<8x32xf32>,
      %c24_366 = arith.constant 24 : index
      %c0_367 = arith.constant 0 : index
      %491 = vector.load %arg9[%c24_366, %c0_367] : memref<64x128xf32, #tpu.memory_space<vmem>>, vector<8x128xf32>
      %cst_368 = arith.constant dense<0.000000e+00> : vector<8x128xf32>
      %492 = tpu.matmul %489, %401, %cst_368 {dimension_numbers = #tpu.dot_dimension_numbers<[1], [0], [0], [1], [0, 0, 1, 1], [], []>} : vector<8x32xf32>, vector<32x128xf32>, vector<8x128xf32> -> vector<8x128xf32>
      %493 = arith.addf %491, %492 : vector<8x128xf32>
      %494 = vector.extract_strided_slice %493 {offsets = [0, 0], sizes = [8, 32], strides = [1, 1]} : vector<8x128xf32> to vector<8x32xf32>
      %495 = arith.negf %494 : vector<8x32xf32>
      %496 = math.exp %495 : vector<8x32xf32>
      %cst_369 = arith.constant 1.000000e+00 : f32
      %497 = vector.broadcast %cst_369 : f32 to vector<8x32xf32>
      %498 = arith.addf %497, %496 : vector<8x32xf32>
      %499 = arith.divf %497, %498 : vector<8x32xf32>
      %500 = vector.extract_strided_slice %493 {offsets = [0, 32], sizes = [8, 32], strides = [1, 1]} : vector<8x128xf32> to vector<8x32xf32>
      %501 = arith.negf %500 : vector<8x32xf32>
      %502 = math.exp %501 : vector<8x32xf32>
      %cst_370 = arith.constant 1.000000e+00 : f32
      %503 = vector.broadcast %cst_370 : f32 to vector<8x32xf32>
      %504 = arith.addf %503, %502 : vector<8x32xf32>
      %505 = arith.divf %503, %504 : vector<8x32xf32>
      %506 = vector.extract_strided_slice %493 {offsets = [0, 64], sizes = [8, 32], strides = [1, 1]} : vector<8x128xf32> to vector<8x32xf32>
      %507 = math.tanh %506 : vector<8x32xf32>
      %508 = vector.extract_strided_slice %493 {offsets = [0, 96], sizes = [8, 32], strides = [1, 1]} : vector<8x128xf32> to vector<8x32xf32>
      %509 = arith.negf %508 : vector<8x32xf32>
      %510 = math.exp %509 : vector<8x32xf32>
      %cst_371 = arith.constant 1.000000e+00 : f32
      %511 = vector.broadcast %cst_371 : f32 to vector<8x32xf32>
      %512 = arith.addf %511, %510 : vector<8x32xf32>
      %513 = arith.divf %511, %512 : vector<8x32xf32>
      %514 = arith.mulf %505, %487 : vector<8x32xf32>
      %515 = arith.mulf %499, %507 : vector<8x32xf32>
      %516 = arith.addf %514, %515 : vector<8x32xf32>
      %517 = math.tanh %516 : vector<8x32xf32>
      %518 = arith.mulf %513, %517 : vector<8x32xf32>
      %c24_372 = arith.constant 24 : index
      %c0_373 = arith.constant 0 : index
      %519 = vector.load %arg8[%c24_372, %c0_373] : memref<64x128xf32, #tpu.memory_space<vmem>>, vector<8x32xf32>
      tpu.vector_store %arg8[%c24_372, %c0_373], %518 {strides = array<i32>} : memref<64x128xf32, #tpu.memory_space<vmem>>, vector<8x32xf32>,
      %c32_374 = arith.constant 32 : index
      %c0_375 = arith.constant 0 : index
      %520 = vector.load %arg9[%c32_374, %c0_375] : memref<64x128xf32, #tpu.memory_space<vmem>>, vector<8x128xf32>
      %cst_376 = arith.constant dense<0.000000e+00> : vector<8x128xf32>
      %521 = tpu.matmul %518, %401, %cst_376 {dimension_numbers = #tpu.dot_dimension_numbers<[1], [0], [0], [1], [0, 0, 1, 1], [], []>} : vector<8x32xf32>, vector<32x128xf32>, vector<8x128xf32> -> vector<8x128xf32>
      %522 = arith.addf %520, %521 : vector<8x128xf32>
      %523 = vector.extract_strided_slice %522 {offsets = [0, 0], sizes = [8, 32], strides = [1, 1]} : vector<8x128xf32> to vector<8x32xf32>
      %524 = arith.negf %523 : vector<8x32xf32>
      %525 = math.exp %524 : vector<8x32xf32>
      %cst_377 = arith.constant 1.000000e+00 : f32
      %526 = vector.broadcast %cst_377 : f32 to vector<8x32xf32>
      %527 = arith.addf %526, %525 : vector<8x32xf32>
      %528 = arith.divf %526, %527 : vector<8x32xf32>
      %529 = vector.extract_strided_slice %522 {offsets = [0, 32], sizes = [8, 32], strides = [1, 1]} : vector<8x128xf32> to vector<8x32xf32>
      %530 = arith.negf %529 : vector<8x32xf32>
      %531 = math.exp %530 : vector<8x32xf32>
      %cst_378 = arith.constant 1.000000e+00 : f32
      %532 = vector.broadcast %cst_378 : f32 to vector<8x32xf32>
      %533 = arith.addf %532, %531 : vector<8x32xf32>
      %534 = arith.divf %532, %533 : vector<8x32xf32>
      %535 = vector.extract_strided_slice %522 {offsets = [0, 64], sizes = [8, 32], strides = [1, 1]} : vector<8x128xf32> to vector<8x32xf32>
      %536 = math.tanh %535 : vector<8x32xf32>
      %537 = vector.extract_strided_slice %522 {offsets = [0, 96], sizes = [8, 32], strides = [1, 1]} : vector<8x128xf32> to vector<8x32xf32>
      %538 = arith.negf %537 : vector<8x32xf32>
      %539 = math.exp %538 : vector<8x32xf32>
      %cst_379 = arith.constant 1.000000e+00 : f32
      %540 = vector.broadcast %cst_379 : f32 to vector<8x32xf32>
      %541 = arith.addf %540, %539 : vector<8x32xf32>
      %542 = arith.divf %540, %541 : vector<8x32xf32>
      %543 = arith.mulf %534, %516 : vector<8x32xf32>
      %544 = arith.mulf %528, %536 : vector<8x32xf32>
      %545 = arith.addf %543, %544 : vector<8x32xf32>
      %546 = math.tanh %545 : vector<8x32xf32>
      %547 = arith.mulf %542, %546 : vector<8x32xf32>
      %c32_380 = arith.constant 32 : index
      %c0_381 = arith.constant 0 : index
      %548 = vector.load %arg8[%c32_380, %c0_381] : memref<64x128xf32, #tpu.memory_space<vmem>>, vector<8x32xf32>
      tpu.vector_store %arg8[%c32_380, %c0_381], %547 {strides = array<i32>} : memref<64x128xf32, #tpu.memory_space<vmem>>, vector<8x32xf32>,
      %c40_382 = arith.constant 40 : index
      %c0_383 = arith.constant 0 : index
      %549 = vector.load %arg9[%c40_382, %c0_383] : memref<64x128xf32, #tpu.memory_space<vmem>>, vector<8x128xf32>
      %cst_384 = arith.constant dense<0.000000e+00> : vector<8x128xf32>
      %550 = tpu.matmul %547, %401, %cst_384 {dimension_numbers = #tpu.dot_dimension_numbers<[1], [0], [0], [1], [0, 0, 1, 1], [], []>} : vector<8x32xf32>, vector<32x128xf32>, vector<8x128xf32> -> vector<8x128xf32>
      %551 = arith.addf %549, %550 : vector<8x128xf32>
      %552 = vector.extract_strided_slice %551 {offsets = [0, 0], sizes = [8, 32], strides = [1, 1]} : vector<8x128xf32> to vector<8x32xf32>
      %553 = arith.negf %552 : vector<8x32xf32>
      %554 = math.exp %553 : vector<8x32xf32>
      %cst_385 = arith.constant 1.000000e+00 : f32
      %555 = vector.broadcast %cst_385 : f32 to vector<8x32xf32>
      %556 = arith.addf %555, %554 : vector<8x32xf32>
      %557 = arith.divf %555, %556 : vector<8x32xf32>
      %558 = vector.extract_strided_slice %551 {offsets = [0, 32], sizes = [8, 32], strides = [1, 1]} : vector<8x128xf32> to vector<8x32xf32>
      %559 = arith.negf %558 : vector<8x32xf32>
      %560 = math.exp %559 : vector<8x32xf32>
      %cst_386 = arith.constant 1.000000e+00 : f32
      %561 = vector.broadcast %cst_386 : f32 to vector<8x32xf32>
      %562 = arith.addf %561, %560 : vector<8x32xf32>
      %563 = arith.divf %561, %562 : vector<8x32xf32>
      %564 = vector.extract_strided_slice %551 {offsets = [0, 64], sizes = [8, 32], strides = [1, 1]} : vector<8x128xf32> to vector<8x32xf32>
      %565 = math.tanh %564 : vector<8x32xf32>
      %566 = vector.extract_strided_slice %551 {offsets = [0, 96], sizes = [8, 32], strides = [1, 1]} : vector<8x128xf32> to vector<8x32xf32>
      %567 = arith.negf %566 : vector<8x32xf32>
      %568 = math.exp %567 : vector<8x32xf32>
      %cst_387 = arith.constant 1.000000e+00 : f32
      %569 = vector.broadcast %cst_387 : f32 to vector<8x32xf32>
      %570 = arith.addf %569, %568 : vector<8x32xf32>
      %571 = arith.divf %569, %570 : vector<8x32xf32>
      %572 = arith.mulf %563, %545 : vector<8x32xf32>
      %573 = arith.mulf %557, %565 : vector<8x32xf32>
      %574 = arith.addf %572, %573 : vector<8x32xf32>
      %575 = math.tanh %574 : vector<8x32xf32>
      %576 = arith.mulf %571, %575 : vector<8x32xf32>
      %c40_388 = arith.constant 40 : index
      %c0_389 = arith.constant 0 : index
      %577 = vector.load %arg8[%c40_388, %c0_389] : memref<64x128xf32, #tpu.memory_space<vmem>>, vector<8x32xf32>
      tpu.vector_store %arg8[%c40_388, %c0_389], %576 {strides = array<i32>} : memref<64x128xf32, #tpu.memory_space<vmem>>, vector<8x32xf32>,
      %c48_390 = arith.constant 48 : index
      %c0_391 = arith.constant 0 : index
      %578 = vector.load %arg9[%c48_390, %c0_391] : memref<64x128xf32, #tpu.memory_space<vmem>>, vector<8x128xf32>
      %cst_392 = arith.constant dense<0.000000e+00> : vector<8x128xf32>
      %579 = tpu.matmul %576, %401, %cst_392 {dimension_numbers = #tpu.dot_dimension_numbers<[1], [0], [0], [1], [0, 0, 1, 1], [], []>} : vector<8x32xf32>, vector<32x128xf32>, vector<8x128xf32> -> vector<8x128xf32>
      %580 = arith.addf %578, %579 : vector<8x128xf32>
      %581 = vector.extract_strided_slice %580 {offsets = [0, 0], sizes = [8, 32], strides = [1, 1]} : vector<8x128xf32> to vector<8x32xf32>
      %582 = arith.negf %581 : vector<8x32xf32>
      %583 = math.exp %582 : vector<8x32xf32>
      %cst_393 = arith.constant 1.000000e+00 : f32
      %584 = vector.broadcast %cst_393 : f32 to vector<8x32xf32>
      %585 = arith.addf %584, %583 : vector<8x32xf32>
      %586 = arith.divf %584, %585 : vector<8x32xf32>
      %587 = vector.extract_strided_slice %580 {offsets = [0, 32], sizes = [8, 32], strides = [1, 1]} : vector<8x128xf32> to vector<8x32xf32>
      %588 = arith.negf %587 : vector<8x32xf32>
      %589 = math.exp %588 : vector<8x32xf32>
      %cst_394 = arith.constant 1.000000e+00 : f32
      %590 = vector.broadcast %cst_394 : f32 to vector<8x32xf32>
      %591 = arith.addf %590, %589 : vector<8x32xf32>
      %592 = arith.divf %590, %591 : vector<8x32xf32>
      %593 = vector.extract_strided_slice %580 {offsets = [0, 64], sizes = [8, 32], strides = [1, 1]} : vector<8x128xf32> to vector<8x32xf32>
      %594 = math.tanh %593 : vector<8x32xf32>
      %595 = vector.extract_strided_slice %580 {offsets = [0, 96], sizes = [8, 32], strides = [1, 1]} : vector<8x128xf32> to vector<8x32xf32>
      %596 = arith.negf %595 : vector<8x32xf32>
      %597 = math.exp %596 : vector<8x32xf32>
      %cst_395 = arith.constant 1.000000e+00 : f32
      %598 = vector.broadcast %cst_395 : f32 to vector<8x32xf32>
      %599 = arith.addf %598, %597 : vector<8x32xf32>
      %600 = arith.divf %598, %599 : vector<8x32xf32>
      %601 = arith.mulf %592, %574 : vector<8x32xf32>
      %602 = arith.mulf %586, %594 : vector<8x32xf32>
      %603 = arith.addf %601, %602 : vector<8x32xf32>
      %604 = math.tanh %603 : vector<8x32xf32>
      %605 = arith.mulf %600, %604 : vector<8x32xf32>
      %c48_396 = arith.constant 48 : index
      %c0_397 = arith.constant 0 : index
      %606 = vector.load %arg8[%c48_396, %c0_397] : memref<64x128xf32, #tpu.memory_space<vmem>>, vector<8x32xf32>
      tpu.vector_store %arg8[%c48_396, %c0_397], %605 {strides = array<i32>} : memref<64x128xf32, #tpu.memory_space<vmem>>, vector<8x32xf32>,
      %c56_398 = arith.constant 56 : index
      %c0_399 = arith.constant 0 : index
      %607 = vector.load %arg9[%c56_398, %c0_399] : memref<64x128xf32, #tpu.memory_space<vmem>>, vector<8x128xf32>
      %cst_400 = arith.constant dense<0.000000e+00> : vector<8x128xf32>
      %608 = tpu.matmul %605, %401, %cst_400 {dimension_numbers = #tpu.dot_dimension_numbers<[1], [0], [0], [1], [0, 0, 1, 1], [], []>} : vector<8x32xf32>, vector<32x128xf32>, vector<8x128xf32> -> vector<8x128xf32>
      %609 = arith.addf %607, %608 : vector<8x128xf32>
      %610 = vector.extract_strided_slice %609 {offsets = [0, 0], sizes = [8, 32], strides = [1, 1]} : vector<8x128xf32> to vector<8x32xf32>
      %611 = arith.negf %610 : vector<8x32xf32>
      %612 = math.exp %611 : vector<8x32xf32>
      %cst_401 = arith.constant 1.000000e+00 : f32
      %613 = vector.broadcast %cst_401 : f32 to vector<8x32xf32>
      %614 = arith.addf %613, %612 : vector<8x32xf32>
      %615 = arith.divf %613, %614 : vector<8x32xf32>
      %616 = vector.extract_strided_slice %609 {offsets = [0, 32], sizes = [8, 32], strides = [1, 1]} : vector<8x128xf32> to vector<8x32xf32>
      %617 = arith.negf %616 : vector<8x32xf32>
      %618 = math.exp %617 : vector<8x32xf32>
      %cst_402 = arith.constant 1.000000e+00 : f32
      %619 = vector.broadcast %cst_402 : f32 to vector<8x32xf32>
      %620 = arith.addf %619, %618 : vector<8x32xf32>
      %621 = arith.divf %619, %620 : vector<8x32xf32>
      %622 = vector.extract_strided_slice %609 {offsets = [0, 64], sizes = [8, 32], strides = [1, 1]} : vector<8x128xf32> to vector<8x32xf32>
      %623 = math.tanh %622 : vector<8x32xf32>
      %624 = vector.extract_strided_slice %609 {offsets = [0, 96], sizes = [8, 32], strides = [1, 1]} : vector<8x128xf32> to vector<8x32xf32>
      %625 = arith.negf %624 : vector<8x32xf32>
      %626 = math.exp %625 : vector<8x32xf32>
      %cst_403 = arith.constant 1.000000e+00 : f32
      %627 = vector.broadcast %cst_403 : f32 to vector<8x32xf32>
      %628 = arith.addf %627, %626 : vector<8x32xf32>
      %629 = arith.divf %627, %628 : vector<8x32xf32>
      %630 = arith.mulf %621, %603 : vector<8x32xf32>
      %631 = arith.mulf %615, %623 : vector<8x32xf32>
      %632 = arith.addf %630, %631 : vector<8x32xf32>
      %633 = math.tanh %632 : vector<8x32xf32>
      %634 = arith.mulf %629, %633 : vector<8x32xf32>
      %c56_404 = arith.constant 56 : index
      %c0_405 = arith.constant 0 : index
      %635 = vector.load %arg8[%c56_404, %c0_405] : memref<64x128xf32, #tpu.memory_space<vmem>>, vector<8x32xf32>
      tpu.vector_store %arg8[%c56_404, %c0_405], %634 {strides = array<i32>} : memref<64x128xf32, #tpu.memory_space<vmem>>, vector<8x32xf32>,
      %c0_406 = arith.constant 0 : index
      %c0_407 = arith.constant 0 : index
      %636 = vector.load %arg8[%c0_406, %c0_407] : memref<64x128xf32, #tpu.memory_space<vmem>>, vector<64x128xf32>
      %c1_408 = arith.constant 1 : index
      %c0_409 = arith.constant 0 : index
      %c0_410 = arith.constant 0 : index
      %637 = vector.load %arg3[%c1_408, %c0_409, %c0_410] : memref<2x128x128xf32, #tpu.memory_space<vmem>>, vector<1x128x128xf32>
      %638 = vector.shape_cast %637 : vector<1x128x128xf32> to vector<128x128xf32>
      %cst_411 = arith.constant dense<0.000000e+00> : vector<64x128xf32>
      %639 = tpu.matmul %636, %638, %cst_411 {dimension_numbers = #tpu.dot_dimension_numbers<[1], [0], [0], [1], [0, 0, 1, 1], [], []>} : vector<64x128xf32>, vector<128x128xf32>, vector<64x128xf32> -> vector<64x128xf32>
      %c1_412 = arith.constant 1 : index
      %c0_413 = arith.constant 0 : index
      %c0_414 = arith.constant 0 : index
      %640 = vector.load %arg5[%c1_412, %c0_413, %c0_414] : memref<2x1x128xf32, #tpu.memory_space<vmem>>, vector<1x1x128xf32>
      %641 = vector.shape_cast %640 : vector<1x1x128xf32> to vector<1x128xf32>
      %642 = vector.broadcast %641 : vector<1x128xf32> to vector<64x128xf32>
      %643 = arith.addf %639, %642 : vector<64x128xf32>
      %c0_415 = arith.constant 0 : index
      %c0_416 = arith.constant 0 : index
      %644 = vector.load %arg9[%c0_415, %c0_416] : memref<64x128xf32, #tpu.memory_space<vmem>>, vector<64x128xf32>
      tpu.vector_store %arg9[%c0_415, %c0_416], %643 {strides = array<i32>} : memref<64x128xf32, #tpu.memory_space<vmem>>, vector<64x128xf32>,
      %c1_417 = arith.constant 1 : index
      %c0_418 = arith.constant 0 : index
      %c0_419 = arith.constant 0 : index
      %645 = vector.load %arg4[%c1_417, %c0_418, %c0_419] : memref<2x32x128xf32, #tpu.memory_space<vmem>>, vector<1x32x128xf32>
      %646 = vector.shape_cast %645 : vector<1x32x128xf32> to vector<32x128xf32>
      %cst_420 = arith.constant 0.000000e+00 : f32
      %647 = vector.broadcast %cst_420 : f32 to vector<8x32xf32>
      %cst_421 = arith.constant 0.000000e+00 : f32
      %648 = vector.broadcast %cst_421 : f32 to vector<8x32xf32>
      %c0_422 = arith.constant 0 : index
      %c0_423 = arith.constant 0 : index
      %649 = vector.load %arg9[%c0_422, %c0_423] : memref<64x128xf32, #tpu.memory_space<vmem>>, vector<8x128xf32>
      %cst_424 = arith.constant dense<0.000000e+00> : vector<8x128xf32>
      %650 = tpu.matmul %647, %646, %cst_424 {dimension_numbers = #tpu.dot_dimension_numbers<[1], [0], [0], [1], [0, 0, 1, 1], [], []>} : vector<8x32xf32>, vector<32x128xf32>, vector<8x128xf32> -> vector<8x128xf32>
      %651 = arith.addf %649, %650 : vector<8x128xf32>
      %652 = vector.extract_strided_slice %651 {offsets = [0, 0], sizes = [8, 32], strides = [1, 1]} : vector<8x128xf32> to vector<8x32xf32>
      %653 = arith.negf %652 : vector<8x32xf32>
      %654 = math.exp %653 : vector<8x32xf32>
      %cst_425 = arith.constant 1.000000e+00 : f32
      %655 = vector.broadcast %cst_425 : f32 to vector<8x32xf32>
      %656 = arith.addf %655, %654 : vector<8x32xf32>
      %657 = arith.divf %655, %656 : vector<8x32xf32>
      %658 = vector.extract_strided_slice %651 {offsets = [0, 32], sizes = [8, 32], strides = [1, 1]} : vector<8x128xf32> to vector<8x32xf32>
      %659 = arith.negf %658 : vector<8x32xf32>
      %660 = math.exp %659 : vector<8x32xf32>
      %cst_426 = arith.constant 1.000000e+00 : f32
      %661 = vector.broadcast %cst_426 : f32 to vector<8x32xf32>
      %662 = arith.addf %661, %660 : vector<8x32xf32>
      %663 = arith.divf %661, %662 : vector<8x32xf32>
      %664 = vector.extract_strided_slice %651 {offsets = [0, 64], sizes = [8, 32], strides = [1, 1]} : vector<8x128xf32> to vector<8x32xf32>
      %665 = math.tanh %664 : vector<8x32xf32>
      %666 = vector.extract_strided_slice %651 {offsets = [0, 96], sizes = [8, 32], strides = [1, 1]} : vector<8x128xf32> to vector<8x32xf32>
      %667 = arith.negf %666 : vector<8x32xf32>
      %668 = math.exp %667 : vector<8x32xf32>
      %cst_427 = arith.constant 1.000000e+00 : f32
      %669 = vector.broadcast %cst_427 : f32 to vector<8x32xf32>
      %670 = arith.addf %669, %668 : vector<8x32xf32>
      %671 = arith.divf %669, %670 : vector<8x32xf32>
      %672 = arith.mulf %663, %648 : vector<8x32xf32>
      %673 = arith.mulf %657, %665 : vector<8x32xf32>
      %674 = arith.addf %672, %673 : vector<8x32xf32>
      %675 = math.tanh %674 : vector<8x32xf32>
      %676 = arith.mulf %671, %675 : vector<8x32xf32>
      %c0_428 = arith.constant 0 : index
      %c0_429 = arith.constant 0 : index
      %677 = vector.load %arg8[%c0_428, %c0_429] : memref<64x128xf32, #tpu.memory_space<vmem>>, vector<8x32xf32>
      tpu.vector_store %arg8[%c0_428, %c0_429], %676 {strides = array<i32>} : memref<64x128xf32, #tpu.memory_space<vmem>>, vector<8x32xf32>,
      %c8_430 = arith.constant 8 : index
      %c0_431 = arith.constant 0 : index
      %678 = vector.load %arg9[%c8_430, %c0_431] : memref<64x128xf32, #tpu.memory_space<vmem>>, vector<8x128xf32>
      %cst_432 = arith.constant dense<0.000000e+00> : vector<8x128xf32>
      %679 = tpu.matmul %676, %646, %cst_432 {dimension_numbers = #tpu.dot_dimension_numbers<[1], [0], [0], [1], [0, 0, 1, 1], [], []>} : vector<8x32xf32>, vector<32x128xf32>, vector<8x128xf32> -> vector<8x128xf32>
      %680 = arith.addf %678, %679 : vector<8x128xf32>
      %681 = vector.extract_strided_slice %680 {offsets = [0, 0], sizes = [8, 32], strides = [1, 1]} : vector<8x128xf32> to vector<8x32xf32>
      %682 = arith.negf %681 : vector<8x32xf32>
      %683 = math.exp %682 : vector<8x32xf32>
      %cst_433 = arith.constant 1.000000e+00 : f32
      %684 = vector.broadcast %cst_433 : f32 to vector<8x32xf32>
      %685 = arith.addf %684, %683 : vector<8x32xf32>
      %686 = arith.divf %684, %685 : vector<8x32xf32>
      %687 = vector.extract_strided_slice %680 {offsets = [0, 32], sizes = [8, 32], strides = [1, 1]} : vector<8x128xf32> to vector<8x32xf32>
      %688 = arith.negf %687 : vector<8x32xf32>
      %689 = math.exp %688 : vector<8x32xf32>
      %cst_434 = arith.constant 1.000000e+00 : f32
      %690 = vector.broadcast %cst_434 : f32 to vector<8x32xf32>
      %691 = arith.addf %690, %689 : vector<8x32xf32>
      %692 = arith.divf %690, %691 : vector<8x32xf32>
      %693 = vector.extract_strided_slice %680 {offsets = [0, 64], sizes = [8, 32], strides = [1, 1]} : vector<8x128xf32> to vector<8x32xf32>
      %694 = math.tanh %693 : vector<8x32xf32>
      %695 = vector.extract_strided_slice %680 {offsets = [0, 96], sizes = [8, 32], strides = [1, 1]} : vector<8x128xf32> to vector<8x32xf32>
      %696 = arith.negf %695 : vector<8x32xf32>
      %697 = math.exp %696 : vector<8x32xf32>
      %cst_435 = arith.constant 1.000000e+00 : f32
      %698 = vector.broadcast %cst_435 : f32 to vector<8x32xf32>
      %699 = arith.addf %698, %697 : vector<8x32xf32>
      %700 = arith.divf %698, %699 : vector<8x32xf32>
      %701 = arith.mulf %692, %674 : vector<8x32xf32>
      %702 = arith.mulf %686, %694 : vector<8x32xf32>
      %703 = arith.addf %701, %702 : vector<8x32xf32>
      %704 = math.tanh %703 : vector<8x32xf32>
      %705 = arith.mulf %700, %704 : vector<8x32xf32>
      %c8_436 = arith.constant 8 : index
      %c0_437 = arith.constant 0 : index
      %706 = vector.load %arg8[%c8_436, %c0_437] : memref<64x128xf32, #tpu.memory_space<vmem>>, vector<8x32xf32>
      tpu.vector_store %arg8[%c8_436, %c0_437], %705 {strides = array<i32>} : memref<64x128xf32, #tpu.memory_space<vmem>>, vector<8x32xf32>,
      %c16_438 = arith.constant 16 : index
      %c0_439 = arith.constant 0 : index
      %707 = vector.load %arg9[%c16_438, %c0_439] : memref<64x128xf32, #tpu.memory_space<vmem>>, vector<8x128xf32>
      %cst_440 = arith.constant dense<0.000000e+00> : vector<8x128xf32>
      %708 = tpu.matmul %705, %646, %cst_440 {dimension_numbers = #tpu.dot_dimension_numbers<[1], [0], [0], [1], [0, 0, 1, 1], [], []>} : vector<8x32xf32>, vector<32x128xf32>, vector<8x128xf32> -> vector<8x128xf32>
      %709 = arith.addf %707, %708 : vector<8x128xf32>
      %710 = vector.extract_strided_slice %709 {offsets = [0, 0], sizes = [8, 32], strides = [1, 1]} : vector<8x128xf32> to vector<8x32xf32>
      %711 = arith.negf %710 : vector<8x32xf32>
      %712 = math.exp %711 : vector<8x32xf32>
      %cst_441 = arith.constant 1.000000e+00 : f32
      %713 = vector.broadcast %cst_441 : f32 to vector<8x32xf32>
      %714 = arith.addf %713, %712 : vector<8x32xf32>
      %715 = arith.divf %713, %714 : vector<8x32xf32>
      %716 = vector.extract_strided_slice %709 {offsets = [0, 32], sizes = [8, 32], strides = [1, 1]} : vector<8x128xf32> to vector<8x32xf32>
      %717 = arith.negf %716 : vector<8x32xf32>
      %718 = math.exp %717 : vector<8x32xf32>
      %cst_442 = arith.constant 1.000000e+00 : f32
      %719 = vector.broadcast %cst_442 : f32 to vector<8x32xf32>
      %720 = arith.addf %719, %718 : vector<8x32xf32>
      %721 = arith.divf %719, %720 : vector<8x32xf32>
      %722 = vector.extract_strided_slice %709 {offsets = [0, 64], sizes = [8, 32], strides = [1, 1]} : vector<8x128xf32> to vector<8x32xf32>
      %723 = math.tanh %722 : vector<8x32xf32>
      %724 = vector.extract_strided_slice %709 {offsets = [0, 96], sizes = [8, 32], strides = [1, 1]} : vector<8x128xf32> to vector<8x32xf32>
      %725 = arith.negf %724 : vector<8x32xf32>
      %726 = math.exp %725 : vector<8x32xf32>
      %cst_443 = arith.constant 1.000000e+00 : f32
      %727 = vector.broadcast %cst_443 : f32 to vector<8x32xf32>
      %728 = arith.addf %727, %726 : vector<8x32xf32>
      %729 = arith.divf %727, %728 : vector<8x32xf32>
      %730 = arith.mulf %721, %703 : vector<8x32xf32>
      %731 = arith.mulf %715, %723 : vector<8x32xf32>
      %732 = arith.addf %730, %731 : vector<8x32xf32>
      %733 = math.tanh %732 : vector<8x32xf32>
      %734 = arith.mulf %729, %733 : vector<8x32xf32>
      %c16_444 = arith.constant 16 : index
      %c0_445 = arith.constant 0 : index
      %735 = vector.load %arg8[%c16_444, %c0_445] : memref<64x128xf32, #tpu.memory_space<vmem>>, vector<8x32xf32>
      tpu.vector_store %arg8[%c16_444, %c0_445], %734 {strides = array<i32>} : memref<64x128xf32, #tpu.memory_space<vmem>>, vector<8x32xf32>,
      %c24_446 = arith.constant 24 : index
      %c0_447 = arith.constant 0 : index
      %736 = vector.load %arg9[%c24_446, %c0_447] : memref<64x128xf32, #tpu.memory_space<vmem>>, vector<8x128xf32>
      %cst_448 = arith.constant dense<0.000000e+00> : vector<8x128xf32>
      %737 = tpu.matmul %734, %646, %cst_448 {dimension_numbers = #tpu.dot_dimension_numbers<[1], [0], [0], [1], [0, 0, 1, 1], [], []>} : vector<8x32xf32>, vector<32x128xf32>, vector<8x128xf32> -> vector<8x128xf32>
      %738 = arith.addf %736, %737 : vector<8x128xf32>
      %739 = vector.extract_strided_slice %738 {offsets = [0, 0], sizes = [8, 32], strides = [1, 1]} : vector<8x128xf32> to vector<8x32xf32>
      %740 = arith.negf %739 : vector<8x32xf32>
      %741 = math.exp %740 : vector<8x32xf32>
      %cst_449 = arith.constant 1.000000e+00 : f32
      %742 = vector.broadcast %cst_449 : f32 to vector<8x32xf32>
      %743 = arith.addf %742, %741 : vector<8x32xf32>
      %744 = arith.divf %742, %743 : vector<8x32xf32>
      %745 = vector.extract_strided_slice %738 {offsets = [0, 32], sizes = [8, 32], strides = [1, 1]} : vector<8x128xf32> to vector<8x32xf32>
      %746 = arith.negf %745 : vector<8x32xf32>
      %747 = math.exp %746 : vector<8x32xf32>
      %cst_450 = arith.constant 1.000000e+00 : f32
      %748 = vector.broadcast %cst_450 : f32 to vector<8x32xf32>
      %749 = arith.addf %748, %747 : vector<8x32xf32>
      %750 = arith.divf %748, %749 : vector<8x32xf32>
      %751 = vector.extract_strided_slice %738 {offsets = [0, 64], sizes = [8, 32], strides = [1, 1]} : vector<8x128xf32> to vector<8x32xf32>
      %752 = math.tanh %751 : vector<8x32xf32>
      %753 = vector.extract_strided_slice %738 {offsets = [0, 96], sizes = [8, 32], strides = [1, 1]} : vector<8x128xf32> to vector<8x32xf32>
      %754 = arith.negf %753 : vector<8x32xf32>
      %755 = math.exp %754 : vector<8x32xf32>
      %cst_451 = arith.constant 1.000000e+00 : f32
      %756 = vector.broadcast %cst_451 : f32 to vector<8x32xf32>
      %757 = arith.addf %756, %755 : vector<8x32xf32>
      %758 = arith.divf %756, %757 : vector<8x32xf32>
      %759 = arith.mulf %750, %732 : vector<8x32xf32>
      %760 = arith.mulf %744, %752 : vector<8x32xf32>
      %761 = arith.addf %759, %760 : vector<8x32xf32>
      %762 = math.tanh %761 : vector<8x32xf32>
      %763 = arith.mulf %758, %762 : vector<8x32xf32>
      %c24_452 = arith.constant 24 : index
      %c0_453 = arith.constant 0 : index
      %764 = vector.load %arg8[%c24_452, %c0_453] : memref<64x128xf32, #tpu.memory_space<vmem>>, vector<8x32xf32>
      tpu.vector_store %arg8[%c24_452, %c0_453], %763 {strides = array<i32>} : memref<64x128xf32, #tpu.memory_space<vmem>>, vector<8x32xf32>,
      %c32_454 = arith.constant 32 : index
      %c0_455 = arith.constant 0 : index
      %765 = vector.load %arg9[%c32_454, %c0_455] : memref<64x128xf32, #tpu.memory_space<vmem>>, vector<8x128xf32>
      %cst_456 = arith.constant dense<0.000000e+00> : vector<8x128xf32>
      %766 = tpu.matmul %763, %646, %cst_456 {dimension_numbers = #tpu.dot_dimension_numbers<[1], [0], [0], [1], [0, 0, 1, 1], [], []>} : vector<8x32xf32>, vector<32x128xf32>, vector<8x128xf32> -> vector<8x128xf32>
      %767 = arith.addf %765, %766 : vector<8x128xf32>
      %768 = vector.extract_strided_slice %767 {offsets = [0, 0], sizes = [8, 32], strides = [1, 1]} : vector<8x128xf32> to vector<8x32xf32>
      %769 = arith.negf %768 : vector<8x32xf32>
      %770 = math.exp %769 : vector<8x32xf32>
      %cst_457 = arith.constant 1.000000e+00 : f32
      %771 = vector.broadcast %cst_457 : f32 to vector<8x32xf32>
      %772 = arith.addf %771, %770 : vector<8x32xf32>
      %773 = arith.divf %771, %772 : vector<8x32xf32>
      %774 = vector.extract_strided_slice %767 {offsets = [0, 32], sizes = [8, 32], strides = [1, 1]} : vector<8x128xf32> to vector<8x32xf32>
      %775 = arith.negf %774 : vector<8x32xf32>
      %776 = math.exp %775 : vector<8x32xf32>
      %cst_458 = arith.constant 1.000000e+00 : f32
      %777 = vector.broadcast %cst_458 : f32 to vector<8x32xf32>
      %778 = arith.addf %777, %776 : vector<8x32xf32>
      %779 = arith.divf %777, %778 : vector<8x32xf32>
      %780 = vector.extract_strided_slice %767 {offsets = [0, 64], sizes = [8, 32], strides = [1, 1]} : vector<8x128xf32> to vector<8x32xf32>
      %781 = math.tanh %780 : vector<8x32xf32>
      %782 = vector.extract_strided_slice %767 {offsets = [0, 96], sizes = [8, 32], strides = [1, 1]} : vector<8x128xf32> to vector<8x32xf32>
      %783 = arith.negf %782 : vector<8x32xf32>
      %784 = math.exp %783 : vector<8x32xf32>
      %cst_459 = arith.constant 1.000000e+00 : f32
      %785 = vector.broadcast %cst_459 : f32 to vector<8x32xf32>
      %786 = arith.addf %785, %784 : vector<8x32xf32>
      %787 = arith.divf %785, %786 : vector<8x32xf32>
      %788 = arith.mulf %779, %761 : vector<8x32xf32>
      %789 = arith.mulf %773, %781 : vector<8x32xf32>
      %790 = arith.addf %788, %789 : vector<8x32xf32>
      %791 = math.tanh %790 : vector<8x32xf32>
      %792 = arith.mulf %787, %791 : vector<8x32xf32>
      %c32_460 = arith.constant 32 : index
      %c0_461 = arith.constant 0 : index
      %793 = vector.load %arg8[%c32_460, %c0_461] : memref<64x128xf32, #tpu.memory_space<vmem>>, vector<8x32xf32>
      tpu.vector_store %arg8[%c32_460, %c0_461], %792 {strides = array<i32>} : memref<64x128xf32, #tpu.memory_space<vmem>>, vector<8x32xf32>,
      %c40_462 = arith.constant 40 : index
      %c0_463 = arith.constant 0 : index
      %794 = vector.load %arg9[%c40_462, %c0_463] : memref<64x128xf32, #tpu.memory_space<vmem>>, vector<8x128xf32>
      %cst_464 = arith.constant dense<0.000000e+00> : vector<8x128xf32>
      %795 = tpu.matmul %792, %646, %cst_464 {dimension_numbers = #tpu.dot_dimension_numbers<[1], [0], [0], [1], [0, 0, 1, 1], [], []>} : vector<8x32xf32>, vector<32x128xf32>, vector<8x128xf32> -> vector<8x128xf32>
      %796 = arith.addf %794, %795 : vector<8x128xf32>
      %797 = vector.extract_strided_slice %796 {offsets = [0, 0], sizes = [8, 32], strides = [1, 1]} : vector<8x128xf32> to vector<8x32xf32>
      %798 = arith.negf %797 : vector<8x32xf32>
      %799 = math.exp %798 : vector<8x32xf32>
      %cst_465 = arith.constant 1.000000e+00 : f32
      %800 = vector.broadcast %cst_465 : f32 to vector<8x32xf32>
      %801 = arith.addf %800, %799 : vector<8x32xf32>
      %802 = arith.divf %800, %801 : vector<8x32xf32>
      %803 = vector.extract_strided_slice %796 {offsets = [0, 32], sizes = [8, 32], strides = [1, 1]} : vector<8x128xf32> to vector<8x32xf32>
      %804 = arith.negf %803 : vector<8x32xf32>
      %805 = math.exp %804 : vector<8x32xf32>
      %cst_466 = arith.constant 1.000000e+00 : f32
      %806 = vector.broadcast %cst_466 : f32 to vector<8x32xf32>
      %807 = arith.addf %806, %805 : vector<8x32xf32>
      %808 = arith.divf %806, %807 : vector<8x32xf32>
      %809 = vector.extract_strided_slice %796 {offsets = [0, 64], sizes = [8, 32], strides = [1, 1]} : vector<8x128xf32> to vector<8x32xf32>
      %810 = math.tanh %809 : vector<8x32xf32>
      %811 = vector.extract_strided_slice %796 {offsets = [0, 96], sizes = [8, 32], strides = [1, 1]} : vector<8x128xf32> to vector<8x32xf32>
      %812 = arith.negf %811 : vector<8x32xf32>
      %813 = math.exp %812 : vector<8x32xf32>
      %cst_467 = arith.constant 1.000000e+00 : f32
      %814 = vector.broadcast %cst_467 : f32 to vector<8x32xf32>
      %815 = arith.addf %814, %813 : vector<8x32xf32>
      %816 = arith.divf %814, %815 : vector<8x32xf32>
      %817 = arith.mulf %808, %790 : vector<8x32xf32>
      %818 = arith.mulf %802, %810 : vector<8x32xf32>
      %819 = arith.addf %817, %818 : vector<8x32xf32>
      %820 = math.tanh %819 : vector<8x32xf32>
      %821 = arith.mulf %816, %820 : vector<8x32xf32>
      %c40_468 = arith.constant 40 : index
      %c0_469 = arith.constant 0 : index
      %822 = vector.load %arg8[%c40_468, %c0_469] : memref<64x128xf32, #tpu.memory_space<vmem>>, vector<8x32xf32>
      tpu.vector_store %arg8[%c40_468, %c0_469], %821 {strides = array<i32>} : memref<64x128xf32, #tpu.memory_space<vmem>>, vector<8x32xf32>,
      %c48_470 = arith.constant 48 : index
      %c0_471 = arith.constant 0 : index
      %823 = vector.load %arg9[%c48_470, %c0_471] : memref<64x128xf32, #tpu.memory_space<vmem>>, vector<8x128xf32>
      %cst_472 = arith.constant dense<0.000000e+00> : vector<8x128xf32>
      %824 = tpu.matmul %821, %646, %cst_472 {dimension_numbers = #tpu.dot_dimension_numbers<[1], [0], [0], [1], [0, 0, 1, 1], [], []>} : vector<8x32xf32>, vector<32x128xf32>, vector<8x128xf32> -> vector<8x128xf32>
      %825 = arith.addf %823, %824 : vector<8x128xf32>
      %826 = vector.extract_strided_slice %825 {offsets = [0, 0], sizes = [8, 32], strides = [1, 1]} : vector<8x128xf32> to vector<8x32xf32>
      %827 = arith.negf %826 : vector<8x32xf32>
      %828 = math.exp %827 : vector<8x32xf32>
      %cst_473 = arith.constant 1.000000e+00 : f32
      %829 = vector.broadcast %cst_473 : f32 to vector<8x32xf32>
      %830 = arith.addf %829, %828 : vector<8x32xf32>
      %831 = arith.divf %829, %830 : vector<8x32xf32>
      %832 = vector.extract_strided_slice %825 {offsets = [0, 32], sizes = [8, 32], strides = [1, 1]} : vector<8x128xf32> to vector<8x32xf32>
      %833 = arith.negf %832 : vector<8x32xf32>
      %834 = math.exp %833 : vector<8x32xf32>
      %cst_474 = arith.constant 1.000000e+00 : f32
      %835 = vector.broadcast %cst_474 : f32 to vector<8x32xf32>
      %836 = arith.addf %835, %834 : vector<8x32xf32>
      %837 = arith.divf %835, %836 : vector<8x32xf32>
      %838 = vector.extract_strided_slice %825 {offsets = [0, 64], sizes = [8, 32], strides = [1, 1]} : vector<8x128xf32> to vector<8x32xf32>
      %839 = math.tanh %838 : vector<8x32xf32>
      %840 = vector.extract_strided_slice %825 {offsets = [0, 96], sizes = [8, 32], strides = [1, 1]} : vector<8x128xf32> to vector<8x32xf32>
      %841 = arith.negf %840 : vector<8x32xf32>
      %842 = math.exp %841 : vector<8x32xf32>
      %cst_475 = arith.constant 1.000000e+00 : f32
      %843 = vector.broadcast %cst_475 : f32 to vector<8x32xf32>
      %844 = arith.addf %843, %842 : vector<8x32xf32>
      %845 = arith.divf %843, %844 : vector<8x32xf32>
      %846 = arith.mulf %837, %819 : vector<8x32xf32>
      %847 = arith.mulf %831, %839 : vector<8x32xf32>
      %848 = arith.addf %846, %847 : vector<8x32xf32>
      %849 = math.tanh %848 : vector<8x32xf32>
      %850 = arith.mulf %845, %849 : vector<8x32xf32>
      %c48_476 = arith.constant 48 : index
      %c0_477 = arith.constant 0 : index
      %851 = vector.load %arg8[%c48_476, %c0_477] : memref<64x128xf32, #tpu.memory_space<vmem>>, vector<8x32xf32>
      tpu.vector_store %arg8[%c48_476, %c0_477], %850 {strides = array<i32>} : memref<64x128xf32, #tpu.memory_space<vmem>>, vector<8x32xf32>,
      %c56_478 = arith.constant 56 : index
      %c0_479 = arith.constant 0 : index
      %852 = vector.load %arg9[%c56_478, %c0_479] : memref<64x128xf32, #tpu.memory_space<vmem>>, vector<8x128xf32>
      %cst_480 = arith.constant dense<0.000000e+00> : vector<8x128xf32>
      %853 = tpu.matmul %850, %646, %cst_480 {dimension_numbers = #tpu.dot_dimension_numbers<[1], [0], [0], [1], [0, 0, 1, 1], [], []>} : vector<8x32xf32>, vector<32x128xf32>, vector<8x128xf32> -> vector<8x128xf32>
      %854 = arith.addf %852, %853 : vector<8x128xf32>
      %855 = vector.extract_strided_slice %854 {offsets = [0, 0], sizes = [8, 32], strides = [1, 1]} : vector<8x128xf32> to vector<8x32xf32>
      %856 = arith.negf %855 : vector<8x32xf32>
      %857 = math.exp %856 : vector<8x32xf32>
      %cst_481 = arith.constant 1.000000e+00 : f32
      %858 = vector.broadcast %cst_481 : f32 to vector<8x32xf32>
      %859 = arith.addf %858, %857 : vector<8x32xf32>
      %860 = arith.divf %858, %859 : vector<8x32xf32>
      %861 = vector.extract_strided_slice %854 {offsets = [0, 32], sizes = [8, 32], strides = [1, 1]} : vector<8x128xf32> to vector<8x32xf32>
      %862 = arith.negf %861 : vector<8x32xf32>
      %863 = math.exp %862 : vector<8x32xf32>
      %cst_482 = arith.constant 1.000000e+00 : f32
      %864 = vector.broadcast %cst_482 : f32 to vector<8x32xf32>
      %865 = arith.addf %864, %863 : vector<8x32xf32>
      %866 = arith.divf %864, %865 : vector<8x32xf32>
      %867 = vector.extract_strided_slice %854 {offsets = [0, 64], sizes = [8, 32], strides = [1, 1]} : vector<8x128xf32> to vector<8x32xf32>
      %868 = math.tanh %867 : vector<8x32xf32>
      %869 = vector.extract_strided_slice %854 {offsets = [0, 96], sizes = [8, 32], strides = [1, 1]} : vector<8x128xf32> to vector<8x32xf32>
      %870 = arith.negf %869 : vector<8x32xf32>
      %871 = math.exp %870 : vector<8x32xf32>
      %cst_483 = arith.constant 1.000000e+00 : f32
      %872 = vector.broadcast %cst_483 : f32 to vector<8x32xf32>
      %873 = arith.addf %872, %871 : vector<8x32xf32>
      %874 = arith.divf %872, %873 : vector<8x32xf32>
      %875 = arith.mulf %866, %848 : vector<8x32xf32>
      %876 = arith.mulf %860, %868 : vector<8x32xf32>
      %877 = arith.addf %875, %876 : vector<8x32xf32>
      %878 = math.tanh %877 : vector<8x32xf32>
      %879 = arith.mulf %874, %878 : vector<8x32xf32>
      %c56_484 = arith.constant 56 : index
      %c0_485 = arith.constant 0 : index
      %880 = vector.load %arg8[%c56_484, %c0_485] : memref<64x128xf32, #tpu.memory_space<vmem>>, vector<8x32xf32>
      tpu.vector_store %arg8[%c56_484, %c0_485], %879 {strides = array<i32>} : memref<64x128xf32, #tpu.memory_space<vmem>>, vector<8x32xf32>,
    } else {
    }
    %c0 = arith.constant 0 : index
    %c0_1 = arith.constant 0 : index
    %3 = vector.load %arg8[%c0, %c0_1] : memref<64x128xf32, #tpu.memory_space<vmem>>, vector<64x128xf32>
    %c0_2 = arith.constant 0 : index
    %c0_3 = arith.constant 0 : index
    %4 = vector.load %arg6[%c0_2, %c0_3] : memref<128x128xf32, #tpu.memory_space<vmem>>, vector<128x128xf32>
    %cst = arith.constant dense<0.000000e+00> : vector<64x128xf32>
    %5 = tpu.matmul %3, %4, %cst {dimension_numbers = #tpu.dot_dimension_numbers<[1], [0], [0], [1], [0, 0, 1, 1], [], []>} : vector<64x128xf32>, vector<128x128xf32>, vector<64x128xf32> -> vector<64x128xf32>
    %c0_4 = arith.constant 0 : index
    %c0_5 = arith.constant 0 : index
    %6 = vector.load %arg7[%c0_4, %c0_5] : memref<64x128xf32, #tpu.memory_space<vmem>>, vector<64x128xf32>
    tpu.vector_store %arg7[%c0_4, %c0_5], %5 {strides = array<i32>} : memref<64x128xf32, #tpu.memory_space<vmem>>, vector<64x128xf32>,
    return
  }
  func.func @transform_0(%arg0: i32) -> i32 {
    %c0_i32 = arith.constant 0 : i32
    %c0_i32_0 = arith.constant 0 : i32
    return %c0_i32 : i32
  }
  func.func @transform_1(%arg0: i32) -> (i32, i32) {
    %c0_i32 = arith.constant 0 : i32
    %c0_i32_0 = arith.constant 0 : i32
    %c0_i32_1 = arith.constant 0 : i32
    return %c0_i32, %c0_i32_0 : i32, i32
  }
  func.func @transform_2(%arg0: i32) -> (i32, i32, i32) {
    %c0_i32 = arith.constant 0 : i32
    %c0_i32_0 = arith.constant 0 : i32
    %c0_i32_1 = arith.constant 0 : i32
    %c0_i32_2 = arith.constant 0 : i32
    return %c0_i32, %c0_i32_0, %c0_i32_1 : i32, i32, i32
  }
  func.func @transform_3(%arg0: i32) -> (i32, i32, i32) {
    %c0_i32 = arith.constant 0 : i32
    %c0_i32_0 = arith.constant 0 : i32
    %c0_i32_1 = arith.constant 0 : i32
    %c0_i32_2 = arith.constant 0 : i32
    return %c0_i32, %c0_i32_0, %c0_i32_1 : i32, i32, i32
  }
  func.func @transform_4(%arg0: i32) -> (i32, i32, i32) {
    %c0_i32 = arith.constant 0 : i32
    %c0_i32_0 = arith.constant 0 : i32
    %c0_i32_1 = arith.constant 0 : i32
    %c0_i32_2 = arith.constant 0 : i32
    return %c0_i32, %c0_i32_0, %c0_i32_1 : i32, i32, i32
  }
  func.func @transform_5(%arg0: i32) -> (i32, i32) {
    %c0_i32 = arith.constant 0 : i32
    %c0_i32_0 = arith.constant 0 : i32
    return %c0_i32, %arg0 : i32, i32
  }
  func.func @transform_6(%arg0: i32) -> (i32, i32) {
    %c0_i32 = arith.constant 0 : i32
    %c0_i32_0 = arith.constant 0 : i32
    return %c0_i32, %arg0 : i32, i32
  }
}

</mosaic_0001>

<llo_original>
// kernel: shared_language_model_forward.1
$region0: #{shared_language_model_forward.1}
  #allocation0 [shape = 'u32[]', space=smem, size = 0x4, offset = 0x4, fixed_abs, tag = 'smem constant byte address 0x4 - core index']
  #allocation1 [shape = 'u32[144,128]{1,0:T(1,128)}', space=vmem, size = 0x12000, scoped, tag = 'internal scratch']
  #allocation2 [shape = 'f32[64,128]{1,0:T(8,128)}', space=vmem, size = 0x8000, scoped, tag = 'scratch operand']
  #allocation3 [shape = 'f32[64,128]{1,0:T(8,128)}', space=vmem, size = 0x8000, scoped, tag = 'scratch operand']
  %s0 = inlined_call_operand.vmem [shape: s32[64], index: 0, kind: input, shape index: {}]
  %s1 = inlined_call_operand.hbm [shape: f32[40,128], index: 1, kind: input, shape index: {}]
  %s2 = inlined_call_operand.hbm [shape: f32[2,128,128], index: 2, kind: input, shape index: {}]
  %s3 = inlined_call_operand.hbm [shape: f32[2,32,128], index: 3, kind: input, shape index: {}]
  %s4 = inlined_call_operand.vmem [shape: f32[2,1,128], index: 4, kind: input, shape index: {}]
  %s5 = inlined_call_operand.hbm [shape: f32[128,128], index: 5, kind: input, shape index: {}]
  %s6 = inlined_call_operand.vmem [shape: f32[64,128], index: 6, kind: output, shape index: {}]
  %s7 = sld [smem:[#allocation0]]
  $region58: #{shared_language_model_forward.1} parent=0
    _
  %s9 = ssub.s32 1, %s7
  %s10 = scalar_select 0, %s9, %s7
  $region1: #{shared_language_model_forward.1} parent=0
    #allocation4 [shape = 'u8[512]{0}', space=smem, size = 0x200, scoped, tag = 'input window, operand 0, single buffered']
    #allocation5 [shape = 's32[1]{0}', space=sflag, size = 0x4, scoped, tag = 'scoped memory for shared_language_model_forward.1']
    #allocation6 [shape = 's32[1]{0}', space=sflag, size = 0x4, scoped, tag = 'scoped memory for shared_language_model_forward.1']
    #allocation7 [shape = 'u8[20480]{0}', space=vmem, size = 0x5000, scoped, tag = 'input window, operand 1, single buffered']
    #allocation8 [shape = 'u8[131072]{0}', space=vmem, size = 0x20000, scoped, tag = 'input window, operand 2, single buffered']
    #allocation9 [shape = 's32[1]{0}', space=sflag, size = 0x4, scoped, tag = 'scoped memory for shared_language_model_forward.1']
    #allocation10 [shape = 'u8[32768]{0}', space=vmem, size = 0x8000, scoped, tag = 'input window, operand 3, single buffered']
    #allocation11 [shape = 'u8[65536]{0}', space=vmem, size = 0x10000, scoped, tag = 'input window, operand 5, single buffered']
    #allocation12 [shape = 's32[1]{0}', space=sflag, size = 0x4, scoped, tag = 'scoped memory for shared_language_model_forward.1']
    %11 = vsyncpa [#allocation6], 0
    %12 = vsyncpa [#allocation5], 0
    %13 = vsyncpa [#allocation9], 0
    %14 = vsyncpa [#allocation12], 0
    // Predicated region
    $region2: #{shared_language_model_forward.1} parent=1 // pred_check
      _
    $region3: #{shared_language_model_forward.1} parent=1 // pred_check_branch
      %16 = sbr.rel (0) target = $region5
    $region4: #{shared_language_model_forward.1} parent=1 // pred_region
      %s18 = ssub.s32 16, 16
      %19 = vsyncadd [#allocation6], %s18
      %s21 = sshll.u32 %s0, 4
      %s22 = int_to_ptr.vmem [resolvable:$true] %s21
      %24 = dma.vmem_to_smem %s22, 16, [#allocation4], [#allocation6]
    $region5: #{shared_language_model_forward.1} parent=1 // pred_fallthru
      _
    // Predicated region
    $region6: #{shared_language_model_forward.1} parent=1 // pred_check
      _
    $region7: #{shared_language_model_forward.1} parent=1 // pred_check_branch
      %26 = sbr.rel (0) target = $region9
    $region8: #{shared_language_model_forward.1} parent=1 // pred_region
      %s28 = ssub.s32 640, 640
      %29 = vsyncadd [#allocation5], %s28
      %s30 = sshll.u32 [#allocation7], 4
      %s31 = int_to_ptr.vmem [resolvable:$true] %s30
      %36 = dma.hbm_to_vmem [thread:$0]  %s1, 640, %s31, [#allocation5], 128, 128, 8
    $region9: #{shared_language_model_forward.1} parent=1 // pred_fallthru
      _
    // Predicated region
    $region10: #{shared_language_model_forward.1} parent=1 // pred_check
      _
    $region11: #{shared_language_model_forward.1} parent=1 // pred_check_branch
      %38 = sbr.rel (0) target = $region13
    $region12: #{shared_language_model_forward.1} parent=1 // pred_region
      %s40 = ssub.s32 4096, 4096
      %41 = vsyncadd [#allocation9], %s40
      %s42 = sshll.u32 [#allocation8], 4
      %s43 = int_to_ptr.vmem [resolvable:$true] %s42
      %48 = dma.hbm_to_vmem [thread:$0]  %s2, 4096, %s43, [#allocation9], 128, 128, 8
    $region13: #{shared_language_model_forward.1} parent=1 // pred_fallthru
      _
    // Predicated region
    $region14: #{shared_language_model_forward.1} parent=1 // pred_check
      _
    $region15: #{shared_language_model_forward.1} parent=1 // pred_check_branch
      %50 = sbr.rel (0) target = $region17
    $region16: #{shared_language_model_forward.1} parent=1 // pred_region
      %s52 = ssub.s32 1024, 1024
      %53 = vsyncadd [#allocation9], %s52
      %s54 = sshll.u32 [#allocation10], 4
      %s55 = int_to_ptr.vmem [resolvable:$true] %s54
      %60 = dma.hbm_to_vmem [thread:$0]  %s3, 1024, %s55, [#allocation9], 128, 128, 8
    $region17: #{shared_language_model_forward.1} parent=1 // pred_fallthru
      _
    // Predicated region
    $region18: #{shared_language_model_forward.1} parent=1 // pred_check
      _
    $region19: #{shared_language_model_forward.1} parent=1 // pred_check_branch
      %62 = sbr.rel (0) target = $region21
    $region20: #{shared_language_model_forward.1} parent=1 // pred_region
      _
    $region21: #{shared_language_model_forward.1} parent=1 // pred_fallthru
      _
    // Predicated region
    $region22: #{shared_language_model_forward.1} parent=1 // pred_check
      _
    $region23: #{shared_language_model_forward.1} parent=1 // pred_check_branch
      %64 = sbr.rel (0) target = $region25
    $region24: #{shared_language_model_forward.1} parent=1 // pred_region
      %s66 = ssub.s32 2048, 2048
      %67 = vsyncadd [#allocation12], %s66
      %s68 = sshll.u32 [#allocation11], 4
      %s69 = int_to_ptr.vmem [resolvable:$true] %s68
      %74 = dma.hbm_to_vmem [thread:$0]  %s5, 2048, %s69, [#allocation12], 128, 128, 8
    $region25: #{shared_language_model_forward.1} parent=1 // pred_fallthru
      _
    // Predicated region
    $region26: #{shared_language_model_forward.1} parent=1 // pred_check
      _
    $region27: #{shared_language_model_forward.1} parent=1 // pred_check_branch
      %76 = sbr.rel (0) target = $region29
    $region28: #{shared_language_model_forward.1} parent=1 // pred_region
      %77 = dma.done [#allocation6], 16
    $region29: #{shared_language_model_forward.1} parent=1 // pred_fallthru
      _
    // Predicated region
    $region30: #{shared_language_model_forward.1} parent=1 // pred_check
      _
    $region31: #{shared_language_model_forward.1} parent=1 // pred_check_branch
      %79 = sbr.rel (0) target = $region33
    $region32: #{shared_language_model_forward.1} parent=1 // pred_region
      %80 = dma.done [#allocation5], 640
    $region33: #{shared_language_model_forward.1} parent=1 // pred_fallthru
      _
    // Predicated region
    $region34: #{shared_language_model_forward.1} parent=1 // pred_check
      _
    $region35: #{shared_language_model_forward.1} parent=1 // pred_check_branch
      %82 = sbr.rel (0) target = $region37
    $region36: #{shared_language_model_forward.1} parent=1 // pred_region
      %83 = dma.done [#allocation9], 4096
    $region37: #{shared_language_model_forward.1} parent=1 // pred_fallthru
      _
    // Predicated region
    $region38: #{shared_language_model_forward.1} parent=1 // pred_check
      _
    $region39: #{shared_language_model_forward.1} parent=1 // pred_check_branch
      %85 = sbr.rel (0) target = $region41
    $region40: #{shared_language_model_forward.1} parent=1 // pred_region
      %86 = dma.done [#allocation9], 1024
    $region41: #{shared_language_model_forward.1} parent=1 // pred_fallthru
      _
    // Predicated region
    $region42: #{shared_language_model_forward.1} parent=1 // pred_check
      _
    $region43: #{shared_language_model_forward.1} parent=1 // pred_check_branch
      %88 = sbr.rel (0) target = $region45
    $region44: #{shared_language_model_forward.1} parent=1 // pred_region
      %89 = dma.done [#allocation12], 2048
    $region45: #{shared_language_model_forward.1} parent=1 // pred_fallthru
      _
    %90 = sfence
    %p91 = scmp.eq.s32.totalorder 0, 0
    // Predicated region
    $region46: #{shared_language_model_forward.1} parent=1 // pred_check
      %p92 = pneg %p91
    $region47: #{shared_language_model_forward.1} parent=1 // pred_check_branch
      %94 = sbr.rel (%p92) target = $region49
    $region48: #{shared_language_model_forward.1} parent=1 // pred_region
      %s95 = sld [smem:[#allocation4]]
      %p96 = scmp.gt.s32.totalorder %s95, 0
      %s97 = scalar_select %p96, %s95, 0
      %p98 = scmp.lt.s32.totalorder %s97, 39
      %s99 = scalar_select %p98, %s97, 39
      %s100 = scalar_lea.vmem [#allocation7], %s99
      %v101 = vld [vmem:[%s100] sm:$0x1]
      %102 = vst [vmem:[#allocation2] sm:$0x1] %v101
      %s103 = sld [smem:[#allocation4 + $0x1]]
      %p104 = scmp.gt.s32.totalorder %s103, 0
      %s105 = scalar_select %p104, %s103, 0
      %p106 = scmp.lt.s32.totalorder %s105, 39
      %s107 = scalar_select %p106, %s105, 39
      %s108 = scalar_lea.vmem [#allocation7], %s107
      %v109 = vld [vmem:[%s108] sm:$0x1]
      %110 = vst [vmem:[#allocation2 + $0x1] sm:$0x1] %v109
      %s111 = sld [smem:[#allocation4 + $0x2]]
      %p112 = scmp.gt.s32.totalorder %s111, 0
      %s113 = scalar_select %p112, %s111, 0
      %p114 = scmp.lt.s32.totalorder %s113, 39
      %s115 = scalar_select %p114, %s113, 39
      %s116 = scalar_lea.vmem [#allocation7], %s115
      %v117 = vld [vmem:[%s116] sm:$0x1]
      %118 = vst [vmem:[#allocation2 + $0x2] sm:$0x1] %v117
      %s119 = sld [smem:[#allocation4 + $0x3]]
      %p120 = scmp.gt.s32.totalorder %s119, 0
      %s121 = scalar_select %p120, %s119, 0
      %p122 = scmp.lt.s32.totalorder %s121, 39
      %s123 = scalar_select %p122, %s121, 39
      %s124 = scalar_lea.vmem [#allocation7], %s123
      %v125 = vld [vmem:[%s124] sm:$0x1]
      %126 = vst [vmem:[#allocation2 + $0x3] sm:$0x1] %v125
      %s127 = sld [smem:[#allocation4 + $0x4]]
      %p128 = scmp.gt.s32.totalorder %s127, 0
      %s129 = scalar_select %p128, %s127, 0
      %p130 = scmp.lt.s32.totalorder %s129, 39
      %s131 = scalar_select %p130, %s129, 39
      %s132 = scalar_lea.vmem [#allocation7], %s131
      %v133 = vld [vmem:[%s132] sm:$0x1]
      %134 = vst [vmem:[#allocation2 + $0x4] sm:$0x1] %v133
      %s135 = sld [smem:[#allocation4 + $0x5]]
      %p136 = scmp.gt.s32.totalorder %s135, 0
      %s137 = scalar_select %p136, %s135, 0
      %p138 = scmp.lt.s32.totalorder %s137, 39
      %s139 = scalar_select %p138, %s137, 39
      %s140 = scalar_lea.vmem [#allocation7], %s139
      %v141 = vld [vmem:[%s140] sm:$0x1]
      %142 = vst [vmem:[#allocation2 + $0x5] sm:$0x1] %v141
      %s143 = sld [smem:[#allocation4 + $0x6]]
      %p144 = scmp.gt.s32.totalorder %s143, 0
      %s145 = scalar_select %p144, %s143, 0
      %p146 = scmp.lt.s32.totalorder %s145, 39
      %s147 = scalar_select %p146, %s145, 39
      %s148 = scalar_lea.vmem [#allocation7], %s147
      %v149 = vld [vmem:[%s148] sm:$0x1]
      %150 = vst [vmem:[#allocation2 + $0x6] sm:$0x1] %v149
      %s151 = sld [smem:[#allocation4 + $0x7]]
      %p152 = scmp.gt.s32.totalorder %s151, 0
      %s153 = scalar_select %p152, %s151, 0
      %p154 = scmp.lt.s32.totalorder %s153, 39
      %s155 = scalar_select %p154, %s153, 39
      %s156 = scalar_lea.vmem [#allocation7], %s155
      %v157 = vld [vmem:[%s156] sm:$0x1]
      %158 = vst [vmem:[#allocation2 + $0x7] sm:$0x1] %v157
      %s159 = sld [smem:[#allocation4 + $0x8]]
      %p160 = scmp.gt.s32.totalorder %s159, 0
      %s161 = scalar_select %p160, %s159, 0
      %p162 = scmp.lt.s32.totalorder %s161, 39
      %s163 = scalar_select %p162, %s161, 39
      %s164 = scalar_lea.vmem [#allocation7], %s163
      %v165 = vld [vmem:[%s164] sm:$0x1]
      %166 = vst [vmem:[#allocation2 + $0x8] sm:$0x1] %v165
      %s167 = sld [smem:[#allocation4 + $0x9]]
      %p168 = scmp.gt.s32.totalorder %s167, 0
      %s169 = scalar_select %p168, %s167, 0
      %p170 = scmp.lt.s32.totalorder %s169, 39
      %s171 = scalar_select %p170, %s169, 39
      %s172 = scalar_lea.vmem [#allocation7], %s171
      %v173 = vld [vmem:[%s172] sm:$0x1]
      %174 = vst [vmem:[#allocation2 + $0x9] sm:$0x1] %v173
      %s175 = sld [smem:[#allocation4 + $0xa]]
      %p176 = scmp.gt.s32.totalorder %s175, 0
      %s177 = scalar_select %p176, %s175, 0
      %p178 = scmp.lt.s32.totalorder %s177, 39
      %s179 = scalar_select %p178, %s177, 39
      %s180 = scalar_lea.vmem [#allocation7], %s179
      %v181 = vld [vmem:[%s180] sm:$0x1]
      %182 = vst [vmem:[#allocation2 + $0xa] sm:$0x1] %v181
      %s183 = sld [smem:[#allocation4 + $0xb]]
      %p184 = scmp.gt.s32.totalorder %s183, 0
      %s185 = scalar_select %p184, %s183, 0
      %p186 = scmp.lt.s32.totalorder %s185, 39
      %s187 = scalar_select %p186, %s185, 39
      %s188 = scalar_lea.vmem [#allocation7], %s187
      %v189 = vld [vmem:[%s188] sm:$0x1]
      %190 = vst [vmem:[#allocation2 + $0xb] sm:$0x1] %v189
      %s191 = sld [smem:[#allocation4 + $0xc]]
      %p192 = scmp.gt.s32.totalorder %s191, 0
      %s193 = scalar_select %p192, %s191, 0
      %p194 = scmp.lt.s32.totalorder %s193, 39
      %s195 = scalar_select %p194, %s193, 39
      %s196 = scalar_lea.vmem [#allocation7], %s195
      %v197 = vld [vmem:[%s196] sm:$0x1]
      %198 = vst [vmem:[#allocation2 + $0xc] sm:$0x1] %v197
      %s199 = sld [smem:[#allocation4 + $0xd]]
      %p200 = scmp.gt.s32.totalorder %s199, 0
      %s201 = scalar_select %p200, %s199, 0
      %p202 = scmp.lt.s32.totalorder %s201, 39
      %s203 = scalar_select %p202, %s201, 39
      %s204 = scalar_lea.vmem [#allocation7], %s203
      %v205 = vld [vmem:[%s204] sm:$0x1]
      %206 = vst [vmem:[#allocation2 + $0xd] sm:$0x1] %v205
      %s207 = sld [smem:[#allocation4 + $0xe]]
      %p208 = scmp.gt.s32.totalorder %s207, 0
      %s209 = scalar_select %p208, %s207, 0
      %p210 = scmp.lt.s32.totalorder %s209, 39
      %s211 = scalar_select %p210, %s209, 39
      %s212 = scalar_lea.vmem [#allocation7], %s211
      %v213 = vld [vmem:[%s212] sm:$0x1]
      %214 = vst [vmem:[#allocation2 + $0xe] sm:$0x1] %v213
      %s215 = sld [smem:[#allocation4 + $0xf]]
      %p216 = scmp.gt.s32.totalorder %s215, 0
      %s217 = scalar_select %p216, %s215, 0
      %p218 = scmp.lt.s32.totalorder %s217, 39
      %s219 = scalar_select %p218, %s217, 39
      %s220 = scalar_lea.vmem [#allocation7], %s219
      %v221 = vld [vmem:[%s220] sm:$0x1]
      %222 = vst [vmem:[#allocation2 + $0xf] sm:$0x1] %v221
      %s223 = sld [smem:[#allocation4 + $0x10]]
      %p224 = scmp.gt.s32.totalorder %s223, 0
      %s225 = scalar_select %p224, %s223, 0
      %p226 = scmp.lt.s32.totalorder %s225, 39
      %s227 = scalar_select %p226, %s225, 39
      %s228 = scalar_lea.vmem [#allocation7], %s227
      %v229 = vld [vmem:[%s228] sm:$0x1]
      %230 = vst [vmem:[#allocation2 + $0x10] sm:$0x1] %v229
      %s231 = sld [smem:[#allocation4 + $0x11]]
      %p232 = scmp.gt.s32.totalorder %s231, 0
      %s233 = scalar_select %p232, %s231, 0
      %p234 = scmp.lt.s32.totalorder %s233, 39
      %s235 = scalar_select %p234, %s233, 39
      %s236 = scalar_lea.vmem [#allocation7], %s235
      %v237 = vld [vmem:[%s236] sm:$0x1]
      %238 = vst [vmem:[#allocation2 + $0x11] sm:$0x1] %v237
      %s239 = sld [smem:[#allocation4 + $0x12]]
      %p240 = scmp.gt.s32.totalorder %s239, 0
      %s241 = scalar_select %p240, %s239, 0
      %p242 = scmp.lt.s32.totalorder %s241, 39
      %s243 = scalar_select %p242, %s241, 39
      %s244 = scalar_lea.vmem [#allocation7], %s243
      %v245 = vld [vmem:[%s244] sm:$0x1]
      %246 = vst [vmem:[#allocation2 + $0x12] sm:$0x1] %v245
      %s247 = sld [smem:[#allocation4 + $0x13]]
      %p248 = scmp.gt.s32.totalorder %s247, 0
      %s249 = scalar_select %p248, %s247, 0
      %p250 = scmp.lt.s32.totalorder %s249, 39
      %s251 = scalar_select %p250, %s249, 39
      %s252 = scalar_lea.vmem [#allocation7], %s251
      %v253 = vld [vmem:[%s252] sm:$0x1]
      %254 = vst [vmem:[#allocation2 + $0x13] sm:$0x1] %v253
      %s255 = sld [smem:[#allocation4 + $0x14]]
      %p256 = scmp.gt.s32.totalorder %s255, 0
      %s257 = scalar_select %p256, %s255, 0
      %p258 = scmp.lt.s32.totalorder %s257, 39
      %s259 = scalar_select %p258, %s257, 39
      %s260 = scalar_lea.vmem [#allocation7], %s259
      %v261 = vld [vmem:[%s260] sm:$0x1]
      %262 = vst [vmem:[#allocation2 + $0x14] sm:$0x1] %v261
      %s263 = sld [smem:[#allocation4 + $0x15]]
      %p264 = scmp.gt.s32.totalorder %s263, 0
      %s265 = scalar_select %p264, %s263, 0
      %p266 = scmp.lt.s32.totalorder %s265, 39
      %s267 = scalar_select %p266, %s265, 39
      %s268 = scalar_lea.vmem [#allocation7], %s267
      %v269 = vld [vmem:[%s268] sm:$0x1]
      %270 = vst [vmem:[#allocation2 + $0x15] sm:$0x1] %v269
      %s271 = sld [smem:[#allocation4 + $0x16]]
      %p272 = scmp.gt.s32.totalorder %s271, 0
      %s273 = scalar_select %p272, %s271, 0
      %p274 = scmp.lt.s32.totalorder %s273, 39
      %s275 = scalar_select %p274, %s273, 39
      %s276 = scalar_lea.vmem [#allocation7], %s275
      %v277 = vld [vmem:[%s276] sm:$0x1]
      %278 = vst [vmem:[#allocation2 + $0x16] sm:$0x1] %v277
      %s279 = sld [smem:[#allocation4 + $0x17]]
      %p280 = scmp.gt.s32.totalorder %s279, 0
      %s281 = scalar_select %p280, %s279, 0
      %p282 = scmp.lt.s32.totalorder %s281, 39
      %s283 = scalar_select %p282, %s281, 39
      %s284 = scalar_lea.vmem [#allocation7], %s283
      %v285 = vld [vmem:[%s284] sm:$0x1]
      %286 = vst [vmem:[#allocation2 + $0x17] sm:$0x1] %v285
      %s287 = sld [smem:[#allocation4 + $0x18]]
      %p288 = scmp.gt.s32.totalorder %s287, 0
      %s289 = scalar_select %p288, %s287, 0
      %p290 = scmp.lt.s32.totalorder %s289, 39
      %s291 = scalar_select %p290, %s289, 39
      %s292 = scalar_lea.vmem [#allocation7], %s291
      %v293 = vld [vmem:[%s292] sm:$0x1]
      %294 = vst [vmem:[#allocation2 + $0x18] sm:$0x1] %v293
      %s295 = sld [smem:[#allocation4 + $0x19]]
      %p296 = scmp.gt.s32.totalorder %s295, 0
      %s297 = scalar_select %p296, %s295, 0
      %p298 = scmp.lt.s32.totalorder %s297, 39
      %s299 = scalar_select %p298, %s297, 39
      %s300 = scalar_lea.vmem [#allocation7], %s299
      %v301 = vld [vmem:[%s300] sm:$0x1]
      %302 = vst [vmem:[#allocation2 + $0x19] sm:$0x1] %v301
      %s303 = sld [smem:[#allocation4 + $0x1a]]
      %p304 = scmp.gt.s32.totalorder %s303, 0
      %s305 = scalar_select %p304, %s303, 0
      %p306 = scmp.lt.s32.totalorder %s305, 39
      %s307 = scalar_select %p306, %s305, 39
      %s308 = scalar_lea.vmem [#allocation7], %s307
      %v309 = vld [vmem:[%s308] sm:$0x1]
      %310 = vst [vmem:[#allocation2 + $0x1a] sm:$0x1] %v309
      %s311 = sld [smem:[#allocation4 + $0x1b]]
      %p312 = scmp.gt.s32.totalorder %s311, 0
      %s313 = scalar_select %p312, %s311, 0
      %p314 = scmp.lt.s32.totalorder %s313, 39
      %s315 = scalar_select %p314, %s313, 39
      %s316 = scalar_lea.vmem [#allocation7], %s315
      %v317 = vld [vmem:[%s316] sm:$0x1]
      %318 = vst [vmem:[#allocation2 + $0x1b] sm:$0x1] %v317
      %s319 = sld [smem:[#allocation4 + $0x1c]]
      %p320 = scmp.gt.s32.totalorder %s319, 0
      %s321 = scalar_select %p320, %s319, 0
      %p322 = scmp.lt.s32.totalorder %s321, 39
      %s323 = scalar_select %p322, %s321, 39
      %s324 = scalar_lea.vmem [#allocation7], %s323
      %v325 = vld [vmem:[%s324] sm:$0x1]
      %326 = vst [vmem:[#allocation2 + $0x1c] sm:$0x1] %v325
      %s327 = sld [smem:[#allocation4 + $0x1d]]
      %p328 = scmp.gt.s32.totalorder %s327, 0
      %s329 = scalar_select %p328, %s327, 0
      %p330 = scmp.lt.s32.totalorder %s329, 39
      %s331 = scalar_select %p330, %s329, 39
      %s332 = scalar_lea.vmem [#allocation7], %s331
      %v333 = vld [vmem:[%s332] sm:$0x1]
      %334 = vst [vmem:[#allocation2 + $0x1d] sm:$0x1] %v333
      %s335 = sld [smem:[#allocation4 + $0x1e]]
      %p336 = scmp.gt.s32.totalorder %s335, 0
      %s337 = scalar_select %p336, %s335, 0
      %p338 = scmp.lt.s32.totalorder %s337, 39
      %s339 = scalar_select %p338, %s337, 39
      %s340 = scalar_lea.vmem [#allocation7], %s339
      %v341 = vld [vmem:[%s340] sm:$0x1]
      %342 = vst [vmem:[#allocation2 + $0x1e] sm:$0x1] %v341
      %s343 = sld [smem:[#allocation4 + $0x1f]]
      %p344 = scmp.gt.s32.totalorder %s343, 0
      %s345 = scalar_select %p344, %s343, 0
      %p346 = scmp.lt.s32.totalorder %s345, 39
      %s347 = scalar_select %p346, %s345, 39
      %s348 = scalar_lea.vmem [#allocation7], %s347
      %v349 = vld [vmem:[%s348] sm:$0x1]
      %350 = vst [vmem:[#allocation2 + $0x1f] sm:$0x1] %v349
      %s351 = sld [smem:[#allocation4 + $0x20]]
      %p352 = scmp.gt.s32.totalorder %s351, 0
      %s353 = scalar_select %p352, %s351, 0
      %p354 = scmp.lt.s32.totalorder %s353, 39
      %s355 = scalar_select %p354, %s353, 39
      %s356 = scalar_lea.vmem [#allocation7], %s355
      %v357 = vld [vmem:[%s356] sm:$0x1]
      %358 = vst [vmem:[#allocation2 + $0x20] sm:$0x1] %v357
      %s359 = sld [smem:[#allocation4 + $0x21]]
      %p360 = scmp.gt.s32.totalorder %s359, 0
      %s361 = scalar_select %p360, %s359, 0
      %p362 = scmp.lt.s32.totalorder %s361, 39
      %s363 = scalar_select %p362, %s361, 39
      %s364 = scalar_lea.vmem [#allocation7], %s363
      %v365 = vld [vmem:[%s364] sm:$0x1]
      %366 = vst [vmem:[#allocation2 + $0x21] sm:$0x1] %v365
      %s367 = sld [smem:[#allocation4 + $0x22]]
      %p368 = scmp.gt.s32.totalorder %s367, 0
      %s369 = scalar_select %p368, %s367, 0
      %p370 = scmp.lt.s32.totalorder %s369, 39
      %s371 = scalar_select %p370, %s369, 39
      %s372 = scalar_lea.vmem [#allocation7], %s371
      %v373 = vld [vmem:[%s372] sm:$0x1]
      %374 = vst [vmem:[#allocation2 + $0x22] sm:$0x1] %v373
      %s375 = sld [smem:[#allocation4 + $0x23]]
      %p376 = scmp.gt.s32.totalorder %s375, 0
      %s377 = scalar_select %p376, %s375, 0
      %p378 = scmp.lt.s32.totalorder %s377, 39
      %s379 = scalar_select %p378, %s377, 39
      %s380 = scalar_lea.vmem [#allocation7], %s379
      %v381 = vld [vmem:[%s380] sm:$0x1]
      %382 = vst [vmem:[#allocation2 + $0x23] sm:$0x1] %v381
      %s383 = sld [smem:[#allocation4 + $0x24]]
      %p384 = scmp.gt.s32.totalorder %s383, 0
      %s385 = scalar_select %p384, %s383, 0
      %p386 = scmp.lt.s32.totalorder %s385, 39
      %s387 = scalar_select %p386, %s385, 39
      %s388 = scalar_lea.vmem [#allocation7], %s387
      %v389 = vld [vmem:[%s388] sm:$0x1]
      %390 = vst [vmem:[#allocation2 + $0x24] sm:$0x1] %v389
      %s391 = sld [smem:[#allocation4 + $0x25]]
      %p392 = scmp.gt.s32.totalorder %s391, 0
      %s393 = scalar_select %p392, %s391, 0
      %p394 = scmp.lt.s32.totalorder %s393, 39
      %s395 = scalar_select %p394, %s393, 39
      %s396 = scalar_lea.vmem [#allocation7], %s395
      %v397 = vld [vmem:[%s396] sm:$0x1]
      %398 = vst [vmem:[#allocation2 + $0x25] sm:$0x1] %v397
      %s399 = sld [smem:[#allocation4 + $0x26]]
      %p400 = scmp.gt.s32.totalorder %s399, 0
      %s401 = scalar_select %p400, %s399, 0
      %p402 = scmp.lt.s32.totalorder %s401, 39
      %s403 = scalar_select %p402, %s401, 39
      %s404 = scalar_lea.vmem [#allocation7], %s403
      %v405 = vld [vmem:[%s404] sm:$0x1]
      %406 = vst [vmem:[#allocation2 + $0x26] sm:$0x1] %v405
      %s407 = sld [smem:[#allocation4 + $0x27]]
      %p408 = scmp.gt.s32.totalorder %s407, 0
      %s409 = scalar_select %p408, %s407, 0
      %p410 = scmp.lt.s32.totalorder %s409, 39
      %s411 = scalar_select %p410, %s409, 39
      %s412 = scalar_lea.vmem [#allocation7], %s411
      %v413 = vld [vmem:[%s412] sm:$0x1]
      %414 = vst [vmem:[#allocation2 + $0x27] sm:$0x1] %v413
      %s415 = sld [smem:[#allocation4 + $0x28]]
      %p416 = scmp.gt.s32.totalorder %s415, 0
      %s417 = scalar_select %p416, %s415, 0
      %p418 = scmp.lt.s32.totalorder %s417, 39
      %s419 = scalar_select %p418, %s417, 39
      %s420 = scalar_lea.vmem [#allocation7], %s419
      %v421 = vld [vmem:[%s420] sm:$0x1]
      %422 = vst [vmem:[#allocation2 + $0x28] sm:$0x1] %v421
      %s423 = sld [smem:[#allocation4 + $0x29]]
      %p424 = scmp.gt.s32.totalorder %s423, 0
      %s425 = scalar_select %p424, %s423, 0
      %p426 = scmp.lt.s32.totalorder %s425, 39
      %s427 = scalar_select %p426, %s425, 39
      %s428 = scalar_lea.vmem [#allocation7], %s427
      %v429 = vld [vmem:[%s428] sm:$0x1]
      %430 = vst [vmem:[#allocation2 + $0x29] sm:$0x1] %v429
      %s431 = sld [smem:[#allocation4 + $0x2a]]
      %p432 = scmp.gt.s32.totalorder %s431, 0
      %s433 = scalar_select %p432, %s431, 0
      %p434 = scmp.lt.s32.totalorder %s433, 39
      %s435 = scalar_select %p434, %s433, 39
      %s436 = scalar_lea.vmem [#allocation7], %s435
      %v437 = vld [vmem:[%s436] sm:$0x1]
      %438 = vst [vmem:[#allocation2 + $0x2a] sm:$0x1] %v437
      %s439 = sld [smem:[#allocation4 + $0x2b]]
      %p440 = scmp.gt.s32.totalorder %s439, 0
      %s441 = scalar_select %p440, %s439, 0
      %p442 = scmp.lt.s32.totalorder %s441, 39
      %s443 = scalar_select %p442, %s441, 39
      %s444 = scalar_lea.vmem [#allocation7], %s443
      %v445 = vld [vmem:[%s444] sm:$0x1]
      %446 = vst [vmem:[#allocation2 + $0x2b] sm:$0x1] %v445
      %s447 = sld [smem:[#allocation4 + $0x2c]]
      %p448 = scmp.gt.s32.totalorder %s447, 0
      %s449 = scalar_select %p448, %s447, 0
      %p450 = scmp.lt.s32.totalorder %s449, 39
      %s451 = scalar_select %p450, %s449, 39
      %s452 = scalar_lea.vmem [#allocation7], %s451
      %v453 = vld [vmem:[%s452] sm:$0x1]
      %454 = vst [vmem:[#allocation2 + $0x2c] sm:$0x1] %v453
      %s455 = sld [smem:[#allocation4 + $0x2d]]
      %p456 = scmp.gt.s32.totalorder %s455, 0
      %s457 = scalar_select %p456, %s455, 0
      %p458 = scmp.lt.s32.totalorder %s457, 39
      %s459 = scalar_select %p458, %s457, 39
      %s460 = scalar_lea.vmem [#allocation7], %s459
      %v461 = vld [vmem:[%s460] sm:$0x1]
      %462 = vst [vmem:[#allocation2 + $0x2d] sm:$0x1] %v461
      %s463 = sld [smem:[#allocation4 + $0x2e]]
      %p464 = scmp.gt.s32.totalorder %s463, 0
      %s465 = scalar_select %p464, %s463, 0
      %p466 = scmp.lt.s32.totalorder %s465, 39
      %s467 = scalar_select %p466, %s465, 39
      %s468 = scalar_lea.vmem [#allocation7], %s467
      %v469 = vld [vmem:[%s468] sm:$0x1]
      %470 = vst [vmem:[#allocation2 + $0x2e] sm:$0x1] %v469
      %s471 = sld [smem:[#allocation4 + $0x2f]]
      %p472 = scmp.gt.s32.totalorder %s471, 0
      %s473 = scalar_select %p472, %s471, 0
      %p474 = scmp.lt.s32.totalorder %s473, 39
      %s475 = scalar_select %p474, %s473, 39
      %s476 = scalar_lea.vmem [#allocation7], %s475
      %v477 = vld [vmem:[%s476] sm:$0x1]
      %478 = vst [vmem:[#allocation2 + $0x2f] sm:$0x1] %v477
      %s479 = sld [smem:[#allocation4 + $0x30]]
      %p480 = scmp.gt.s32.totalorder %s479, 0
      %s481 = scalar_select %p480, %s479, 0
      %p482 = scmp.lt.s32.totalorder %s481, 39
      %s483 = scalar_select %p482, %s481, 39
      %s484 = scalar_lea.vmem [#allocation7], %s483
      %v485 = vld [vmem:[%s484] sm:$0x1]
      %486 = vst [vmem:[#allocation2 + $0x30] sm:$0x1] %v485
      %s487 = sld [smem:[#allocation4 + $0x31]]
      %p488 = scmp.gt.s32.totalorder %s487, 0
      %s489 = scalar_select %p488, %s487, 0
      %p490 = scmp.lt.s32.totalorder %s489, 39
      %s491 = scalar_select %p490, %s489, 39
      %s492 = scalar_lea.vmem [#allocation7], %s491
      %v493 = vld [vmem:[%s492] sm:$0x1]
      %494 = vst [vmem:[#allocation2 + $0x31] sm:$0x1] %v493
      %s495 = sld [smem:[#allocation4 + $0x32]]
      %p496 = scmp.gt.s32.totalorder %s495, 0
      %s497 = scalar_select %p496, %s495, 0
      %p498 = scmp.lt.s32.totalorder %s497, 39
      %s499 = scalar_select %p498, %s497, 39
      %s500 = scalar_lea.vmem [#allocation7], %s499
      %v501 = vld [vmem:[%s500] sm:$0x1]
      %502 = vst [vmem:[#allocation2 + $0x32] sm:$0x1] %v501
      %s503 = sld [smem:[#allocation4 + $0x33]]
      %p504 = scmp.gt.s32.totalorder %s503, 0
      %s505 = scalar_select %p504, %s503, 0
      %p506 = scmp.lt.s32.totalorder %s505, 39
      %s507 = scalar_select %p506, %s505, 39
      %s508 = scalar_lea.vmem [#allocation7], %s507
      %v509 = vld [vmem:[%s508] sm:$0x1]
      %510 = vst [vmem:[#allocation2 + $0x33] sm:$0x1] %v509
      %s511 = sld [smem:[#allocation4 + $0x34]]
      %p512 = scmp.gt.s32.totalorder %s511, 0
      %s513 = scalar_select %p512, %s511, 0
      %p514 = scmp.lt.s32.totalorder %s513, 39
      %s515 = scalar_select %p514, %s513, 39
      %s516 = scalar_lea.vmem [#allocation7], %s515
      %v517 = vld [vmem:[%s516] sm:$0x1]
      %518 = vst [vmem:[#allocation2 + $0x34] sm:$0x1] %v517
      %s519 = sld [smem:[#allocation4 + $0x35]]
      %p520 = scmp.gt.s32.totalorder %s519, 0
      %s521 = scalar_select %p520, %s519, 0
      %p522 = scmp.lt.s32.totalorder %s521, 39
      %s523 = scalar_select %p522, %s521, 39
      %s524 = scalar_lea.vmem [#allocation7], %s523
      %v525 = vld [vmem:[%s524] sm:$0x1]
      %526 = vst [vmem:[#allocation2 + $0x35] sm:$0x1] %v525
      %s527 = sld [smem:[#allocation4 + $0x36]]
      %p528 = scmp.gt.s32.totalorder %s527, 0
      %s529 = scalar_select %p528, %s527, 0
      %p530 = scmp.lt.s32.totalorder %s529, 39
      %s531 = scalar_select %p530, %s529, 39
      %s532 = scalar_lea.vmem [#allocation7], %s531
      %v533 = vld [vmem:[%s532] sm:$0x1]
      %534 = vst [vmem:[#allocation2 + $0x36] sm:$0x1] %v533
      %s535 = sld [smem:[#allocation4 + $0x37]]
      %p536 = scmp.gt.s32.totalorder %s535, 0
      %s537 = scalar_select %p536, %s535, 0
      %p538 = scmp.lt.s32.totalorder %s537, 39
      %s539 = scalar_select %p538, %s537, 39
      %s540 = scalar_lea.vmem [#allocation7], %s539
      %v541 = vld [vmem:[%s540] sm:$0x1]
      %542 = vst [vmem:[#allocation2 + $0x37] sm:$0x1] %v541
      %s543 = sld [smem:[#allocation4 + $0x38]]
      %p544 = scmp.gt.s32.totalorder %s543, 0
      %s545 = scalar_select %p544, %s543, 0
      %p546 = scmp.lt.s32.totalorder %s545, 39
      %s547 = scalar_select %p546, %s545, 39
      %s548 = scalar_lea.vmem [#allocation7], %s547
      %v549 = vld [vmem:[%s548] sm:$0x1]
      %550 = vst [vmem:[#allocation2 + $0x38] sm:$0x1] %v549
      %s551 = sld [smem:[#allocation4 + $0x39]]
      %p552 = scmp.gt.s32.totalorder %s551, 0
      %s553 = scalar_select %p552, %s551, 0
      %p554 = scmp.lt.s32.totalorder %s553, 39
      %s555 = scalar_select %p554, %s553, 39
      %s556 = scalar_lea.vmem [#allocation7], %s555
      %v557 = vld [vmem:[%s556] sm:$0x1]
      %558 = vst [vmem:[#allocation2 + $0x39] sm:$0x1] %v557
      %s559 = sld [smem:[#allocation4 + $0x3a]]
      %p560 = scmp.gt.s32.totalorder %s559, 0
      %s561 = scalar_select %p560, %s559, 0
      %p562 = scmp.lt.s32.totalorder %s561, 39
      %s563 = scalar_select %p562, %s561, 39
      %s564 = scalar_lea.vmem [#allocation7], %s563
      %v565 = vld [vmem:[%s564] sm:$0x1]
      %566 = vst [vmem:[#allocation2 + $0x3a] sm:$0x1] %v565
      %s567 = sld [smem:[#allocation4 + $0x3b]]
      %p568 = scmp.gt.s32.totalorder %s567, 0
      %s569 = scalar_select %p568, %s567, 0
      %p570 = scmp.lt.s32.totalorder %s569, 39
      %s571 = scalar_select %p570, %s569, 39
      %s572 = scalar_lea.vmem [#allocation7], %s571
      %v573 = vld [vmem:[%s572] sm:$0x1]
      %574 = vst [vmem:[#allocation2 + $0x3b] sm:$0x1] %v573
      %s575 = sld [smem:[#allocation4 + $0x3c]]
      %p576 = scmp.gt.s32.totalorder %s575, 0
      %s577 = scalar_select %p576, %s575, 0
      %p578 = scmp.lt.s32.totalorder %s577, 39
      %s579 = scalar_select %p578, %s577, 39
      %s580 = scalar_lea.vmem [#allocation7], %s579
      %v581 = vld [vmem:[%s580] sm:$0x1]
      %582 = vst [vmem:[#allocation2 + $0x3c] sm:$0x1] %v581
      %s583 = sld [smem:[#allocation4 + $0x3d]]
      %p584 = scmp.gt.s32.totalorder %s583, 0
      %s585 = scalar_select %p584, %s583, 0
      %p586 = scmp.lt.s32.totalorder %s585, 39
      %s587 = scalar_select %p586, %s585, 39
      %s588 = scalar_lea.vmem [#allocation7], %s587
      %v589 = vld [vmem:[%s588] sm:$0x1]
      %590 = vst [vmem:[#allocation2 + $0x3d] sm:$0x1] %v589
      %s591 = sld [smem:[#allocation4 + $0x3e]]
      %p592 = scmp.gt.s32.totalorder %s591, 0
      %s593 = scalar_select %p592, %s591, 0
      %p594 = scmp.lt.s32.totalorder %s593, 39
      %s595 = scalar_select %p594, %s593, 39
      %s596 = scalar_lea.vmem [#allocation7], %s595
      %v597 = vld [vmem:[%s596] sm:$0x1]
      %598 = vst [vmem:[#allocation2 + $0x3e] sm:$0x1] %v597
      %s599 = sld [smem:[#allocation4 + $0x3f]]
      %p600 = scmp.gt.s32.totalorder %s599, 0
      %s601 = scalar_select %p600, %s599, 0
      %p602 = scmp.lt.s32.totalorder %s601, 39
      %s603 = scalar_select %p602, %s601, 39
      %s604 = scalar_lea.vmem [#allocation7], %s603
      %v605 = vld [vmem:[%s604] sm:$0x1]
      %606 = vst [vmem:[#allocation2 + $0x3f] sm:$0x1] %v605
      %v607 = vld [vmem:[#allocation2] sm:$0xff]
      %v608 = vld [vmem:[#allocation2 + $0x8] sm:$0xff]
      %v609 = vld [vmem:[#allocation2 + $0x10] sm:$0xff]
      %v610 = vld [vmem:[#allocation2 + $0x18] sm:$0xff]
      %v611 = vld [vmem:[#allocation2 + $0x20] sm:$0xff]
      %v612 = vld [vmem:[#allocation2 + $0x28] sm:$0xff]
      %v613 = vld [vmem:[#allocation2 + $0x30] sm:$0xff]
      %v614 = vld [vmem:[#allocation2 + $0x38] sm:$0xff]
      %v615 = vld [vmem:[#allocation8] sm:$0xff]
      %v616 = vld [vmem:[#allocation8 + $0x8] sm:$0xff]
      %v617 = vld [vmem:[#allocation8 + $0x10] sm:$0xff]
      %v618 = vld [vmem:[#allocation8 + $0x18] sm:$0xff]
      %v619 = vld [vmem:[#allocation8 + $0x20] sm:$0xff]
      %v620 = vld [vmem:[#allocation8 + $0x28] sm:$0xff]
      %v621 = vld [vmem:[#allocation8 + $0x30] sm:$0xff]
      %v622 = vld [vmem:[#allocation8 + $0x38] sm:$0xff]
      %v623 = vld [vmem:[#allocation8 + $0x40] sm:$0xff]
      %v624 = vld [vmem:[#allocation8 + $0x48] sm:$0xff]
      %v625 = vld [vmem:[#allocation8 + $0x50] sm:$0xff]
      %v626 = vld [vmem:[#allocation8 + $0x58] sm:$0xff]
      %v627 = vld [vmem:[#allocation8 + $0x60] sm:$0xff]
      %v628 = vld [vmem:[#allocation8 + $0x68] sm:$0xff]
      %v629 = vld [vmem:[#allocation8 + $0x70] sm:$0xff]
      %v630 = vld [vmem:[#allocation8 + $0x78] sm:$0xff]
      %v631 = vld [vmem:[%s4] sm:$0x1]
      %v633 = vlaneseq
      %v634 = vshrl.u32 %v633, 7
      %v635 = vsub.s32 0, %v634
      %v636 = vrot.slane %v631, %v635
      %638 = vmatprep.subr.mxu0 0.0
      %639 = vmatpush1.msra.mxu0 %v630
      %640 = vmatprep.subr.mxu0 0.0
      %641 = vmatpush1.msra.mxu0 %v629
      %642 = vmatprep.subr.mxu0 0.0
      %643 = vmatpush1.msra.mxu0 %v628
      %644 = vmatprep.subr.mxu0 0.0
      %645 = vmatpush1.msra.mxu0 %v627
      %646 = vmatprep.subr.mxu0 0.0
      %647 = vmatpush1.msra.mxu0 %v626
      %648 = vmatprep.subr.mxu0 0.0
      %649 = vmatpush1.msra.mxu0 %v625
      %650 = vmatprep.subr.mxu0 0.0
      %651 = vmatpush1.msra.mxu0 %v624
      %652 = vmatprep.subr.mxu0 0.0
      %653 = vmatpush1.msra.mxu0 %v623
      %654 = vmatprep.subr.mxu0 0.0
      %655 = vmatpush1.msra.mxu0 %v622
      %656 = vmatprep.subr.mxu0 0.0
      %657 = vmatpush1.msra.mxu0 %v621
      %658 = vmatprep.subr.mxu0 0.0
      %659 = vmatpush1.msra.mxu0 %v620
      %660 = vmatprep.subr.mxu0 0.0
      %661 = vmatpush1.msra.mxu0 %v619
      %662 = vmatprep.subr.mxu0 0.0
      %663 = vmatpush1.msra.mxu0 %v618
      %664 = vmatprep.subr.mxu0 0.0
      %665 = vmatpush1.msra.mxu0 %v617
      %666 = vmatprep.subr.mxu0 0.0
      %667 = vmatpush1.msra.mxu0 %v616
      %668 = vmatprep.subr.mxu0 0.0
      %669 = vmatpush1.msra.mxu0 %v615
      %670 = vmatprep.subr.mxu0 0.0
      %671 = vmatpush2.msra.mxu0 0.0
      %672 = vmatprep.subr.mxu0 0.0
      %673 = vmatpush2.msra.mxu0 0.0
      %674 = vmatprep.subr.mxu0 0.0
      %675 = vmatpush2.msra.mxu0 0.0
      %676 = vmatprep.subr.mxu0 0.0
      %677 = vmatpush2.msra.mxu0 0.0
      %678 = vmatprep.subr.mxu0 0.0
      %679 = vmatpush2.msra.mxu0 0.0
      %680 = vmatprep.subr.mxu0 0.0
      %681 = vmatpush2.msra.mxu0 0.0
      %682 = vmatprep.subr.mxu0 0.0
      %683 = vmatpush2.msra.mxu0 0.0
      %684 = vmatprep.subr.mxu0 0.0
      %685 = vmatpush2.msra.mxu0 0.0
      %686 = vmatprep.subr.mxu0 0.0
      %687 = vmatpush2.msra.mxu0 0.0
      %688 = vmatprep.subr.mxu0 0.0
      %689 = vmatpush2.msra.mxu0 0.0
      %690 = vmatprep.subr.mxu0 0.0
      %691 = vmatpush2.msra.mxu0 0.0
      %692 = vmatprep.subr.mxu0 0.0
      %693 = vmatpush2.msra.mxu0 0.0
      %694 = vmatprep.subr.mxu0 0.0
      %695 = vmatpush2.msra.mxu0 0.0
      %696 = vmatprep.subr.mxu0 0.0
      %697 = vmatpush2.msra.mxu0 0.0
      %698 = vmatprep.subr.mxu0 0.0
      %699 = vmatpush2.msra.mxu0 0.0
      %700 = vmatprep.subr.mxu0 0.0
      %701 = vmatpush2.msra.mxu0 0.0
      %702 = vmatprep.mubr.f32.mxu0 0.0
      %703 = vmatmul.mubr.f32.gmra.mxu0 %v607
      %v704 = vpop.f32.mrf.mxu0
      %v705 = vadd.f32 %v636, %v704
      %v706 = vpop.f32.mrf.mxu0
      %707 = vmatprep.mubr.f32.mxu0 0.0
      %708 = vmatmul.mubr.f32.gmra.mxu0 %v608
      %v709 = vpop.f32.mrf.mxu0
      %v710 = vadd.f32 %v636, %v709
      %v711 = vpop.f32.mrf.mxu0
      %712 = vmatprep.mubr.f32.mxu0 0.0
      %713 = vmatmul.mubr.f32.gmra.mxu0 %v609
      %v714 = vpop.f32.mrf.mxu0
      %v715 = vadd.f32 %v636, %v714
      %v716 = vpop.f32.mrf.mxu0
      %717 = vmatprep.mubr.f32.mxu0 0.0
      %718 = vmatmul.mubr.f32.gmra.mxu0 %v610
      %v719 = vpop.f32.mrf.mxu0
      %v720 = vadd.f32 %v636, %v719
      %v721 = vpop.f32.mrf.mxu0
      %722 = vmatprep.mubr.f32.mxu0 0.0
      %723 = vmatmul.mubr.f32.gmra.mxu0 %v611
      %v724 = vpop.f32.mrf.mxu0
      %v725 = vadd.f32 %v636, %v724
      %v726 = vpop.f32.mrf.mxu0
      %727 = vmatprep.mubr.f32.mxu0 0.0
      %728 = vmatmul.mubr.f32.gmra.mxu0 %v612
      %v729 = vpop.f32.mrf.mxu0
      %v730 = vadd.f32 %v636, %v729
      %v731 = vpop.f32.mrf.mxu0
      %732 = vmatprep.mubr.f32.mxu0 0.0
      %733 = vmatmul.mubr.f32.gmra.mxu0 %v613
      %v734 = vpop.f32.mrf.mxu0
      %v735 = vadd.f32 %v636, %v734
      %v736 = vpop.f32.mrf.mxu0
      %737 = vmatprep.mubr.f32.mxu0 0.0
      %738 = vmatmul.mubr.f32.gmra.mxu0 %v614
      %v739 = vpop.f32.mrf.mxu0
      %v740 = vadd.f32 %v636, %v739
      %v741 = vpop.f32.mrf.mxu0
      %742 = vdwg.mxu0
      %743 = vst [vmem:[#allocation3] sm:$0xff] %v705
      %744 = vst [vmem:[#allocation3 + $0x8] sm:$0xff] %v710
      %745 = vst [vmem:[#allocation3 + $0x10] sm:$0xff] %v715
      %746 = vst [vmem:[#allocation3 + $0x18] sm:$0xff] %v720
      %747 = vst [vmem:[#allocation3 + $0x20] sm:$0xff] %v725
      %748 = vst [vmem:[#allocation3 + $0x28] sm:$0xff] %v730
      %749 = vst [vmem:[#allocation3 + $0x30] sm:$0xff] %v735
      %750 = vst [vmem:[#allocation3 + $0x38] sm:$0xff] %v740
      %v751 = vld [vmem:[#allocation10] sm:$0xff]
      %v752 = vld [vmem:[#allocation10 + $0x8] sm:$0xff]
      %v753 = vld [vmem:[#allocation10 + $0x10] sm:$0xff]
      %v754 = vld [vmem:[#allocation10 + $0x18] sm:$0xff]
      %v755 = vld [vmem:[#allocation3] sm:$0xff]
      %vm756 = vcmask 261120
      %v758 = vsel %vm756, 0.0, 0
      %760 = vmatprep.subr.mxu0 0.0
      %761 = vmatpush1.msra.mxu0 0.0
      %762 = vmatprep.subr.mxu0 0.0
      %763 = vmatpush1.msra.mxu0 0.0
      %764 = vmatprep.subr.mxu0 0.0
      %765 = vmatpush1.msra.mxu0 0.0
      %766 = vmatprep.subr.mxu0 0.0
      %767 = vmatpush1.msra.mxu0 0.0
      %768 = vmatprep.subr.mxu0 0.0
      %769 = vmatpush1.msra.mxu0 0.0
      %770 = vmatprep.subr.mxu0 0.0
      %771 = vmatpush1.msra.mxu0 0.0
      %772 = vmatprep.subr.mxu0 0.0
      %773 = vmatpush1.msra.mxu0 0.0
      %774 = vmatprep.subr.mxu0 0.0
      %775 = vmatpush1.msra.mxu0 0.0
      %776 = vmatprep.subr.mxu0 0.0
      %777 = vmatpush1.msra.mxu0 0.0
      %778 = vmatprep.subr.mxu0 0.0
      %779 = vmatpush1.msra.mxu0 0.0
      %780 = vmatprep.subr.mxu0 0.0
      %781 = vmatpush1.msra.mxu0 0.0
      %782 = vmatprep.subr.mxu0 0.0
      %783 = vmatpush1.msra.mxu0 0.0
      %784 = vmatprep.subr.mxu0 0.0
      %785 = vmatpush1.msra.mxu0 %v754
      %786 = vmatprep.subr.mxu0 0.0
      %787 = vmatpush1.msra.mxu0 %v753
      %788 = vmatprep.subr.mxu0 0.0
      %789 = vmatpush1.msra.mxu0 %v752
      %790 = vmatprep.subr.mxu0 0.0
      %791 = vmatpush1.msra.mxu0 %v751
      %792 = vmatprep.subr.mxu0 0.0
      %793 = vmatpush2.msra.mxu0 0.0
      %794 = vmatprep.subr.mxu0 0.0
      %795 = vmatpush2.msra.mxu0 0.0
      %796 = vmatprep.subr.mxu0 0.0
      %797 = vmatpush2.msra.mxu0 0.0
      %798 = vmatprep.subr.mxu0 0.0
      %799 = vmatpush2.msra.mxu0 0.0
      %800 = vmatprep.subr.mxu0 0.0
      %801 = vmatpush2.msra.mxu0 0.0
      %802 = vmatprep.subr.mxu0 0.0
      %803 = vmatpush2.msra.mxu0 0.0
      %804 = vmatprep.subr.mxu0 0.0
      %805 = vmatpush2.msra.mxu0 0.0
      %806 = vmatprep.subr.mxu0 0.0
      %807 = vmatpush2.msra.mxu0 0.0
      %808 = vmatprep.subr.mxu0 0.0
      %809 = vmatpush2.msra.mxu0 0.0
      %810 = vmatprep.subr.mxu0 0.0
      %811 = vmatpush2.msra.mxu0 0.0
      %812 = vmatprep.subr.mxu0 0.0
      %813 = vmatpush2.msra.mxu0 0.0
      %814 = vmatprep.subr.mxu0 0.0
      %815 = vmatpush2.msra.mxu0 0.0
      %816 = vmatprep.subr.mxu0 0.0
      %817 = vmatpush2.msra.mxu0 0.0
      %818 = vmatprep.subr.mxu0 0.0
      %819 = vmatpush2.msra.mxu0 0.0
      %820 = vmatprep.subr.mxu0 0.0
      %821 = vmatpush2.msra.mxu0 0.0
      %822 = vmatprep.subr.mxu0 0.0
      %823 = vmatpush2.msra.mxu0 0.0
      %824 = vmatprep.mubr.f32.mxu0 0.0
      %825 = vmatmul.mubr.f32.gmra.mxu0 %v758
      %v826 = vpop.f32.mrf.mxu0
      %v827 = vadd.f32 0.0, %v826
      %v828 = vpop.f32.mrf.mxu0
      %829 = vdwg.mxu0
      %v830 = vadd.f32 %v755, %v827
      %v831 = vxor.u32 %v830, 2147483648
      %v832 = vmul.f32 %v831, 1.442695
      %v833 = vpow.pop %v832
      %v834 = vadd.f32 %v833, 1.0
      %v835 = vrcp.pop %v834
      %v836 = vmul.f32 1.0, %v835
      %v837 = vtanh.pop %v830
      %v838 = vmul.f32 %v836, 0.0
      %840 = vrot.lane.b32.xlu0 %v837, 64
      %v841 = vpop.permute.xlu0 %840
      %v843 = vmul.f32 %v836, %v841
      %845 = vrot.lane.b32.xlu0 %v843, 32
      %v846 = vpop.permute.xlu0 %845
      %v848 = vadd.f32 %v838, %v846
      %v849 = vtanh.pop %v848
      %851 = vrot.lane.b32.xlu0 %v849, 64
      %v852 = vpop.permute.xlu0 %851
      %v854 = vmul.f32 %v836, %v852
      %856 = vrot.lane.b32.xlu0 %v854, 32
      %v857 = vpop.permute.xlu0 %856
      %859 = vst.msk [vmem:[#allocation2] sm:$0xff] %vm756, %v857
      %v860 = vld [vmem:[#allocation3 + $0x8] sm:$0xff]
      %v861 = vsel %vm756, %v857, 0
      %863 = vmatprep.subr.mxu0 0.0
      %864 = vmatpush1.msra.mxu0 0.0
      %865 = vmatprep.subr.mxu0 0.0
      %866 = vmatpush1.msra.mxu0 0.0
      %867 = vmatprep.subr.mxu0 0.0
      %868 = vmatpush1.msra.mxu0 0.0
      %869 = vmatprep.subr.mxu0 0.0
      %870 = vmatpush1.msra.mxu0 0.0
      %871 = vmatprep.subr.mxu0 0.0
      %872 = vmatpush1.msra.mxu0 0.0
      %873 = vmatprep.subr.mxu0 0.0
      %874 = vmatpush1.msra.mxu0 0.0
      %875 = vmatprep.subr.mxu0 0.0
      %876 = vmatpush1.msra.mxu0 0.0
      %877 = vmatprep.subr.mxu0 0.0
      %878 = vmatpush1.msra.mxu0 0.0
      %879 = vmatprep.subr.mxu0 0.0
      %880 = vmatpush1.msra.mxu0 0.0
      %881 = vmatprep.subr.mxu0 0.0
      %882 = vmatpush1.msra.mxu0 0.0
      %883 = vmatprep.subr.mxu0 0.0
      %884 = vmatpush1.msra.mxu0 0.0
      %885 = vmatprep.subr.mxu0 0.0
      %886 = vmatpush1.msra.mxu0 0.0
      %887 = vmatprep.subr.mxu0 0.0
      %888 = vmatpush1.msra.mxu0 %v754
      %889 = vmatprep.subr.mxu0 0.0
      %890 = vmatpush1.msra.mxu0 %v753
      %891 = vmatprep.subr.mxu0 0.0
      %892 = vmatpush1.msra.mxu0 %v752
      %893 = vmatprep.subr.mxu0 0.0
      %894 = vmatpush1.msra.mxu0 %v751
      %895 = vmatprep.subr.mxu0 0.0
      %896 = vmatpush2.msra.mxu0 0.0
      %897 = vmatprep.subr.mxu0 0.0
      %898 = vmatpush2.msra.mxu0 0.0
      %899 = vmatprep.subr.mxu0 0.0
      %900 = vmatpush2.msra.mxu0 0.0
      %901 = vmatprep.subr.mxu0 0.0
      %902 = vmatpush2.msra.mxu0 0.0
      %903 = vmatprep.subr.mxu0 0.0
      %904 = vmatpush2.msra.mxu0 0.0
      %905 = vmatprep.subr.mxu0 0.0
      %906 = vmatpush2.msra.mxu0 0.0
      %907 = vmatprep.subr.mxu0 0.0
      %908 = vmatpush2.msra.mxu0 0.0
      %909 = vmatprep.subr.mxu0 0.0
      %910 = vmatpush2.msra.mxu0 0.0
      %911 = vmatprep.subr.mxu0 0.0
      %912 = vmatpush2.msra.mxu0 0.0
      %913 = vmatprep.subr.mxu0 0.0
      %914 = vmatpush2.msra.mxu0 0.0
      %915 = vmatprep.subr.mxu0 0.0
      %916 = vmatpush2.msra.mxu0 0.0
      %917 = vmatprep.subr.mxu0 0.0
      %918 = vmatpush2.msra.mxu0 0.0
      %919 = vmatprep.subr.mxu0 0.0
      %920 = vmatpush2.msra.mxu0 0.0
      %921 = vmatprep.subr.mxu0 0.0
      %922 = vmatpush2.msra.mxu0 0.0
      %923 = vmatprep.subr.mxu0 0.0
      %924 = vmatpush2.msra.mxu0 0.0
      %925 = vmatprep.subr.mxu0 0.0
      %926 = vmatpush2.msra.mxu0 0.0
      %927 = vmatprep.mubr.f32.mxu0 0.0
      %928 = vmatmul.mubr.f32.gmra.mxu0 %v861
      %v929 = vpop.f32.mrf.mxu0
      %v930 = vadd.f32 0.0, %v929
      %v931 = vpop.f32.mrf.mxu0
      %932 = vdwg.mxu0
      %v933 = vadd.f32 %v860, %v930
      %v934 = vxor.u32 %v933, 2147483648
      %v935 = vmul.f32 %v934, 1.442695
      %v936 = vpow.pop %v935
      %v937 = vadd.f32 %v936, 1.0
      %v938 = vrcp.pop %v937
      %v939 = vmul.f32 1.0, %v938
      %v940 = vtanh.pop %v933
      %v941 = vmul.f32 %v939, %v848
      %943 = vrot.lane.b32.xlu0 %v940, 64
      %v944 = vpop.permute.xlu0 %943
      %v946 = vmul.f32 %v939, %v944
      %948 = vrot.lane.b32.xlu0 %v946, 32
      %v949 = vpop.permute.xlu0 %948
      %v951 = vadd.f32 %v941, %v949
      %v952 = vtanh.pop %v951
      %954 = vrot.lane.b32.xlu0 %v952, 64
      %v955 = vpop.permute.xlu0 %954
      %v957 = vmul.f32 %v939, %v955
      %959 = vrot.lane.b32.xlu0 %v957, 32
      %v960 = vpop.permute.xlu0 %959
      %962 = vst.msk [vmem:[#allocation2 + $0x8] sm:$0xff] %vm756, %v960
      %v963 = vld [vmem:[#allocation3 + $0x10] sm:$0xff]
      %v964 = vsel %vm756, %v960, 0
      %966 = vmatprep.subr.mxu0 0.0
      %967 = vmatpush1.msra.mxu0 0.0
      %968 = vmatprep.subr.mxu0 0.0
      %969 = vmatpush1.msra.mxu0 0.0
      %970 = vmatprep.subr.mxu0 0.0
      %971 = vmatpush1.msra.mxu0 0.0
      %972 = vmatprep.subr.mxu0 0.0
      %973 = vmatpush1.msra.mxu0 0.0
      %974 = vmatprep.subr.mxu0 0.0
      %975 = vmatpush1.msra.mxu0 0.0
      %976 = vmatprep.subr.mxu0 0.0
      %977 = vmatpush1.msra.mxu0 0.0
      %978 = vmatprep.subr.mxu0 0.0
      %979 = vmatpush1.msra.mxu0 0.0
      %980 = vmatprep.subr.mxu0 0.0
      %981 = vmatpush1.msra.mxu0 0.0
      %982 = vmatprep.subr.mxu0 0.0
      %983 = vmatpush1.msra.mxu0 0.0
      %984 = vmatprep.subr.mxu0 0.0
      %985 = vmatpush1.msra.mxu0 0.0
      %986 = vmatprep.subr.mxu0 0.0
      %987 = vmatpush1.msra.mxu0 0.0
      %988 = vmatprep.subr.mxu0 0.0
      %989 = vmatpush1.msra.mxu0 0.0
      %990 = vmatprep.subr.mxu0 0.0
      %991 = vmatpush1.msra.mxu0 %v754
      %992 = vmatprep.subr.mxu0 0.0
      %993 = vmatpush1.msra.mxu0 %v753
      %994 = vmatprep.subr.mxu0 0.0
      %995 = vmatpush1.msra.mxu0 %v752
      %996 = vmatprep.subr.mxu0 0.0
      %997 = vmatpush1.msra.mxu0 %v751
      %998 = vmatprep.subr.mxu0 0.0
      %999 = vmatpush2.msra.mxu0 0.0
      %1000 = vmatprep.subr.mxu0 0.0
      %1001 = vmatpush2.msra.mxu0 0.0
      %1002 = vmatprep.subr.mxu0 0.0
      %1003 = vmatpush2.msra.mxu0 0.0
      %1004 = vmatprep.subr.mxu0 0.0
      %1005 = vmatpush2.msra.mxu0 0.0
      %1006 = vmatprep.subr.mxu0 0.0
      %1007 = vmatpush2.msra.mxu0 0.0
      %1008 = vmatprep.subr.mxu0 0.0
      %1009 = vmatpush2.msra.mxu0 0.0
      %1010 = vmatprep.subr.mxu0 0.0
      %1011 = vmatpush2.msra.mxu0 0.0
      %1012 = vmatprep.subr.mxu0 0.0
      %1013 = vmatpush2.msra.mxu0 0.0
      %1014 = vmatprep.subr.mxu0 0.0
      %1015 = vmatpush2.msra.mxu0 0.0
      %1016 = vmatprep.subr.mxu0 0.0
      %1017 = vmatpush2.msra.mxu0 0.0
      %1018 = vmatprep.subr.mxu0 0.0
      %1019 = vmatpush2.msra.mxu0 0.0
      %1020 = vmatprep.subr.mxu0 0.0
      %1021 = vmatpush2.msra.mxu0 0.0
      %1022 = vmatprep.subr.mxu0 0.0
      %1023 = vmatpush2.msra.mxu0 0.0
      %1024 = vmatprep.subr.mxu0 0.0
      %1025 = vmatpush2.msra.mxu0 0.0
      %1026 = vmatprep.subr.mxu0 0.0
      %1027 = vmatpush2.msra.mxu0 0.0
      %1028 = vmatprep.subr.mxu0 0.0
      %1029 = vmatpush2.msra.mxu0 0.0
      %1030 = vmatprep.mubr.f32.mxu0 0.0
      %1031 = vmatmul.mubr.f32.gmra.mxu0 %v964
      %v1032 = vpop.f32.mrf.mxu0
      %v1033 = vadd.f32 0.0, %v1032
      %v1034 = vpop.f32.mrf.mxu0
      %1035 = vdwg.mxu0
      %v1036 = vadd.f32 %v963, %v1033
      %v1037 = vxor.u32 %v1036, 2147483648
      %v1038 = vmul.f32 %v1037, 1.442695
      %v1039 = vpow.pop %v1038
      %v1040 = vadd.f32 %v1039, 1.0
      %v1041 = vrcp.pop %v1040
      %v1042 = vmul.f32 1.0, %v1041
      %v1043 = vtanh.pop %v1036
      %v1044 = vmul.f32 %v1042, %v951
      %1046 = vrot.lane.b32.xlu0 %v1043, 64
      %v1047 = vpop.permute.xlu0 %1046
      %v1049 = vmul.f32 %v1042, %v1047
      %1051 = vrot.lane.b32.xlu0 %v1049, 32
      %v1052 = vpop.permute.xlu0 %1051
      %v1054 = vadd.f32 %v1044, %v1052
      %v1055 = vtanh.pop %v1054
      %1057 = vrot.lane.b32.xlu0 %v1055, 64
      %v1058 = vpop.permute.xlu0 %1057
      %v1060 = vmul.f32 %v1042, %v1058
      %1062 = vrot.lane.b32.xlu0 %v1060, 32
      %v1063 = vpop.permute.xlu0 %1062
      %1065 = vst.msk [vmem:[#allocation2 + $0x10] sm:$0xff] %vm756, %v1063
      %v1066 = vld [vmem:[#allocation3 + $0x18] sm:$0xff]
      %v1067 = vsel %vm756, %v1063, 0
      %1069 = vmatprep.subr.mxu0 0.0
      %1070 = vmatpush1.msra.mxu0 0.0
      %1071 = vmatprep.subr.mxu0 0.0
      %1072 = vmatpush1.msra.mxu0 0.0
      %1073 = vmatprep.subr.mxu0 0.0
      %1074 = vmatpush1.msra.mxu0 0.0
      %1075 = vmatprep.subr.mxu0 0.0
      %1076 = vmatpush1.msra.mxu0 0.0
      %1077 = vmatprep.subr.mxu0 0.0
      %1078 = vmatpush1.msra.mxu0 0.0
      %1079 = vmatprep.subr.mxu0 0.0
      %1080 = vmatpush1.msra.mxu0 0.0
      %1081 = vmatprep.subr.mxu0 0.0
      %1082 = vmatpush1.msra.mxu0 0.0
      %1083 = vmatprep.subr.mxu0 0.0
      %1084 = vmatpush1.msra.mxu0 0.0
      %1085 = vmatprep.subr.mxu0 0.0
      %1086 = vmatpush1.msra.mxu0 0.0
      %1087 = vmatprep.subr.mxu0 0.0
      %1088 = vmatpush1.msra.mxu0 0.0
      %1089 = vmatprep.subr.mxu0 0.0
      %1090 = vmatpush1.msra.mxu0 0.0
      %1091 = vmatprep.subr.mxu0 0.0
      %1092 = vmatpush1.msra.mxu0 0.0
      %1093 = vmatprep.subr.mxu0 0.0
      %1094 = vmatpush1.msra.mxu0 %v754
      %1095 = vmatprep.subr.mxu0 0.0
      %1096 = vmatpush1.msra.mxu0 %v753
      %1097 = vmatprep.subr.mxu0 0.0
      %1098 = vmatpush1.msra.mxu0 %v752
      %1099 = vmatprep.subr.mxu0 0.0
      %1100 = vmatpush1.msra.mxu0 %v751
      %1101 = vmatprep.subr.mxu0 0.0
      %1102 = vmatpush2.msra.mxu0 0.0
      %1103 = vmatprep.subr.mxu0 0.0
      %1104 = vmatpush2.msra.mxu0 0.0
      %1105 = vmatprep.subr.mxu0 0.0
      %1106 = vmatpush2.msra.mxu0 0.0
      %1107 = vmatprep.subr.mxu0 0.0
      %1108 = vmatpush2.msra.mxu0 0.0
      %1109 = vmatprep.subr.mxu0 0.0
      %1110 = vmatpush2.msra.mxu0 0.0
      %1111 = vmatprep.subr.mxu0 0.0
      %1112 = vmatpush2.msra.mxu0 0.0
      %1113 = vmatprep.subr.mxu0 0.0
      %1114 = vmatpush2.msra.mxu0 0.0
      %1115 = vmatprep.subr.mxu0 0.0
      %1116 = vmatpush2.msra.mxu0 0.0
      %1117 = vmatprep.subr.mxu0 0.0
      %1118 = vmatpush2.msra.mxu0 0.0
      %1119 = vmatprep.subr.mxu0 0.0
      %1120 = vmatpush2.msra.mxu0 0.0
      %1121 = vmatprep.subr.mxu0 0.0
      %1122 = vmatpush2.msra.mxu0 0.0
      %1123 = vmatprep.subr.mxu0 0.0
      %1124 = vmatpush2.msra.mxu0 0.0
      %1125 = vmatprep.subr.mxu0 0.0
      %1126 = vmatpush2.msra.mxu0 0.0
      %1127 = vmatprep.subr.mxu0 0.0
      %1128 = vmatpush2.msra.mxu0 0.0
      %1129 = vmatprep.subr.mxu0 0.0
      %1130 = vmatpush2.msra.mxu0 0.0
      %1131 = vmatprep.subr.mxu0 0.0
      %1132 = vmatpush2.msra.mxu0 0.0
      %1133 = vmatprep.mubr.f32.mxu0 0.0
      %1134 = vmatmul.mubr.f32.gmra.mxu0 %v1067
      %v1135 = vpop.f32.mrf.mxu0
      %v1136 = vadd.f32 0.0, %v1135
      %v1137 = vpop.f32.mrf.mxu0
      %1138 = vdwg.mxu0
      %v1139 = vadd.f32 %v1066, %v1136
      %v1140 = vxor.u32 %v1139, 2147483648
      %v1141 = vmul.f32 %v1140, 1.442695
      %v1142 = vpow.pop %v1141
      %v1143 = vadd.f32 %v1142, 1.0
      %v1144 = vrcp.pop %v1143
      %v1145 = vmul.f32 1.0, %v1144
      %v1146 = vtanh.pop %v1139
      %v1147 = vmul.f32 %v1145, %v1054
      %1149 = vrot.lane.b32.xlu0 %v1146, 64
      %v1150 = vpop.permute.xlu0 %1149
      %v1152 = vmul.f32 %v1145, %v1150
      %1154 = vrot.lane.b32.xlu0 %v1152, 32
      %v1155 = vpop.permute.xlu0 %1154
      %v1157 = vadd.f32 %v1147, %v1155
      %v1158 = vtanh.pop %v1157
      %1160 = vrot.lane.b32.xlu0 %v1158, 64
      %v1161 = vpop.permute.xlu0 %1160
      %v1163 = vmul.f32 %v1145, %v1161
      %1165 = vrot.lane.b32.xlu0 %v1163, 32
      %v1166 = vpop.permute.xlu0 %1165
      %1168 = vst.msk [vmem:[#allocation2 + $0x18] sm:$0xff] %vm756, %v1166
      %v1169 = vld [vmem:[#allocation3 + $0x20] sm:$0xff]
      %v1170 = vsel %vm756, %v1166, 0
      %1172 = vmatprep.subr.mxu0 0.0
      %1173 = vmatpush1.msra.mxu0 0.0
      %1174 = vmatprep.subr.mxu0 0.0
      %1175 = vmatpush1.msra.mxu0 0.0
      %1176 = vmatprep.subr.mxu0 0.0
      %1177 = vmatpush1.msra.mxu0 0.0
      %1178 = vmatprep.subr.mxu0 0.0
      %1179 = vmatpush1.msra.mxu0 0.0
      %1180 = vmatprep.subr.mxu0 0.0
      %1181 = vmatpush1.msra.mxu0 0.0
      %1182 = vmatprep.subr.mxu0 0.0
      %1183 = vmatpush1.msra.mxu0 0.0
      %1184 = vmatprep.subr.mxu0 0.0
      %1185 = vmatpush1.msra.mxu0 0.0
      %1186 = vmatprep.subr.mxu0 0.0
      %1187 = vmatpush1.msra.mxu0 0.0
      %1188 = vmatprep.subr.mxu0 0.0
      %1189 = vmatpush1.msra.mxu0 0.0
      %1190 = vmatprep.subr.mxu0 0.0
      %1191 = vmatpush1.msra.mxu0 0.0
      %1192 = vmatprep.subr.mxu0 0.0
      %1193 = vmatpush1.msra.mxu0 0.0
      %1194 = vmatprep.subr.mxu0 0.0
      %1195 = vmatpush1.msra.mxu0 0.0
      %1196 = vmatprep.subr.mxu0 0.0
      %1197 = vmatpush1.msra.mxu0 %v754
      %1198 = vmatprep.subr.mxu0 0.0
      %1199 = vmatpush1.msra.mxu0 %v753
      %1200 = vmatprep.subr.mxu0 0.0
      %1201 = vmatpush1.msra.mxu0 %v752
      %1202 = vmatprep.subr.mxu0 0.0
      %1203 = vmatpush1.msra.mxu0 %v751
      %1204 = vmatprep.subr.mxu0 0.0
      %1205 = vmatpush2.msra.mxu0 0.0
      %1206 = vmatprep.subr.mxu0 0.0
      %1207 = vmatpush2.msra.mxu0 0.0
      %1208 = vmatprep.subr.mxu0 0.0
      %1209 = vmatpush2.msra.mxu0 0.0
      %1210 = vmatprep.subr.mxu0 0.0
      %1211 = vmatpush2.msra.mxu0 0.0
      %1212 = vmatprep.subr.mxu0 0.0
      %1213 = vmatpush2.msra.mxu0 0.0
      %1214 = vmatprep.subr.mxu0 0.0
      %1215 = vmatpush2.msra.mxu0 0.0
      %1216 = vmatprep.subr.mxu0 0.0
      %1217 = vmatpush2.msra.mxu0 0.0
      %1218 = vmatprep.subr.mxu0 0.0
      %1219 = vmatpush2.msra.mxu0 0.0
      %1220 = vmatprep.subr.mxu0 0.0
      %1221 = vmatpush2.msra.mxu0 0.0
      %1222 = vmatprep.subr.mxu0 0.0
      %1223 = vmatpush2.msra.mxu0 0.0
      %1224 = vmatprep.subr.mxu0 0.0
      %1225 = vmatpush2.msra.mxu0 0.0
      %1226 = vmatprep.subr.mxu0 0.0
      %1227 = vmatpush2.msra.mxu0 0.0
      %1228 = vmatprep.subr.mxu0 0.0
      %1229 = vmatpush2.msra.mxu0 0.0
      %1230 = vmatprep.subr.mxu0 0.0
      %1231 = vmatpush2.msra.mxu0 0.0
      %1232 = vmatprep.subr.mxu0 0.0
      %1233 = vmatpush2.msra.mxu0 0.0
      %1234 = vmatprep.subr.mxu0 0.0
      %1235 = vmatpush2.msra.mxu0 0.0
      %1236 = vmatprep.mubr.f32.mxu0 0.0
      %1237 = vmatmul.mubr.f32.gmra.mxu0 %v1170
      %v1238 = vpop.f32.mrf.mxu0
      %v1239 = vadd.f32 0.0, %v1238
      %v1240 = vpop.f32.mrf.mxu0
      %1241 = vdwg.mxu0
      %v1242 = vadd.f32 %v1169, %v1239
      %v1243 = vxor.u32 %v1242, 2147483648
      %v1244 = vmul.f32 %v1243, 1.442695
      %v1245 = vpow.pop %v1244
      %v1246 = vadd.f32 %v1245, 1.0
      %v1247 = vrcp.pop %v1246
      %v1248 = vmul.f32 1.0, %v1247
      %v1249 = vtanh.pop %v1242
      %v1250 = vmul.f32 %v1248, %v1157
      %1252 = vrot.lane.b32.xlu0 %v1249, 64
      %v1253 = vpop.permute.xlu0 %1252
      %v1255 = vmul.f32 %v1248, %v1253
      %1257 = vrot.lane.b32.xlu0 %v1255, 32
      %v1258 = vpop.permute.xlu0 %1257
      %v1260 = vadd.f32 %v1250, %v1258
      %v1261 = vtanh.pop %v1260
      %1263 = vrot.lane.b32.xlu0 %v1261, 64
      %v1264 = vpop.permute.xlu0 %1263
      %v1266 = vmul.f32 %v1248, %v1264
      %1268 = vrot.lane.b32.xlu0 %v1266, 32
      %v1269 = vpop.permute.xlu0 %1268
      %1271 = vst.msk [vmem:[#allocation2 + $0x20] sm:$0xff] %vm756, %v1269
      %v1272 = vld [vmem:[#allocation3 + $0x28] sm:$0xff]
      %v1273 = vsel %vm756, %v1269, 0
      %1275 = vmatprep.subr.mxu0 0.0
      %1276 = vmatpush1.msra.mxu0 0.0
      %1277 = vmatprep.subr.mxu0 0.0
      %1278 = vmatpush1.msra.mxu0 0.0
      %1279 = vmatprep.subr.mxu0 0.0
      %1280 = vmatpush1.msra.mxu0 0.0
      %1281 = vmatprep.subr.mxu0 0.0
      %1282 = vmatpush1.msra.mxu0 0.0
      %1283 = vmatprep.subr.mxu0 0.0
      %1284 = vmatpush1.msra.mxu0 0.0
      %1285 = vmatprep.subr.mxu0 0.0
      %1286 = vmatpush1.msra.mxu0 0.0
      %1287 = vmatprep.subr.mxu0 0.0
      %1288 = vmatpush1.msra.mxu0 0.0
      %1289 = vmatprep.subr.mxu0 0.0
      %1290 = vmatpush1.msra.mxu0 0.0
      %1291 = vmatprep.subr.mxu0 0.0
      %1292 = vmatpush1.msra.mxu0 0.0
      %1293 = vmatprep.subr.mxu0 0.0
      %1294 = vmatpush1.msra.mxu0 0.0
      %1295 = vmatprep.subr.mxu0 0.0
      %1296 = vmatpush1.msra.mxu0 0.0
      %1297 = vmatprep.subr.mxu0 0.0
      %1298 = vmatpush1.msra.mxu0 0.0
      %1299 = vmatprep.subr.mxu0 0.0
      %1300 = vmatpush1.msra.mxu0 %v754
      %1301 = vmatprep.subr.mxu0 0.0
      %1302 = vmatpush1.msra.mxu0 %v753
      %1303 = vmatprep.subr.mxu0 0.0
      %1304 = vmatpush1.msra.mxu0 %v752
      %1305 = vmatprep.subr.mxu0 0.0
      %1306 = vmatpush1.msra.mxu0 %v751
      %1307 = vmatprep.subr.mxu0 0.0
      %1308 = vmatpush2.msra.mxu0 0.0
      %1309 = vmatprep.subr.mxu0 0.0
      %1310 = vmatpush2.msra.mxu0 0.0
      %1311 = vmatprep.subr.mxu0 0.0
      %1312 = vmatpush2.msra.mxu0 0.0
      %1313 = vmatprep.subr.mxu0 0.0
      %1314 = vmatpush2.msra.mxu0 0.0
      %1315 = vmatprep.subr.mxu0 0.0
      %1316 = vmatpush2.msra.mxu0 0.0
      %1317 = vmatprep.subr.mxu0 0.0
      %1318 = vmatpush2.msra.mxu0 0.0
      %1319 = vmatprep.subr.mxu0 0.0
      %1320 = vmatpush2.msra.mxu0 0.0
      %1321 = vmatprep.subr.mxu0 0.0
      %1322 = vmatpush2.msra.mxu0 0.0
      %1323 = vmatprep.subr.mxu0 0.0
      %1324 = vmatpush2.msra.mxu0 0.0
      %1325 = vmatprep.subr.mxu0 0.0
      %1326 = vmatpush2.msra.mxu0 0.0
      %1327 = vmatprep.subr.mxu0 0.0
      %1328 = vmatpush2.msra.mxu0 0.0
      %1329 = vmatprep.subr.mxu0 0.0
      %1330 = vmatpush2.msra.mxu0 0.0
      %1331 = vmatprep.subr.mxu0 0.0
      %1332 = vmatpush2.msra.mxu0 0.0
      %1333 = vmatprep.subr.mxu0 0.0
      %1334 = vmatpush2.msra.mxu0 0.0
      %1335 = vmatprep.subr.mxu0 0.0
      %1336 = vmatpush2.msra.mxu0 0.0
      %1337 = vmatprep.subr.mxu0 0.0
      %1338 = vmatpush2.msra.mxu0 0.0
      %1339 = vmatprep.mubr.f32.mxu0 0.0
      %1340 = vmatmul.mubr.f32.gmra.mxu0 %v1273
      %v1341 = vpop.f32.mrf.mxu0
      %v1342 = vadd.f32 0.0, %v1341
      %v1343 = vpop.f32.mrf.mxu0
      %1344 = vdwg.mxu0
      %v1345 = vadd.f32 %v1272, %v1342
      %v1346 = vxor.u32 %v1345, 2147483648
      %v1347 = vmul.f32 %v1346, 1.442695
      %v1348 = vpow.pop %v1347
      %v1349 = vadd.f32 %v1348, 1.0
      %v1350 = vrcp.pop %v1349
      %v1351 = vmul.f32 1.0, %v1350
      %v1352 = vtanh.pop %v1345
      %v1353 = vmul.f32 %v1351, %v1260
      %1355 = vrot.lane.b32.xlu0 %v1352, 64
      %v1356 = vpop.permute.xlu0 %1355
      %v1358 = vmul.f32 %v1351, %v1356
      %1360 = vrot.lane.b32.xlu0 %v1358, 32
      %v1361 = vpop.permute.xlu0 %1360
      %v1363 = vadd.f32 %v1353, %v1361
      %v1364 = vtanh.pop %v1363
      %1366 = vrot.lane.b32.xlu0 %v1364, 64
      %v1367 = vpop.permute.xlu0 %1366
      %v1369 = vmul.f32 %v1351, %v1367
      %1371 = vrot.lane.b32.xlu0 %v1369, 32
      %v1372 = vpop.permute.xlu0 %1371
      %1374 = vst.msk [vmem:[#allocation2 + $0x28] sm:$0xff] %vm756, %v1372
      %v1375 = vld [vmem:[#allocation3 + $0x30] sm:$0xff]
      %v1376 = vsel %vm756, %v1372, 0
      %1378 = vmatprep.subr.mxu0 0.0
      %1379 = vmatpush1.msra.mxu0 0.0
      %1380 = vmatprep.subr.mxu0 0.0
      %1381 = vmatpush1.msra.mxu0 0.0
      %1382 = vmatprep.subr.mxu0 0.0
      %1383 = vmatpush1.msra.mxu0 0.0
      %1384 = vmatprep.subr.mxu0 0.0
      %1385 = vmatpush1.msra.mxu0 0.0
      %1386 = vmatprep.subr.mxu0 0.0
      %1387 = vmatpush1.msra.mxu0 0.0
      %1388 = vmatprep.subr.mxu0 0.0
      %1389 = vmatpush1.msra.mxu0 0.0
      %1390 = vmatprep.subr.mxu0 0.0
      %1391 = vmatpush1.msra.mxu0 0.0
      %1392 = vmatprep.subr.mxu0 0.0
      %1393 = vmatpush1.msra.mxu0 0.0
      %1394 = vmatprep.subr.mxu0 0.0
      %1395 = vmatpush1.msra.mxu0 0.0
      %1396 = vmatprep.subr.mxu0 0.0
      %1397 = vmatpush1.msra.mxu0 0.0
      %1398 = vmatprep.subr.mxu0 0.0
      %1399 = vmatpush1.msra.mxu0 0.0
      %1400 = vmatprep.subr.mxu0 0.0
      %1401 = vmatpush1.msra.mxu0 0.0
      %1402 = vmatprep.subr.mxu0 0.0
      %1403 = vmatpush1.msra.mxu0 %v754
      %1404 = vmatprep.subr.mxu0 0.0
      %1405 = vmatpush1.msra.mxu0 %v753
      %1406 = vmatprep.subr.mxu0 0.0
      %1407 = vmatpush1.msra.mxu0 %v752
      %1408 = vmatprep.subr.mxu0 0.0
      %1409 = vmatpush1.msra.mxu0 %v751
      %1410 = vmatprep.subr.mxu0 0.0
      %1411 = vmatpush2.msra.mxu0 0.0
      %1412 = vmatprep.subr.mxu0 0.0
      %1413 = vmatpush2.msra.mxu0 0.0
      %1414 = vmatprep.subr.mxu0 0.0
      %1415 = vmatpush2.msra.mxu0 0.0
      %1416 = vmatprep.subr.mxu0 0.0
      %1417 = vmatpush2.msra.mxu0 0.0
      %1418 = vmatprep.subr.mxu0 0.0
      %1419 = vmatpush2.msra.mxu0 0.0
      %1420 = vmatprep.subr.mxu0 0.0
      %1421 = vmatpush2.msra.mxu0 0.0
      %1422 = vmatprep.subr.mxu0 0.0
      %1423 = vmatpush2.msra.mxu0 0.0
      %1424 = vmatprep.subr.mxu0 0.0
      %1425 = vmatpush2.msra.mxu0 0.0
      %1426 = vmatprep.subr.mxu0 0.0
      %1427 = vmatpush2.msra.mxu0 0.0
      %1428 = vmatprep.subr.mxu0 0.0
      %1429 = vmatpush2.msra.mxu0 0.0
      %1430 = vmatprep.subr.mxu0 0.0
      %1431 = vmatpush2.msra.mxu0 0.0
      %1432 = vmatprep.subr.mxu0 0.0
      %1433 = vmatpush2.msra.mxu0 0.0
      %1434 = vmatprep.subr.mxu0 0.0
      %1435 = vmatpush2.msra.mxu0 0.0
      %1436 = vmatprep.subr.mxu0 0.0
      %1437 = vmatpush2.msra.mxu0 0.0
      %1438 = vmatprep.subr.mxu0 0.0
      %1439 = vmatpush2.msra.mxu0 0.0
      %1440 = vmatprep.subr.mxu0 0.0
      %1441 = vmatpush2.msra.mxu0 0.0
      %1442 = vmatprep.mubr.f32.mxu0 0.0
      %1443 = vmatmul.mubr.f32.gmra.mxu0 %v1376
      %v1444 = vpop.f32.mrf.mxu0
      %v1445 = vadd.f32 0.0, %v1444
      %v1446 = vpop.f32.mrf.mxu0
      %1447 = vdwg.mxu0
      %v1448 = vadd.f32 %v1375, %v1445
      %v1449 = vxor.u32 %v1448, 2147483648
      %v1450 = vmul.f32 %v1449, 1.442695
      %v1451 = vpow.pop %v1450
      %v1452 = vadd.f32 %v1451, 1.0
      %v1453 = vrcp.pop %v1452
      %v1454 = vmul.f32 1.0, %v1453
      %v1455 = vtanh.pop %v1448
      %v1456 = vmul.f32 %v1454, %v1363
      %1458 = vrot.lane.b32.xlu0 %v1455, 64
      %v1459 = vpop.permute.xlu0 %1458
      %v1461 = vmul.f32 %v1454, %v1459
      %1463 = vrot.lane.b32.xlu0 %v1461, 32
      %v1464 = vpop.permute.xlu0 %1463
      %v1466 = vadd.f32 %v1456, %v1464
      %v1467 = vtanh.pop %v1466
      %1469 = vrot.lane.b32.xlu0 %v1467, 64
      %v1470 = vpop.permute.xlu0 %1469
      %v1472 = vmul.f32 %v1454, %v1470
      %1474 = vrot.lane.b32.xlu0 %v1472, 32
      %v1475 = vpop.permute.xlu0 %1474
      %1477 = vst.msk [vmem:[#allocation2 + $0x30] sm:$0xff] %vm756, %v1475
      %v1478 = vld [vmem:[#allocation3 + $0x38] sm:$0xff]
      %v1479 = vsel %vm756, %v1475, 0
      %1481 = vmatprep.subr.mxu0 0.0
      %1482 = vmatpush1.msra.mxu0 0.0
      %1483 = vmatprep.subr.mxu0 0.0
      %1484 = vmatpush1.msra.mxu0 0.0
      %1485 = vmatprep.subr.mxu0 0.0
      %1486 = vmatpush1.msra.mxu0 0.0
      %1487 = vmatprep.subr.mxu0 0.0
      %1488 = vmatpush1.msra.mxu0 0.0
      %1489 = vmatprep.subr.mxu0 0.0
      %1490 = vmatpush1.msra.mxu0 0.0
      %1491 = vmatprep.subr.mxu0 0.0
      %1492 = vmatpush1.msra.mxu0 0.0
      %1493 = vmatprep.subr.mxu0 0.0
      %1494 = vmatpush1.msra.mxu0 0.0
      %1495 = vmatprep.subr.mxu0 0.0
      %1496 = vmatpush1.msra.mxu0 0.0
      %1497 = vmatprep.subr.mxu0 0.0
      %1498 = vmatpush1.msra.mxu0 0.0
      %1499 = vmatprep.subr.mxu0 0.0
      %1500 = vmatpush1.msra.mxu0 0.0
      %1501 = vmatprep.subr.mxu0 0.0
      %1502 = vmatpush1.msra.mxu0 0.0
      %1503 = vmatprep.subr.mxu0 0.0
      %1504 = vmatpush1.msra.mxu0 0.0
      %1505 = vmatprep.subr.mxu0 0.0
      %1506 = vmatpush1.msra.mxu0 %v754
      %1507 = vmatprep.subr.mxu0 0.0
      %1508 = vmatpush1.msra.mxu0 %v753
      %1509 = vmatprep.subr.mxu0 0.0
      %1510 = vmatpush1.msra.mxu0 %v752
      %1511 = vmatprep.subr.mxu0 0.0
      %1512 = vmatpush1.msra.mxu0 %v751
      %1513 = vmatprep.subr.mxu0 0.0
      %1514 = vmatpush2.msra.mxu0 0.0
      %1515 = vmatprep.subr.mxu0 0.0
      %1516 = vmatpush2.msra.mxu0 0.0
      %1517 = vmatprep.subr.mxu0 0.0
      %1518 = vmatpush2.msra.mxu0 0.0
      %1519 = vmatprep.subr.mxu0 0.0
      %1520 = vmatpush2.msra.mxu0 0.0
      %1521 = vmatprep.subr.mxu0 0.0
      %1522 = vmatpush2.msra.mxu0 0.0
      %1523 = vmatprep.subr.mxu0 0.0
      %1524 = vmatpush2.msra.mxu0 0.0
      %1525 = vmatprep.subr.mxu0 0.0
      %1526 = vmatpush2.msra.mxu0 0.0
      %1527 = vmatprep.subr.mxu0 0.0
      %1528 = vmatpush2.msra.mxu0 0.0
      %1529 = vmatprep.subr.mxu0 0.0
      %1530 = vmatpush2.msra.mxu0 0.0
      %1531 = vmatprep.subr.mxu0 0.0
      %1532 = vmatpush2.msra.mxu0 0.0
      %1533 = vmatprep.subr.mxu0 0.0
      %1534 = vmatpush2.msra.mxu0 0.0
      %1535 = vmatprep.subr.mxu0 0.0
      %1536 = vmatpush2.msra.mxu0 0.0
      %1537 = vmatprep.subr.mxu0 0.0
      %1538 = vmatpush2.msra.mxu0 0.0
      %1539 = vmatprep.subr.mxu0 0.0
      %1540 = vmatpush2.msra.mxu0 0.0
      %1541 = vmatprep.subr.mxu0 0.0
      %1542 = vmatpush2.msra.mxu0 0.0
      %1543 = vmatprep.subr.mxu0 0.0
      %1544 = vmatpush2.msra.mxu0 0.0
      %1545 = vmatprep.mubr.f32.mxu0 0.0
      %1546 = vmatmul.mubr.f32.gmra.mxu0 %v1479
      %v1547 = vpop.f32.mrf.mxu0
      %v1548 = vadd.f32 0.0, %v1547
      %v1549 = vpop.f32.mrf.mxu0
      %1550 = vdwg.mxu0
      %v1551 = vadd.f32 %v1478, %v1548
      %v1552 = vxor.u32 %v1551, 2147483648
      %v1553 = vmul.f32 %v1552, 1.442695
      %v1554 = vpow.pop %v1553
      %v1555 = vadd.f32 %v1554, 1.0
      %v1556 = vrcp.pop %v1555
      %v1557 = vmul.f32 1.0, %v1556
      %v1558 = vtanh.pop %v1551
      %v1559 = vmul.f32 %v1557, %v1466
      %1561 = vrot.lane.b32.xlu0 %v1558, 64
      %v1562 = vpop.permute.xlu0 %1561
      %v1564 = vmul.f32 %v1557, %v1562
      %1566 = vrot.lane.b32.xlu0 %v1564, 32
      %v1567 = vpop.permute.xlu0 %1566
      %v1569 = vadd.f32 %v1559, %v1567
      %v1570 = vtanh.pop %v1569
      %1572 = vrot.lane.b32.xlu0 %v1570, 64
      %v1573 = vpop.permute.xlu0 %1572
      %v1575 = vmul.f32 %v1557, %v1573
      %1577 = vrot.lane.b32.xlu0 %v1575, 32
      %v1578 = vpop.permute.xlu0 %1577
      %1580 = vst.msk [vmem:[#allocation2 + $0x38] sm:$0xff] %vm756, %v1578
      %v1581 = vld [vmem:[#allocation2] sm:$0xff]
      %v1582 = vld [vmem:[#allocation2 + $0x8] sm:$0xff]
      %v1583 = vld [vmem:[#allocation2 + $0x10] sm:$0xff]
      %v1584 = vld [vmem:[#allocation2 + $0x18] sm:$0xff]
      %v1585 = vld [vmem:[#allocation2 + $0x20] sm:$0xff]
      %v1586 = vld [vmem:[#allocation2 + $0x28] sm:$0xff]
      %v1587 = vld [vmem:[#allocation2 + $0x30] sm:$0xff]
      %v1588 = vld [vmem:[#allocation2 + $0x38] sm:$0xff]
      %s1589 = scalar_lea.vmem [#allocation8], 128
      %v1590 = vld [vmem:[%s1589] sm:$0xff]
      %v1591 = vld [vmem:[%s1589 + $0x8] sm:$0xff]
      %v1592 = vld [vmem:[%s1589 + $0x10] sm:$0xff]
      %v1593 = vld [vmem:[%s1589 + $0x18] sm:$0xff]
      %v1594 = vld [vmem:[%s1589 + $0x20] sm:$0xff]
      %v1595 = vld [vmem:[%s1589 + $0x28] sm:$0xff]
      %v1596 = vld [vmem:[%s1589 + $0x30] sm:$0xff]
      %v1597 = vld [vmem:[%s1589 + $0x38] sm:$0xff]
      %v1598 = vld [vmem:[%s1589 + $0x40] sm:$0xff]
      %v1599 = vld [vmem:[%s1589 + $0x48] sm:$0xff]
      %v1600 = vld [vmem:[%s1589 + $0x50] sm:$0xff]
      %v1601 = vld [vmem:[%s1589 + $0x58] sm:$0xff]
      %v1602 = vld [vmem:[%s1589 + $0x60] sm:$0xff]
      %v1603 = vld [vmem:[%s1589 + $0x68] sm:$0xff]
      %v1604 = vld [vmem:[%s1589 + $0x70] sm:$0xff]
      %v1605 = vld [vmem:[%s1589 + $0x78] sm:$0xff]
      %s1606 = scalar_lea.vmem %s4, 1
      %v1607 = vld [vmem:[%s1606] sm:$0x1]
      %v1609 = vlaneseq
      %v1610 = vshrl.u32 %v1609, 7
      %v1611 = vsub.s32 0, %v1610
      %v1612 = vrot.slane %v1607, %v1611
      %1614 = vmatprep.subr.mxu0 0.0
      %1615 = vmatpush1.msra.mxu0 %v1605
      %1616 = vmatprep.subr.mxu0 0.0
      %1617 = vmatpush1.msra.mxu0 %v1604
      %1618 = vmatprep.subr.mxu0 0.0
      %1619 = vmatpush1.msra.mxu0 %v1603
      %1620 = vmatprep.subr.mxu0 0.0
      %1621 = vmatpush1.msra.mxu0 %v1602
      %1622 = vmatprep.subr.mxu0 0.0
      %1623 = vmatpush1.msra.mxu0 %v1601
      %1624 = vmatprep.subr.mxu0 0.0
      %1625 = vmatpush1.msra.mxu0 %v1600
      %1626 = vmatprep.subr.mxu0 0.0
      %1627 = vmatpush1.msra.mxu0 %v1599
      %1628 = vmatprep.subr.mxu0 0.0
      %1629 = vmatpush1.msra.mxu0 %v1598
      %1630 = vmatprep.subr.mxu0 0.0
      %1631 = vmatpush1.msra.mxu0 %v1597
      %1632 = vmatprep.subr.mxu0 0.0
      %1633 = vmatpush1.msra.mxu0 %v1596
      %1634 = vmatprep.subr.mxu0 0.0
      %1635 = vmatpush1.msra.mxu0 %v1595
      %1636 = vmatprep.subr.mxu0 0.0
      %1637 = vmatpush1.msra.mxu0 %v1594
      %1638 = vmatprep.subr.mxu0 0.0
      %1639 = vmatpush1.msra.mxu0 %v1593
      %1640 = vmatprep.subr.mxu0 0.0
      %1641 = vmatpush1.msra.mxu0 %v1592
      %1642 = vmatprep.subr.mxu0 0.0
      %1643 = vmatpush1.msra.mxu0 %v1591
      %1644 = vmatprep.subr.mxu0 0.0
      %1645 = vmatpush1.msra.mxu0 %v1590
      %1646 = vmatprep.subr.mxu0 0.0
      %1647 = vmatpush2.msra.mxu0 0.0
      %1648 = vmatprep.subr.mxu0 0.0
      %1649 = vmatpush2.msra.mxu0 0.0
      %1650 = vmatprep.subr.mxu0 0.0
      %1651 = vmatpush2.msra.mxu0 0.0
      %1652 = vmatprep.subr.mxu0 0.0
      %1653 = vmatpush2.msra.mxu0 0.0
      %1654 = vmatprep.subr.mxu0 0.0
      %1655 = vmatpush2.msra.mxu0 0.0
      %1656 = vmatprep.subr.mxu0 0.0
      %1657 = vmatpush2.msra.mxu0 0.0
      %1658 = vmatprep.subr.mxu0 0.0
      %1659 = vmatpush2.msra.mxu0 0.0
      %1660 = vmatprep.subr.mxu0 0.0
      %1661 = vmatpush2.msra.mxu0 0.0
      %1662 = vmatprep.subr.mxu0 0.0
      %1663 = vmatpush2.msra.mxu0 0.0
      %1664 = vmatprep.subr.mxu0 0.0
      %1665 = vmatpush2.msra.mxu0 0.0
      %1666 = vmatprep.subr.mxu0 0.0
      %1667 = vmatpush2.msra.mxu0 0.0
      %1668 = vmatprep.subr.mxu0 0.0
      %1669 = vmatpush2.msra.mxu0 0.0
      %1670 = vmatprep.subr.mxu0 0.0
      %1671 = vmatpush2.msra.mxu0 0.0
      %1672 = vmatprep.subr.mxu0 0.0
      %1673 = vmatpush2.msra.mxu0 0.0
      %1674 = vmatprep.subr.mxu0 0.0
      %1675 = vmatpush2.msra.mxu0 0.0
      %1676 = vmatprep.subr.mxu0 0.0
      %1677 = vmatpush2.msra.mxu0 0.0
      %1678 = vmatprep.mubr.f32.mxu0 0.0
      %1679 = vmatmul.mubr.f32.gmra.mxu0 %v1581
      %v1680 = vpop.f32.mrf.mxu0
      %v1681 = vadd.f32 %v1612, %v1680
      %v1682 = vpop.f32.mrf.mxu0
      %1683 = vmatprep.mubr.f32.mxu0 0.0
      %1684 = vmatmul.mubr.f32.gmra.mxu0 %v1582
      %v1685 = vpop.f32.mrf.mxu0
      %v1686 = vadd.f32 %v1612, %v1685
      %v1687 = vpop.f32.mrf.mxu0
      %1688 = vmatprep.mubr.f32.mxu0 0.0
      %1689 = vmatmul.mubr.f32.gmra.mxu0 %v1583
      %v1690 = vpop.f32.mrf.mxu0
      %v1691 = vadd.f32 %v1612, %v1690
      %v1692 = vpop.f32.mrf.mxu0
      %1693 = vmatprep.mubr.f32.mxu0 0.0
      %1694 = vmatmul.mubr.f32.gmra.mxu0 %v1584
      %v1695 = vpop.f32.mrf.mxu0
      %v1696 = vadd.f32 %v1612, %v1695
      %v1697 = vpop.f32.mrf.mxu0
      %1698 = vmatprep.mubr.f32.mxu0 0.0
      %1699 = vmatmul.mubr.f32.gmra.mxu0 %v1585
      %v1700 = vpop.f32.mrf.mxu0
      %v1701 = vadd.f32 %v1612, %v1700
      %v1702 = vpop.f32.mrf.mxu0
      %1703 = vmatprep.mubr.f32.mxu0 0.0
      %1704 = vmatmul.mubr.f32.gmra.mxu0 %v1586
      %v1705 = vpop.f32.mrf.mxu0
      %v1706 = vadd.f32 %v1612, %v1705
      %v1707 = vpop.f32.mrf.mxu0
      %1708 = vmatprep.mubr.f32.mxu0 0.0
      %1709 = vmatmul.mubr.f32.gmra.mxu0 %v1587
      %v1710 = vpop.f32.mrf.mxu0
      %v1711 = vadd.f32 %v1612, %v1710
      %v1712 = vpop.f32.mrf.mxu0
      %1713 = vmatprep.mubr.f32.mxu0 0.0
      %1714 = vmatmul.mubr.f32.gmra.mxu0 %v1588
      %v1715 = vpop.f32.mrf.mxu0
      %v1716 = vadd.f32 %v1612, %v1715
      %v1717 = vpop.f32.mrf.mxu0
      %1718 = vdwg.mxu0
      %1719 = vst [vmem:[#allocation3] sm:$0xff] %v1681
      %1720 = vst [vmem:[#allocation3 + $0x8] sm:$0xff] %v1686
      %1721 = vst [vmem:[#allocation3 + $0x10] sm:$0xff] %v1691
      %1722 = vst [vmem:[#allocation3 + $0x18] sm:$0xff] %v1696
      %1723 = vst [vmem:[#allocation3 + $0x20] sm:$0xff] %v1701
      %1724 = vst [vmem:[#allocation3 + $0x28] sm:$0xff] %v1706
      %1725 = vst [vmem:[#allocation3 + $0x30] sm:$0xff] %v1711
      %1726 = vst [vmem:[#allocation3 + $0x38] sm:$0xff] %v1716
      %s1727 = scalar_lea.vmem [#allocation10], 32
      %v1728 = vld [vmem:[%s1727] sm:$0xff]
      %v1729 = vld [vmem:[%s1727 + $0x8] sm:$0xff]
      %v1730 = vld [vmem:[%s1727 + $0x10] sm:$0xff]
      %v1731 = vld [vmem:[%s1727 + $0x18] sm:$0xff]
      %v1732 = vld [vmem:[#allocation3] sm:$0xff]
      %1733 = vmatprep.subr.mxu0 0.0
      %1734 = vmatpush1.msra.mxu0 0.0
      %1735 = vmatprep.subr.mxu0 0.0
      %1736 = vmatpush1.msra.mxu0 0.0
      %1737 = vmatprep.subr.mxu0 0.0
      %1738 = vmatpush1.msra.mxu0 0.0
      %1739 = vmatprep.subr.mxu0 0.0
      %1740 = vmatpush1.msra.mxu0 0.0
      %1741 = vmatprep.subr.mxu0 0.0
      %1742 = vmatpush1.msra.mxu0 0.0
      %1743 = vmatprep.subr.mxu0 0.0
      %1744 = vmatpush1.msra.mxu0 0.0
      %1745 = vmatprep.subr.mxu0 0.0
      %1746 = vmatpush1.msra.mxu0 0.0
      %1747 = vmatprep.subr.mxu0 0.0
      %1748 = vmatpush1.msra.mxu0 0.0
      %1749 = vmatprep.subr.mxu0 0.0
      %1750 = vmatpush1.msra.mxu0 0.0
      %1751 = vmatprep.subr.mxu0 0.0
      %1752 = vmatpush1.msra.mxu0 0.0
      %1753 = vmatprep.subr.mxu0 0.0
      %1754 = vmatpush1.msra.mxu0 0.0
      %1755 = vmatprep.subr.mxu0 0.0
      %1756 = vmatpush1.msra.mxu0 0.0
      %1757 = vmatprep.subr.mxu0 0.0
      %1758 = vmatpush1.msra.mxu0 %v1731
      %1759 = vmatprep.subr.mxu0 0.0
      %1760 = vmatpush1.msra.mxu0 %v1730
      %1761 = vmatprep.subr.mxu0 0.0
      %1762 = vmatpush1.msra.mxu0 %v1729
      %1763 = vmatprep.subr.mxu0 0.0
      %1764 = vmatpush1.msra.mxu0 %v1728
      %1765 = vmatprep.subr.mxu0 0.0
      %1766 = vmatpush2.msra.mxu0 0.0
      %1767 = vmatprep.subr.mxu0 0.0
      %1768 = vmatpush2.msra.mxu0 0.0
      %1769 = vmatprep.subr.mxu0 0.0
      %1770 = vmatpush2.msra.mxu0 0.0
      %1771 = vmatprep.subr.mxu0 0.0
      %1772 = vmatpush2.msra.mxu0 0.0
      %1773 = vmatprep.subr.mxu0 0.0
      %1774 = vmatpush2.msra.mxu0 0.0
      %1775 = vmatprep.subr.mxu0 0.0
      %1776 = vmatpush2.msra.mxu0 0.0
      %1777 = vmatprep.subr.mxu0 0.0
      %1778 = vmatpush2.msra.mxu0 0.0
      %1779 = vmatprep.subr.mxu0 0.0
      %1780 = vmatpush2.msra.mxu0 0.0
      %1781 = vmatprep.subr.mxu0 0.0
      %1782 = vmatpush2.msra.mxu0 0.0
      %1783 = vmatprep.subr.mxu0 0.0
      %1784 = vmatpush2.msra.mxu0 0.0
      %1785 = vmatprep.subr.mxu0 0.0
      %1786 = vmatpush2.msra.mxu0 0.0
      %1787 = vmatprep.subr.mxu0 0.0
      %1788 = vmatpush2.msra.mxu0 0.0
      %1789 = vmatprep.subr.mxu0 0.0
      %1790 = vmatpush2.msra.mxu0 0.0
      %1791 = vmatprep.subr.mxu0 0.0
      %1792 = vmatpush2.msra.mxu0 0.0
      %1793 = vmatprep.subr.mxu0 0.0
      %1794 = vmatpush2.msra.mxu0 0.0
      %1795 = vmatprep.subr.mxu0 0.0
      %1796 = vmatpush2.msra.mxu0 0.0
      %1797 = vmatprep.mubr.f32.mxu0 0.0
      %1798 = vmatmul.mubr.f32.gmra.mxu0 %v758
      %v1799 = vpop.f32.mrf.mxu0
      %v1800 = vadd.f32 0.0, %v1799
      %v1801 = vpop.f32.mrf.mxu0
      %1802 = vdwg.mxu0
      %v1803 = vadd.f32 %v1732, %v1800
      %v1804 = vxor.u32 %v1803, 2147483648
      %v1805 = vmul.f32 %v1804, 1.442695
      %v1806 = vpow.pop %v1805
      %v1807 = vadd.f32 %v1806, 1.0
      %v1808 = vrcp.pop %v1807
      %v1809 = vmul.f32 1.0, %v1808
      %v1810 = vtanh.pop %v1803
      %v1811 = vmul.f32 %v1809, 0.0
      %1813 = vrot.lane.b32.xlu0 %v1810, 64
      %v1814 = vpop.permute.xlu0 %1813
      %v1816 = vmul.f32 %v1809, %v1814
      %1818 = vrot.lane.b32.xlu0 %v1816, 32
      %v1819 = vpop.permute.xlu0 %1818
      %v1821 = vadd.f32 %v1811, %v1819
      %v1822 = vtanh.pop %v1821
      %1824 = vrot.lane.b32.xlu0 %v1822, 64
      %v1825 = vpop.permute.xlu0 %1824
      %v1827 = vmul.f32 %v1809, %v1825
      %1829 = vrot.lane.b32.xlu0 %v1827, 32
      %v1830 = vpop.permute.xlu0 %1829
      %1832 = vst.msk [vmem:[#allocation2] sm:$0xff] %vm756, %v1830
      %v1833 = vld [vmem:[#allocation3 + $0x8] sm:$0xff]
      %v1834 = vsel %vm756, %v1830, 0
      %1836 = vmatprep.subr.mxu0 0.0
      %1837 = vmatpush1.msra.mxu0 0.0
      %1838 = vmatprep.subr.mxu0 0.0
      %1839 = vmatpush1.msra.mxu0 0.0
      %1840 = vmatprep.subr.mxu0 0.0
      %1841 = vmatpush1.msra.mxu0 0.0
      %1842 = vmatprep.subr.mxu0 0.0
      %1843 = vmatpush1.msra.mxu0 0.0
      %1844 = vmatprep.subr.mxu0 0.0
      %1845 = vmatpush1.msra.mxu0 0.0
      %1846 = vmatprep.subr.mxu0 0.0
      %1847 = vmatpush1.msra.mxu0 0.0
      %1848 = vmatprep.subr.mxu0 0.0
      %1849 = vmatpush1.msra.mxu0 0.0
      %1850 = vmatprep.subr.mxu0 0.0
      %1851 = vmatpush1.msra.mxu0 0.0
      %1852 = vmatprep.subr.mxu0 0.0
      %1853 = vmatpush1.msra.mxu0 0.0
      %1854 = vmatprep.subr.mxu0 0.0
      %1855 = vmatpush1.msra.mxu0 0.0
      %1856 = vmatprep.subr.mxu0 0.0
      %1857 = vmatpush1.msra.mxu0 0.0
      %1858 = vmatprep.subr.mxu0 0.0
      %1859 = vmatpush1.msra.mxu0 0.0
      %1860 = vmatprep.subr.mxu0 0.0
      %1861 = vmatpush1.msra.mxu0 %v1731
      %1862 = vmatprep.subr.mxu0 0.0
      %1863 = vmatpush1.msra.mxu0 %v1730
      %1864 = vmatprep.subr.mxu0 0.0
      %1865 = vmatpush1.msra.mxu0 %v1729
      %1866 = vmatprep.subr.mxu0 0.0
      %1867 = vmatpush1.msra.mxu0 %v1728
      %1868 = vmatprep.subr.mxu0 0.0
      %1869 = vmatpush2.msra.mxu0 0.0
      %1870 = vmatprep.subr.mxu0 0.0
      %1871 = vmatpush2.msra.mxu0 0.0
      %1872 = vmatprep.subr.mxu0 0.0
      %1873 = vmatpush2.msra.mxu0 0.0
      %1874 = vmatprep.subr.mxu0 0.0
      %1875 = vmatpush2.msra.mxu0 0.0
      %1876 = vmatprep.subr.mxu0 0.0
      %1877 = vmatpush2.msra.mxu0 0.0
      %1878 = vmatprep.subr.mxu0 0.0
      %1879 = vmatpush2.msra.mxu0 0.0
      %1880 = vmatprep.subr.mxu0 0.0
      %1881 = vmatpush2.msra.mxu0 0.0
      %1882 = vmatprep.subr.mxu0 0.0
      %1883 = vmatpush2.msra.mxu0 0.0
      %1884 = vmatprep.subr.mxu0 0.0
      %1885 = vmatpush2.msra.mxu0 0.0
      %1886 = vmatprep.subr.mxu0 0.0
      %1887 = vmatpush2.msra.mxu0 0.0
      %1888 = vmatprep.subr.mxu0 0.0
      %1889 = vmatpush2.msra.mxu0 0.0
      %1890 = vmatprep.subr.mxu0 0.0
      %1891 = vmatpush2.msra.mxu0 0.0
      %1892 = vmatprep.subr.mxu0 0.0
      %1893 = vmatpush2.msra.mxu0 0.0
      %1894 = vmatprep.subr.mxu0 0.0
      %1895 = vmatpush2.msra.mxu0 0.0
      %1896 = vmatprep.subr.mxu0 0.0
      %1897 = vmatpush2.msra.mxu0 0.0
      %1898 = vmatprep.subr.mxu0 0.0
      %1899 = vmatpush2.msra.mxu0 0.0
      %1900 = vmatprep.mubr.f32.mxu0 0.0
      %1901 = vmatmul.mubr.f32.gmra.mxu0 %v1834
      %v1902 = vpop.f32.mrf.mxu0
      %v1903 = vadd.f32 0.0, %v1902
      %v1904 = vpop.f32.mrf.mxu0
      %1905 = vdwg.mxu0
      %v1906 = vadd.f32 %v1833, %v1903
      %v1907 = vxor.u32 %v1906, 2147483648
      %v1908 = vmul.f32 %v1907, 1.442695
      %v1909 = vpow.pop %v1908
      %v1910 = vadd.f32 %v1909, 1.0
      %v1911 = vrcp.pop %v1910
      %v1912 = vmul.f32 1.0, %v1911
      %v1913 = vtanh.pop %v1906
      %v1914 = vmul.f32 %v1912, %v1821
      %1916 = vrot.lane.b32.xlu0 %v1913, 64
      %v1917 = vpop.permute.xlu0 %1916
      %v1919 = vmul.f32 %v1912, %v1917
      %1921 = vrot.lane.b32.xlu0 %v1919, 32
      %v1922 = vpop.permute.xlu0 %1921
      %v1924 = vadd.f32 %v1914, %v1922
      %v1925 = vtanh.pop %v1924
      %1927 = vrot.lane.b32.xlu0 %v1925, 64
      %v1928 = vpop.permute.xlu0 %1927
      %v1930 = vmul.f32 %v1912, %v1928
      %1932 = vrot.lane.b32.xlu0 %v1930, 32
      %v1933 = vpop.permute.xlu0 %1932
      %1935 = vst.msk [vmem:[#allocation2 + $0x8] sm:$0xff] %vm756, %v1933
      %v1936 = vld [vmem:[#allocation3 + $0x10] sm:$0xff]
      %v1937 = vsel %vm756, %v1933, 0
      %1939 = vmatprep.subr.mxu0 0.0
      %1940 = vmatpush1.msra.mxu0 0.0
      %1941 = vmatprep.subr.mxu0 0.0
      %1942 = vmatpush1.msra.mxu0 0.0
      %1943 = vmatprep.subr.mxu0 0.0
      %1944 = vmatpush1.msra.mxu0 0.0
      %1945 = vmatprep.subr.mxu0 0.0
      %1946 = vmatpush1.msra.mxu0 0.0
      %1947 = vmatprep.subr.mxu0 0.0
      %1948 = vmatpush1.msra.mxu0 0.0
      %1949 = vmatprep.subr.mxu0 0.0
      %1950 = vmatpush1.msra.mxu0 0.0
      %1951 = vmatprep.subr.mxu0 0.0
      %1952 = vmatpush1.msra.mxu0 0.0
      %1953 = vmatprep.subr.mxu0 0.0
      %1954 = vmatpush1.msra.mxu0 0.0
      %1955 = vmatprep.subr.mxu0 0.0
      %1956 = vmatpush1.msra.mxu0 0.0
      %1957 = vmatprep.subr.mxu0 0.0
      %1958 = vmatpush1.msra.mxu0 0.0
      %1959 = vmatprep.subr.mxu0 0.0
      %1960 = vmatpush1.msra.mxu0 0.0
      %1961 = vmatprep.subr.mxu0 0.0
      %1962 = vmatpush1.msra.mxu0 0.0
      %1963 = vmatprep.subr.mxu0 0.0
      %1964 = vmatpush1.msra.mxu0 %v1731
      %1965 = vmatprep.subr.mxu0 0.0
      %1966 = vmatpush1.msra.mxu0 %v1730
      %1967 = vmatprep.subr.mxu0 0.0
      %1968 = vmatpush1.msra.mxu0 %v1729
      %1969 = vmatprep.subr.mxu0 0.0
      %1970 = vmatpush1.msra.mxu0 %v1728
      %1971 = vmatprep.subr.mxu0 0.0
      %1972 = vmatpush2.msra.mxu0 0.0
      %1973 = vmatprep.subr.mxu0 0.0
      %1974 = vmatpush2.msra.mxu0 0.0
      %1975 = vmatprep.subr.mxu0 0.0
      %1976 = vmatpush2.msra.mxu0 0.0
      %1977 = vmatprep.subr.mxu0 0.0
      %1978 = vmatpush2.msra.mxu0 0.0
      %1979 = vmatprep.subr.mxu0 0.0
      %1980 = vmatpush2.msra.mxu0 0.0
      %1981 = vmatprep.subr.mxu0 0.0
      %1982 = vmatpush2.msra.mxu0 0.0
      %1983 = vmatprep.subr.mxu0 0.0
      %1984 = vmatpush2.msra.mxu0 0.0
      %1985 = vmatprep.subr.mxu0 0.0
      %1986 = vmatpush2.msra.mxu0 0.0
      %1987 = vmatprep.subr.mxu0 0.0
      %1988 = vmatpush2.msra.mxu0 0.0
      %1989 = vmatprep.subr.mxu0 0.0
      %1990 = vmatpush2.msra.mxu0 0.0
      %1991 = vmatprep.subr.mxu0 0.0
      %1992 = vmatpush2.msra.mxu0 0.0
      %1993 = vmatprep.subr.mxu0 0.0
      %1994 = vmatpush2.msra.mxu0 0.0
      %1995 = vmatprep.subr.mxu0 0.0
      %1996 = vmatpush2.msra.mxu0 0.0
      %1997 = vmatprep.subr.mxu0 0.0
      %1998 = vmatpush2.msra.mxu0 0.0
      %1999 = vmatprep.subr.mxu0 0.0
      %2000 = vmatpush2.msra.mxu0 0.0
      %2001 = vmatprep.subr.mxu0 0.0
      %2002 = vmatpush2.msra.mxu0 0.0
      %2003 = vmatprep.mubr.f32.mxu0 0.0
      %2004 = vmatmul.mubr.f32.gmra.mxu0 %v1937
      %v2005 = vpop.f32.mrf.mxu0
      %v2006 = vadd.f32 0.0, %v2005
      %v2007 = vpop.f32.mrf.mxu0
      %2008 = vdwg.mxu0
      %v2009 = vadd.f32 %v1936, %v2006
      %v2010 = vxor.u32 %v2009, 2147483648
      %v2011 = vmul.f32 %v2010, 1.442695
      %v2012 = vpow.pop %v2011
      %v2013 = vadd.f32 %v2012, 1.0
      %v2014 = vrcp.pop %v2013
      %v2015 = vmul.f32 1.0, %v2014
      %v2016 = vtanh.pop %v2009
      %v2017 = vmul.f32 %v2015, %v1924
      %2019 = vrot.lane.b32.xlu0 %v2016, 64
      %v2020 = vpop.permute.xlu0 %2019
      %v2022 = vmul.f32 %v2015, %v2020
      %2024 = vrot.lane.b32.xlu0 %v2022, 32
      %v2025 = vpop.permute.xlu0 %2024
      %v2027 = vadd.f32 %v2017, %v2025
      %v2028 = vtanh.pop %v2027
      %2030 = vrot.lane.b32.xlu0 %v2028, 64
      %v2031 = vpop.permute.xlu0 %2030
      %v2033 = vmul.f32 %v2015, %v2031
      %2035 = vrot.lane.b32.xlu0 %v2033, 32
      %v2036 = vpop.permute.xlu0 %2035
      %2038 = vst.msk [vmem:[#allocation2 + $0x10] sm:$0xff] %vm756, %v2036
      %v2039 = vld [vmem:[#allocation3 + $0x18] sm:$0xff]
      %v2040 = vsel %vm756, %v2036, 0
      %2042 = vmatprep.subr.mxu0 0.0
      %2043 = vmatpush1.msra.mxu0 0.0
      %2044 = vmatprep.subr.mxu0 0.0
      %2045 = vmatpush1.msra.mxu0 0.0
      %2046 = vmatprep.subr.mxu0 0.0
      %2047 = vmatpush1.msra.mxu0 0.0
      %2048 = vmatprep.subr.mxu0 0.0
      %2049 = vmatpush1.msra.mxu0 0.0
      %2050 = vmatprep.subr.mxu0 0.0
      %2051 = vmatpush1.msra.mxu0 0.0
      %2052 = vmatprep.subr.mxu0 0.0
      %2053 = vmatpush1.msra.mxu0 0.0
      %2054 = vmatprep.subr.mxu0 0.0
      %2055 = vmatpush1.msra.mxu0 0.0
      %2056 = vmatprep.subr.mxu0 0.0
      %2057 = vmatpush1.msra.mxu0 0.0
      %2058 = vmatprep.subr.mxu0 0.0
      %2059 = vmatpush1.msra.mxu0 0.0
      %2060 = vmatprep.subr.mxu0 0.0
      %2061 = vmatpush1.msra.mxu0 0.0
      %2062 = vmatprep.subr.mxu0 0.0
      %2063 = vmatpush1.msra.mxu0 0.0
      %2064 = vmatprep.subr.mxu0 0.0
      %2065 = vmatpush1.msra.mxu0 0.0
      %2066 = vmatprep.subr.mxu0 0.0
      %2067 = vmatpush1.msra.mxu0 %v1731
      %2068 = vmatprep.subr.mxu0 0.0
      %2069 = vmatpush1.msra.mxu0 %v1730
      %2070 = vmatprep.subr.mxu0 0.0
      %2071 = vmatpush1.msra.mxu0 %v1729
      %2072 = vmatprep.subr.mxu0 0.0
      %2073 = vmatpush1.msra.mxu0 %v1728
      %2074 = vmatprep.subr.mxu0 0.0
      %2075 = vmatpush2.msra.mxu0 0.0
      %2076 = vmatprep.subr.mxu0 0.0
      %2077 = vmatpush2.msra.mxu0 0.0
      %2078 = vmatprep.subr.mxu0 0.0
      %2079 = vmatpush2.msra.mxu0 0.0
      %2080 = vmatprep.subr.mxu0 0.0
      %2081 = vmatpush2.msra.mxu0 0.0
      %2082 = vmatprep.subr.mxu0 0.0
      %2083 = vmatpush2.msra.mxu0 0.0
      %2084 = vmatprep.subr.mxu0 0.0
      %2085 = vmatpush2.msra.mxu0 0.0
      %2086 = vmatprep.subr.mxu0 0.0
      %2087 = vmatpush2.msra.mxu0 0.0
      %2088 = vmatprep.subr.mxu0 0.0
      %2089 = vmatpush2.msra.mxu0 0.0
      %2090 = vmatprep.subr.mxu0 0.0
      %2091 = vmatpush2.msra.mxu0 0.0
      %2092 = vmatprep.subr.mxu0 0.0
      %2093 = vmatpush2.msra.mxu0 0.0
      %2094 = vmatprep.subr.mxu0 0.0
      %2095 = vmatpush2.msra.mxu0 0.0
      %2096 = vmatprep.subr.mxu0 0.0
      %2097 = vmatpush2.msra.mxu0 0.0
      %2098 = vmatprep.subr.mxu0 0.0
      %2099 = vmatpush2.msra.mxu0 0.0
      %2100 = vmatprep.subr.mxu0 0.0
      %2101 = vmatpush2.msra.mxu0 0.0
      %2102 = vmatprep.subr.mxu0 0.0
      %2103 = vmatpush2.msra.mxu0 0.0
      %2104 = vmatprep.subr.mxu0 0.0
      %2105 = vmatpush2.msra.mxu0 0.0
      %2106 = vmatprep.mubr.f32.mxu0 0.0
      %2107 = vmatmul.mubr.f32.gmra.mxu0 %v2040
      %v2108 = vpop.f32.mrf.mxu0
      %v2109 = vadd.f32 0.0, %v2108
      %v2110 = vpop.f32.mrf.mxu0
      %2111 = vdwg.mxu0
      %v2112 = vadd.f32 %v2039, %v2109
      %v2113 = vxor.u32 %v2112, 2147483648
      %v2114 = vmul.f32 %v2113, 1.442695
      %v2115 = vpow.pop %v2114
      %v2116 = vadd.f32 %v2115, 1.0
      %v2117 = vrcp.pop %v2116
      %v2118 = vmul.f32 1.0, %v2117
      %v2119 = vtanh.pop %v2112
      %v2120 = vmul.f32 %v2118, %v2027
      %2122 = vrot.lane.b32.xlu0 %v2119, 64
      %v2123 = vpop.permute.xlu0 %2122
      %v2125 = vmul.f32 %v2118, %v2123
      %2127 = vrot.lane.b32.xlu0 %v2125, 32
      %v2128 = vpop.permute.xlu0 %2127
      %v2130 = vadd.f32 %v2120, %v2128
      %v2131 = vtanh.pop %v2130
      %2133 = vrot.lane.b32.xlu0 %v2131, 64
      %v2134 = vpop.permute.xlu0 %2133
      %v2136 = vmul.f32 %v2118, %v2134
      %2138 = vrot.lane.b32.xlu0 %v2136, 32
      %v2139 = vpop.permute.xlu0 %2138
      %2141 = vst.msk [vmem:[#allocation2 + $0x18] sm:$0xff] %vm756, %v2139
      %v2142 = vld [vmem:[#allocation3 + $0x20] sm:$0xff]
      %v2143 = vsel %vm756, %v2139, 0
      %2145 = vmatprep.subr.mxu0 0.0
      %2146 = vmatpush1.msra.mxu0 0.0
      %2147 = vmatprep.subr.mxu0 0.0
      %2148 = vmatpush1.msra.mxu0 0.0
      %2149 = vmatprep.subr.mxu0 0.0
      %2150 = vmatpush1.msra.mxu0 0.0
      %2151 = vmatprep.subr.mxu0 0.0
      %2152 = vmatpush1.msra.mxu0 0.0
      %2153 = vmatprep.subr.mxu0 0.0
      %2154 = vmatpush1.msra.mxu0 0.0
      %2155 = vmatprep.subr.mxu0 0.0
      %2156 = vmatpush1.msra.mxu0 0.0
      %2157 = vmatprep.subr.mxu0 0.0
      %2158 = vmatpush1.msra.mxu0 0.0
      %2159 = vmatprep.subr.mxu0 0.0
      %2160 = vmatpush1.msra.mxu0 0.0
      %2161 = vmatprep.subr.mxu0 0.0
      %2162 = vmatpush1.msra.mxu0 0.0
      %2163 = vmatprep.subr.mxu0 0.0
      %2164 = vmatpush1.msra.mxu0 0.0
      %2165 = vmatprep.subr.mxu0 0.0
      %2166 = vmatpush1.msra.mxu0 0.0
      %2167 = vmatprep.subr.mxu0 0.0
      %2168 = vmatpush1.msra.mxu0 0.0
      %2169 = vmatprep.subr.mxu0 0.0
      %2170 = vmatpush1.msra.mxu0 %v1731
      %2171 = vmatprep.subr.mxu0 0.0
      %2172 = vmatpush1.msra.mxu0 %v1730
      %2173 = vmatprep.subr.mxu0 0.0
      %2174 = vmatpush1.msra.mxu0 %v1729
      %2175 = vmatprep.subr.mxu0 0.0
      %2176 = vmatpush1.msra.mxu0 %v1728
      %2177 = vmatprep.subr.mxu0 0.0
      %2178 = vmatpush2.msra.mxu0 0.0
      %2179 = vmatprep.subr.mxu0 0.0
      %2180 = vmatpush2.msra.mxu0 0.0
      %2181 = vmatprep.subr.mxu0 0.0
      %2182 = vmatpush2.msra.mxu0 0.0
      %2183 = vmatprep.subr.mxu0 0.0
      %2184 = vmatpush2.msra.mxu0 0.0
      %2185 = vmatprep.subr.mxu0 0.0
      %2186 = vmatpush2.msra.mxu0 0.0
      %2187 = vmatprep.subr.mxu0 0.0
      %2188 = vmatpush2.msra.mxu0 0.0
      %2189 = vmatprep.subr.mxu0 0.0
      %2190 = vmatpush2.msra.mxu0 0.0
      %2191 = vmatprep.subr.mxu0 0.0
      %2192 = vmatpush2.msra.mxu0 0.0
      %2193 = vmatprep.subr.mxu0 0.0
      %2194 = vmatpush2.msra.mxu0 0.0
      %2195 = vmatprep.subr.mxu0 0.0
      %2196 = vmatpush2.msra.mxu0 0.0
      %2197 = vmatprep.subr.mxu0 0.0
      %2198 = vmatpush2.msra.mxu0 0.0
      %2199 = vmatprep.subr.mxu0 0.0
      %2200 = vmatpush2.msra.mxu0 0.0
      %2201 = vmatprep.subr.mxu0 0.0
      %2202 = vmatpush2.msra.mxu0 0.0
      %2203 = vmatprep.subr.mxu0 0.0
      %2204 = vmatpush2.msra.mxu0 0.0
      %2205 = vmatprep.subr.mxu0 0.0
      %2206 = vmatpush2.msra.mxu0 0.0
      %2207 = vmatprep.subr.mxu0 0.0
      %2208 = vmatpush2.msra.mxu0 0.0
      %2209 = vmatprep.mubr.f32.mxu0 0.0
      %2210 = vmatmul.mubr.f32.gmra.mxu0 %v2143
      %v2211 = vpop.f32.mrf.mxu0
      %v2212 = vadd.f32 0.0, %v2211
      %v2213 = vpop.f32.mrf.mxu0
      %2214 = vdwg.mxu0
      %v2215 = vadd.f32 %v2142, %v2212
      %v2216 = vxor.u32 %v2215, 2147483648
      %v2217 = vmul.f32 %v2216, 1.442695
      %v2218 = vpow.pop %v2217
      %v2219 = vadd.f32 %v2218, 1.0
      %v2220 = vrcp.pop %v2219
      %v2221 = vmul.f32 1.0, %v2220
      %v2222 = vtanh.pop %v2215
      %v2223 = vmul.f32 %v2221, %v2130
      %2225 = vrot.lane.b32.xlu0 %v2222, 64
      %v2226 = vpop.permute.xlu0 %2225
      %v2228 = vmul.f32 %v2221, %v2226
      %2230 = vrot.lane.b32.xlu0 %v2228, 32
      %v2231 = vpop.permute.xlu0 %2230
      %v2233 = vadd.f32 %v2223, %v2231
      %v2234 = vtanh.pop %v2233
      %2236 = vrot.lane.b32.xlu0 %v2234, 64
      %v2237 = vpop.permute.xlu0 %2236
      %v2239 = vmul.f32 %v2221, %v2237
      %2241 = vrot.lane.b32.xlu0 %v2239, 32
      %v2242 = vpop.permute.xlu0 %2241
      %2244 = vst.msk [vmem:[#allocation2 + $0x20] sm:$0xff] %vm756, %v2242
      %v2245 = vld [vmem:[#allocation3 + $0x28] sm:$0xff]
      %v2246 = vsel %vm756, %v2242, 0
      %2248 = vmatprep.subr.mxu0 0.0
      %2249 = vmatpush1.msra.mxu0 0.0
      %2250 = vmatprep.subr.mxu0 0.0
      %2251 = vmatpush1.msra.mxu0 0.0
      %2252 = vmatprep.subr.mxu0 0.0
      %2253 = vmatpush1.msra.mxu0 0.0
      %2254 = vmatprep.subr.mxu0 0.0
      %2255 = vmatpush1.msra.mxu0 0.0
      %2256 = vmatprep.subr.mxu0 0.0
      %2257 = vmatpush1.msra.mxu0 0.0
      %2258 = vmatprep.subr.mxu0 0.0
      %2259 = vmatpush1.msra.mxu0 0.0
      %2260 = vmatprep.subr.mxu0 0.0
      %2261 = vmatpush1.msra.mxu0 0.0
      %2262 = vmatprep.subr.mxu0 0.0
      %2263 = vmatpush1.msra.mxu0 0.0
      %2264 = vmatprep.subr.mxu0 0.0
      %2265 = vmatpush1.msra.mxu0 0.0
      %2266 = vmatprep.subr.mxu0 0.0
      %2267 = vmatpush1.msra.mxu0 0.0
      %2268 = vmatprep.subr.mxu0 0.0
      %2269 = vmatpush1.msra.mxu0 0.0
      %2270 = vmatprep.subr.mxu0 0.0
      %2271 = vmatpush1.msra.mxu0 0.0
      %2272 = vmatprep.subr.mxu0 0.0
      %2273 = vmatpush1.msra.mxu0 %v1731
      %2274 = vmatprep.subr.mxu0 0.0
      %2275 = vmatpush1.msra.mxu0 %v1730
      %2276 = vmatprep.subr.mxu0 0.0
      %2277 = vmatpush1.msra.mxu0 %v1729
      %2278 = vmatprep.subr.mxu0 0.0
      %2279 = vmatpush1.msra.mxu0 %v1728
      %2280 = vmatprep.subr.mxu0 0.0
      %2281 = vmatpush2.msra.mxu0 0.0
      %2282 = vmatprep.subr.mxu0 0.0
      %2283 = vmatpush2.msra.mxu0 0.0
      %2284 = vmatprep.subr.mxu0 0.0
      %2285 = vmatpush2.msra.mxu0 0.0
      %2286 = vmatprep.subr.mxu0 0.0
      %2287 = vmatpush2.msra.mxu0 0.0
      %2288 = vmatprep.subr.mxu0 0.0
      %2289 = vmatpush2.msra.mxu0 0.0
      %2290 = vmatprep.subr.mxu0 0.0
      %2291 = vmatpush2.msra.mxu0 0.0
      %2292 = vmatprep.subr.mxu0 0.0
      %2293 = vmatpush2.msra.mxu0 0.0
      %2294 = vmatprep.subr.mxu0 0.0
      %2295 = vmatpush2.msra.mxu0 0.0
      %2296 = vmatprep.subr.mxu0 0.0
      %2297 = vmatpush2.msra.mxu0 0.0
      %2298 = vmatprep.subr.mxu0 0.0
      %2299 = vmatpush2.msra.mxu0 0.0
      %2300 = vmatprep.subr.mxu0 0.0
      %2301 = vmatpush2.msra.mxu0 0.0
      %2302 = vmatprep.subr.mxu0 0.0
      %2303 = vmatpush2.msra.mxu0 0.0
      %2304 = vmatprep.subr.mxu0 0.0
      %2305 = vmatpush2.msra.mxu0 0.0
      %2306 = vmatprep.subr.mxu0 0.0
      %2307 = vmatpush2.msra.mxu0 0.0
      %2308 = vmatprep.subr.mxu0 0.0
      %2309 = vmatpush2.msra.mxu0 0.0
      %2310 = vmatprep.subr.mxu0 0.0
      %2311 = vmatpush2.msra.mxu0 0.0
      %2312 = vmatprep.mubr.f32.mxu0 0.0
      %2313 = vmatmul.mubr.f32.gmra.mxu0 %v2246
      %v2314 = vpop.f32.mrf.mxu0
      %v2315 = vadd.f32 0.0, %v2314
      %v2316 = vpop.f32.mrf.mxu0
      %2317 = vdwg.mxu0
      %v2318 = vadd.f32 %v2245, %v2315
      %v2319 = vxor.u32 %v2318, 2147483648
      %v2320 = vmul.f32 %v2319, 1.442695
      %v2321 = vpow.pop %v2320
      %v2322 = vadd.f32 %v2321, 1.0
      %v2323 = vrcp.pop %v2322
      %v2324 = vmul.f32 1.0, %v2323
      %v2325 = vtanh.pop %v2318
      %v2326 = vmul.f32 %v2324, %v2233
      %2328 = vrot.lane.b32.xlu0 %v2325, 64
      %v2329 = vpop.permute.xlu0 %2328
      %v2331 = vmul.f32 %v2324, %v2329
      %2333 = vrot.lane.b32.xlu0 %v2331, 32
      %v2334 = vpop.permute.xlu0 %2333
      %v2336 = vadd.f32 %v2326, %v2334
      %v2337 = vtanh.pop %v2336
      %2339 = vrot.lane.b32.xlu0 %v2337, 64
      %v2340 = vpop.permute.xlu0 %2339
      %v2342 = vmul.f32 %v2324, %v2340
      %2344 = vrot.lane.b32.xlu0 %v2342, 32
      %v2345 = vpop.permute.xlu0 %2344
      %2347 = vst.msk [vmem:[#allocation2 + $0x28] sm:$0xff] %vm756, %v2345
      %v2348 = vld [vmem:[#allocation3 + $0x30] sm:$0xff]
      %v2349 = vsel %vm756, %v2345, 0
      %2351 = vmatprep.subr.mxu0 0.0
      %2352 = vmatpush1.msra.mxu0 0.0
      %2353 = vmatprep.subr.mxu0 0.0
      %2354 = vmatpush1.msra.mxu0 0.0
      %2355 = vmatprep.subr.mxu0 0.0
      %2356 = vmatpush1.msra.mxu0 0.0
      %2357 = vmatprep.subr.mxu0 0.0
      %2358 = vmatpush1.msra.mxu0 0.0
      %2359 = vmatprep.subr.mxu0 0.0
      %2360 = vmatpush1.msra.mxu0 0.0
      %2361 = vmatprep.subr.mxu0 0.0
      %2362 = vmatpush1.msra.mxu0 0.0
      %2363 = vmatprep.subr.mxu0 0.0
      %2364 = vmatpush1.msra.mxu0 0.0
      %2365 = vmatprep.subr.mxu0 0.0
      %2366 = vmatpush1.msra.mxu0 0.0
      %2367 = vmatprep.subr.mxu0 0.0
      %2368 = vmatpush1.msra.mxu0 0.0
      %2369 = vmatprep.subr.mxu0 0.0
      %2370 = vmatpush1.msra.mxu0 0.0
      %2371 = vmatprep.subr.mxu0 0.0
      %2372 = vmatpush1.msra.mxu0 0.0
      %2373 = vmatprep.subr.mxu0 0.0
      %2374 = vmatpush1.msra.mxu0 0.0
      %2375 = vmatprep.subr.mxu0 0.0
      %2376 = vmatpush1.msra.mxu0 %v1731
      %2377 = vmatprep.subr.mxu0 0.0
      %2378 = vmatpush1.msra.mxu0 %v1730
      %2379 = vmatprep.subr.mxu0 0.0
      %2380 = vmatpush1.msra.mxu0 %v1729
      %2381 = vmatprep.subr.mxu0 0.0
      %2382 = vmatpush1.msra.mxu0 %v1728
      %2383 = vmatprep.subr.mxu0 0.0
      %2384 = vmatpush2.msra.mxu0 0.0
      %2385 = vmatprep.subr.mxu0 0.0
      %2386 = vmatpush2.msra.mxu0 0.0
      %2387 = vmatprep.subr.mxu0 0.0
      %2388 = vmatpush2.msra.mxu0 0.0
      %2389 = vmatprep.subr.mxu0 0.0
      %2390 = vmatpush2.msra.mxu0 0.0
      %2391 = vmatprep.subr.mxu0 0.0
      %2392 = vmatpush2.msra.mxu0 0.0
      %2393 = vmatprep.subr.mxu0 0.0
      %2394 = vmatpush2.msra.mxu0 0.0
      %2395 = vmatprep.subr.mxu0 0.0
      %2396 = vmatpush2.msra.mxu0 0.0
      %2397 = vmatprep.subr.mxu0 0.0
      %2398 = vmatpush2.msra.mxu0 0.0
      %2399 = vmatprep.subr.mxu0 0.0
      %2400 = vmatpush2.msra.mxu0 0.0
      %2401 = vmatprep.subr.mxu0 0.0
      %2402 = vmatpush2.msra.mxu0 0.0
      %2403 = vmatprep.subr.mxu0 0.0
      %2404 = vmatpush2.msra.mxu0 0.0
      %2405 = vmatprep.subr.mxu0 0.0
      %2406 = vmatpush2.msra.mxu0 0.0
      %2407 = vmatprep.subr.mxu0 0.0
      %2408 = vmatpush2.msra.mxu0 0.0
      %2409 = vmatprep.subr.mxu0 0.0
      %2410 = vmatpush2.msra.mxu0 0.0
      %2411 = vmatprep.subr.mxu0 0.0
      %2412 = vmatpush2.msra.mxu0 0.0
      %2413 = vmatprep.subr.mxu0 0.0
      %2414 = vmatpush2.msra.mxu0 0.0
      %2415 = vmatprep.mubr.f32.mxu0 0.0
      %2416 = vmatmul.mubr.f32.gmra.mxu0 %v2349
      %v2417 = vpop.f32.mrf.mxu0
      %v2418 = vadd.f32 0.0, %v2417
      %v2419 = vpop.f32.mrf.mxu0
      %2420 = vdwg.mxu0
      %v2421 = vadd.f32 %v2348, %v2418
      %v2422 = vxor.u32 %v2421, 2147483648
      %v2423 = vmul.f32 %v2422, 1.442695
      %v2424 = vpow.pop %v2423
      %v2425 = vadd.f32 %v2424, 1.0
      %v2426 = vrcp.pop %v2425
      %v2427 = vmul.f32 1.0, %v2426
      %v2428 = vtanh.pop %v2421
      %v2429 = vmul.f32 %v2427, %v2336
      %2431 = vrot.lane.b32.xlu0 %v2428, 64
      %v2432 = vpop.permute.xlu0 %2431
      %v2434 = vmul.f32 %v2427, %v2432
      %2436 = vrot.lane.b32.xlu0 %v2434, 32
      %v2437 = vpop.permute.xlu0 %2436
      %v2439 = vadd.f32 %v2429, %v2437
      %v2440 = vtanh.pop %v2439
      %2442 = vrot.lane.b32.xlu0 %v2440, 64
      %v2443 = vpop.permute.xlu0 %2442
      %v2445 = vmul.f32 %v2427, %v2443
      %2447 = vrot.lane.b32.xlu0 %v2445, 32
      %v2448 = vpop.permute.xlu0 %2447
      %2450 = vst.msk [vmem:[#allocation2 + $0x30] sm:$0xff] %vm756, %v2448
      %v2451 = vld [vmem:[#allocation3 + $0x38] sm:$0xff]
      %v2452 = vsel %vm756, %v2448, 0
      %2454 = vmatprep.subr.mxu0 0.0
      %2455 = vmatpush1.msra.mxu0 0.0
      %2456 = vmatprep.subr.mxu0 0.0
      %2457 = vmatpush1.msra.mxu0 0.0
      %2458 = vmatprep.subr.mxu0 0.0
      %2459 = vmatpush1.msra.mxu0 0.0
      %2460 = vmatprep.subr.mxu0 0.0
      %2461 = vmatpush1.msra.mxu0 0.0
      %2462 = vmatprep.subr.mxu0 0.0
      %2463 = vmatpush1.msra.mxu0 0.0
      %2464 = vmatprep.subr.mxu0 0.0
      %2465 = vmatpush1.msra.mxu0 0.0
      %2466 = vmatprep.subr.mxu0 0.0
      %2467 = vmatpush1.msra.mxu0 0.0
      %2468 = vmatprep.subr.mxu0 0.0
      %2469 = vmatpush1.msra.mxu0 0.0
      %2470 = vmatprep.subr.mxu0 0.0
      %2471 = vmatpush1.msra.mxu0 0.0
      %2472 = vmatprep.subr.mxu0 0.0
      %2473 = vmatpush1.msra.mxu0 0.0
      %2474 = vmatprep.subr.mxu0 0.0
      %2475 = vmatpush1.msra.mxu0 0.0
      %2476 = vmatprep.subr.mxu0 0.0
      %2477 = vmatpush1.msra.mxu0 0.0
      %2478 = vmatprep.subr.mxu0 0.0
      %2479 = vmatpush1.msra.mxu0 %v1731
      %2480 = vmatprep.subr.mxu0 0.0
      %2481 = vmatpush1.msra.mxu0 %v1730
      %2482 = vmatprep.subr.mxu0 0.0
      %2483 = vmatpush1.msra.mxu0 %v1729
      %2484 = vmatprep.subr.mxu0 0.0
      %2485 = vmatpush1.msra.mxu0 %v1728
      %2486 = vmatprep.subr.mxu0 0.0
      %2487 = vmatpush2.msra.mxu0 0.0
      %2488 = vmatprep.subr.mxu0 0.0
      %2489 = vmatpush2.msra.mxu0 0.0
      %2490 = vmatprep.subr.mxu0 0.0
      %2491 = vmatpush2.msra.mxu0 0.0
      %2492 = vmatprep.subr.mxu0 0.0
      %2493 = vmatpush2.msra.mxu0 0.0
      %2494 = vmatprep.subr.mxu0 0.0
      %2495 = vmatpush2.msra.mxu0 0.0
      %2496 = vmatprep.subr.mxu0 0.0
      %2497 = vmatpush2.msra.mxu0 0.0
      %2498 = vmatprep.subr.mxu0 0.0
      %2499 = vmatpush2.msra.mxu0 0.0
      %2500 = vmatprep.subr.mxu0 0.0
      %2501 = vmatpush2.msra.mxu0 0.0
      %2502 = vmatprep.subr.mxu0 0.0
      %2503 = vmatpush2.msra.mxu0 0.0
      %2504 = vmatprep.subr.mxu0 0.0
      %2505 = vmatpush2.msra.mxu0 0.0
      %2506 = vmatprep.subr.mxu0 0.0
      %2507 = vmatpush2.msra.mxu0 0.0
      %2508 = vmatprep.subr.mxu0 0.0
      %2509 = vmatpush2.msra.mxu0 0.0
      %2510 = vmatprep.subr.mxu0 0.0
      %2511 = vmatpush2.msra.mxu0 0.0
      %2512 = vmatprep.subr.mxu0 0.0
      %2513 = vmatpush2.msra.mxu0 0.0
      %2514 = vmatprep.subr.mxu0 0.0
      %2515 = vmatpush2.msra.mxu0 0.0
      %2516 = vmatprep.subr.mxu0 0.0
      %2517 = vmatpush2.msra.mxu0 0.0
      %2518 = vmatprep.mubr.f32.mxu0 0.0
      %2519 = vmatmul.mubr.f32.gmra.mxu0 %v2452
      %v2520 = vpop.f32.mrf.mxu0
      %v2521 = vadd.f32 0.0, %v2520
      %v2522 = vpop.f32.mrf.mxu0
      %2523 = vdwg.mxu0
      %v2524 = vadd.f32 %v2451, %v2521
      %v2525 = vxor.u32 %v2524, 2147483648
      %v2526 = vmul.f32 %v2525, 1.442695
      %v2527 = vpow.pop %v2526
      %v2528 = vadd.f32 %v2527, 1.0
      %v2529 = vrcp.pop %v2528
      %v2530 = vmul.f32 1.0, %v2529
      %v2531 = vtanh.pop %v2524
      %v2532 = vmul.f32 %v2530, %v2439
      %2534 = vrot.lane.b32.xlu0 %v2531, 64
      %v2535 = vpop.permute.xlu0 %2534
      %v2537 = vmul.f32 %v2530, %v2535
      %2539 = vrot.lane.b32.xlu0 %v2537, 32
      %v2540 = vpop.permute.xlu0 %2539
      %v2542 = vadd.f32 %v2532, %v2540
      %v2543 = vtanh.pop %v2542
      %2545 = vrot.lane.b32.xlu0 %v2543, 64
      %v2546 = vpop.permute.xlu0 %2545
      %v2548 = vmul.f32 %v2530, %v2546
      %2550 = vrot.lane.b32.xlu0 %v2548, 32
      %v2551 = vpop.permute.xlu0 %2550
      %2553 = vst.msk [vmem:[#allocation2 + $0x38] sm:$0xff] %vm756, %v2551
    $region49: #{shared_language_model_forward.1} parent=1 // pred_fallthru
      _
    %v2554 = vld [vmem:[#allocation2] sm:$0xff]
    %v2555 = vld [vmem:[#allocation2 + $0x8] sm:$0xff]
    %v2556 = vld [vmem:[#allocation2 + $0x10] sm:$0xff]
    %v2557 = vld [vmem:[#allocation2 + $0x18] sm:$0xff]
    %v2558 = vld [vmem:[#allocation2 + $0x20] sm:$0xff]
    %v2559 = vld [vmem:[#allocation2 + $0x28] sm:$0xff]
    %v2560 = vld [vmem:[#allocation2 + $0x30] sm:$0xff]
    %v2561 = vld [vmem:[#allocation2 + $0x38] sm:$0xff]
    %v2562 = vld [vmem:[#allocation11] sm:$0xff]
    %v2563 = vld [vmem:[#allocation11 + $0x8] sm:$0xff]
    %v2564 = vld [vmem:[#allocation11 + $0x10] sm:$0xff]
    %v2565 = vld [vmem:[#allocation11 + $0x18] sm:$0xff]
    %v2566 = vld [vmem:[#allocation11 + $0x20] sm:$0xff]
    %v2567 = vld [vmem:[#allocation11 + $0x28] sm:$0xff]
    %v2568 = vld [vmem:[#allocation11 + $0x30] sm:$0xff]
    %v2569 = vld [vmem:[#allocation11 + $0x38] sm:$0xff]
    %v2570 = vld [vmem:[#allocation11 + $0x40] sm:$0xff]
    %v2571 = vld [vmem:[#allocation11 + $0x48] sm:$0xff]
    %v2572 = vld [vmem:[#allocation11 + $0x50] sm:$0xff]
    %v2573 = vld [vmem:[#allocation11 + $0x58] sm:$0xff]
    %v2574 = vld [vmem:[#allocation11 + $0x60] sm:$0xff]
    %v2575 = vld [vmem:[#allocation11 + $0x68] sm:$0xff]
    %v2576 = vld [vmem:[#allocation11 + $0x70] sm:$0xff]
    %v2577 = vld [vmem:[#allocation11 + $0x78] sm:$0xff]
    %2578 = vmatprep.subr.mxu0 0.0
    %2579 = vmatpush1.msra.mxu0 %v2577
    %2580 = vmatprep.subr.mxu0 0.0
    %2581 = vmatpush1.msra.mxu0 %v2576
    %2582 = vmatprep.subr.mxu0 0.0
    %2583 = vmatpush1.msra.mxu0 %v2575
    %2584 = vmatprep.subr.mxu0 0.0
    %2585 = vmatpush1.msra.mxu0 %v2574
    %2586 = vmatprep.subr.mxu0 0.0
    %2587 = vmatpush1.msra.mxu0 %v2573
    %2588 = vmatprep.subr.mxu0 0.0
    %2589 = vmatpush1.msra.mxu0 %v2572
    %2590 = vmatprep.subr.mxu0 0.0
    %2591 = vmatpush1.msra.mxu0 %v2571
    %2592 = vmatprep.subr.mxu0 0.0
    %2593 = vmatpush1.msra.mxu0 %v2570
    %2594 = vmatprep.subr.mxu0 0.0
    %2595 = vmatpush1.msra.mxu0 %v2569
    %2596 = vmatprep.subr.mxu0 0.0
    %2597 = vmatpush1.msra.mxu0 %v2568
    %2598 = vmatprep.subr.mxu0 0.0
    %2599 = vmatpush1.msra.mxu0 %v2567
    %2600 = vmatprep.subr.mxu0 0.0
    %2601 = vmatpush1.msra.mxu0 %v2566
    %2602 = vmatprep.subr.mxu0 0.0
    %2603 = vmatpush1.msra.mxu0 %v2565
    %2604 = vmatprep.subr.mxu0 0.0
    %2605 = vmatpush1.msra.mxu0 %v2564
    %2606 = vmatprep.subr.mxu0 0.0
    %2607 = vmatpush1.msra.mxu0 %v2563
    %2608 = vmatprep.subr.mxu0 0.0
    %2609 = vmatpush1.msra.mxu0 %v2562
    %2610 = vmatprep.subr.mxu0 0.0
    %2611 = vmatpush2.msra.mxu0 0.0
    %2612 = vmatprep.subr.mxu0 0.0
    %2613 = vmatpush2.msra.mxu0 0.0
    %2614 = vmatprep.subr.mxu0 0.0
    %2615 = vmatpush2.msra.mxu0 0.0
    %2616 = vmatprep.subr.mxu0 0.0
    %2617 = vmatpush2.msra.mxu0 0.0
    %2618 = vmatprep.subr.mxu0 0.0
    %2619 = vmatpush2.msra.mxu0 0.0
    %2620 = vmatprep.subr.mxu0 0.0
    %2621 = vmatpush2.msra.mxu0 0.0
    %2622 = vmatprep.subr.mxu0 0.0
    %2623 = vmatpush2.msra.mxu0 0.0
    %2624 = vmatprep.subr.mxu0 0.0
    %2625 = vmatpush2.msra.mxu0 0.0
    %2626 = vmatprep.subr.mxu0 0.0
    %2627 = vmatpush2.msra.mxu0 0.0
    %2628 = vmatprep.subr.mxu0 0.0
    %2629 = vmatpush2.msra.mxu0 0.0
    %2630 = vmatprep.subr.mxu0 0.0
    %2631 = vmatpush2.msra.mxu0 0.0
    %2632 = vmatprep.subr.mxu0 0.0
    %2633 = vmatpush2.msra.mxu0 0.0
    %2634 = vmatprep.subr.mxu0 0.0
    %2635 = vmatpush2.msra.mxu0 0.0
    %2636 = vmatprep.subr.mxu0 0.0
    %2637 = vmatpush2.msra.mxu0 0.0
    %2638 = vmatprep.subr.mxu0 0.0
    %2639 = vmatpush2.msra.mxu0 0.0
    %2640 = vmatprep.subr.mxu0 0.0
    %2641 = vmatpush2.msra.mxu0 0.0
    %2642 = vmatprep.mubr.f32.mxu0 0.0
    %2643 = vmatmul.mubr.f32.gmra.mxu0 %v2554
    %v2644 = vpop.f32.mrf.mxu0
    %v2645 = vadd.f32 0.0, %v2644
    %v2646 = vpop.f32.mrf.mxu0
    %2647 = vmatprep.mubr.f32.mxu0 0.0
    %2648 = vmatmul.mubr.f32.gmra.mxu0 %v2555
    %v2649 = vpop.f32.mrf.mxu0
    %v2650 = vadd.f32 0.0, %v2649
    %v2651 = vpop.f32.mrf.mxu0
    %2652 = vmatprep.mubr.f32.mxu0 0.0
    %2653 = vmatmul.mubr.f32.gmra.mxu0 %v2556
    %v2654 = vpop.f32.mrf.mxu0
    %v2655 = vadd.f32 0.0, %v2654
    %v2656 = vpop.f32.mrf.mxu0
    %2657 = vmatprep.mubr.f32.mxu0 0.0
    %2658 = vmatmul.mubr.f32.gmra.mxu0 %v2557
    %v2659 = vpop.f32.mrf.mxu0
    %v2660 = vadd.f32 0.0, %v2659
    %v2661 = vpop.f32.mrf.mxu0
    %2662 = vmatprep.mubr.f32.mxu0 0.0
    %2663 = vmatmul.mubr.f32.gmra.mxu0 %v2558
    %v2664 = vpop.f32.mrf.mxu0
    %v2665 = vadd.f32 0.0, %v2664
    %v2666 = vpop.f32.mrf.mxu0
    %2667 = vmatprep.mubr.f32.mxu0 0.0
    %2668 = vmatmul.mubr.f32.gmra.mxu0 %v2559
    %v2669 = vpop.f32.mrf.mxu0
    %v2670 = vadd.f32 0.0, %v2669
    %v2671 = vpop.f32.mrf.mxu0
    %2672 = vmatprep.mubr.f32.mxu0 0.0
    %2673 = vmatmul.mubr.f32.gmra.mxu0 %v2560
    %v2674 = vpop.f32.mrf.mxu0
    %v2675 = vadd.f32 0.0, %v2674
    %v2676 = vpop.f32.mrf.mxu0
    %2677 = vmatprep.mubr.f32.mxu0 0.0
    %2678 = vmatmul.mubr.f32.gmra.mxu0 %v2561
    %v2679 = vpop.f32.mrf.mxu0
    %v2680 = vadd.f32 0.0, %v2679
    %v2681 = vpop.f32.mrf.mxu0
    %2682 = vdwg.mxu0
    %2683 = vst [vmem:[%s6] sm:$0xff] %v2645
    %2684 = vst [vmem:[%s6 + $0x8] sm:$0xff] %v2650
    %2685 = vst [vmem:[%s6 + $0x10] sm:$0xff] %v2655
    %2686 = vst [vmem:[%s6 + $0x18] sm:$0xff] %v2660
    %2687 = vst [vmem:[%s6 + $0x20] sm:$0xff] %v2665
    %2688 = vst [vmem:[%s6 + $0x28] sm:$0xff] %v2670
    %2689 = vst [vmem:[%s6 + $0x30] sm:$0xff] %v2675
    %2690 = vst [vmem:[%s6 + $0x38] sm:$0xff] %v2680
    // Predicated region
    $region50: #{shared_language_model_forward.1} parent=1 // pred_check
      _
    $region51: #{shared_language_model_forward.1} parent=1 // pred_check_branch
      %2692 = sbr.rel (0) target = $region53
    $region52: #{shared_language_model_forward.1} parent=1 // pred_region
      _
    $region53: #{shared_language_model_forward.1} parent=1 // pred_fallthru
      _
    // Predicated region
    $region54: #{shared_language_model_forward.1} parent=1 // pred_check
      _
    $region55: #{shared_language_model_forward.1} parent=1 // pred_check_branch
      %2694 = sbr.rel (0) target = $region57
    $region56: #{shared_language_model_forward.1} parent=1 // pred_region
      _
    $region57: #{shared_language_model_forward.1} parent=1 // pred_fallthru
      _
    %2695 = vsyncpa [#allocation5], 1
    %2696 = vsyncpa [#allocation9], 1
    %2697 = vsyncpa [#allocation12], 1
    %2698 = vsyncpa [#allocation6], 1

</llo_original>
